<compile_context>
chip_gen: v7x
topology: tpu7x:2x2x1
jax: 0.10.0
libtpu: 0.0.40
codegen_flags: <defaults>
</compile_context>

<pallas_src>
import functools

import jax
import jax.numpy as jnp
from jax.experimental import pallas as pl
from jax.experimental.pallas import tpu as pltpu


# ----------------------------------------------------------------------------
# Pallas kernel: one batch element of a multi-head GAT layer (all heads fused)
# ----------------------------------------------------------------------------
def _gat_layer_kernel(x_ref, adj_ref, w_ref, a_src_ref, a_dst_ref, sel_ref,
                      bias_ref, out_ref, *, n_head, f_out, final):
    h = x_ref[0]                                   # (N, F_in)
    adj = adj_ref[0]                               # (N, N)  {0,1}
    n = h.shape[0]
    hf = n_head * f_out

    # Fused projection for all heads: one MXU matmul, lane-dense result.
    hp = jnp.dot(h, w_ref[...], preferred_element_type=jnp.float32)  # (N, H*F)
    t = jnp.tanh(hp)

    acc = jnp.zeros((n, f_out if final else hf), jnp.float32)

    # Heads unrolled (static, small).  Per-head weights are kept in
    # block-sparse "fused" form so only leading-dim ref indexing is needed.
    for hd in range(n_head):
        # attention logits: logits[i, j] = <tanh(h'_i), a_src> + <tanh(h'_j), a_dst>
        att_src = jnp.dot(t, a_src_ref[hd],
                          preferred_element_type=jnp.float32)        # (N, 1)
        att_dst = jax.lax.dot_general(
            a_dst_ref[hd], t,
            dimension_numbers=(((1,), (1,)), ((), ())),
            preferred_element_type=jnp.float32)                      # (1, N)
        logits = att_src + att_dst                                   # (N, N)

        # LeakyReLU(0.2): one vmul + vmax (no compare/select)
        logits = jnp.maximum(logits, 0.2 * logits)

        # finite mask (matches masked_fill_(-inf) but NaN-safe for empty rows)
        logits = jnp.where(adj > 0.0, logits, -1e30)

        # row-wise softmax over neighbors (reciprocal on the idle EUP slot)
        m = jnp.max(logits, axis=-1, keepdims=True)
        e = jnp.exp(logits - m)
        denom = jnp.sum(e, axis=-1, keepdims=True)
        p = e * pl.reciprocal(denom, approx=True)                    # (N, N)

        # this head's slice of h' (extracted with a selector matmul -> no
        # unaligned lane slicing inside the kernel)
        if n_head == 1:
            hp_h = hp
        else:
            hp_h = jnp.dot(hp, sel_ref[hd],
                           preferred_element_type=jnp.float32)       # (N, F)

        out_h = jnp.dot(p, hp_h, preferred_element_type=jnp.float32)  # (N, F)

        if final or n_head == 1:
            acc = acc + out_h
        else:
            # scatter back into the fused (N, H*F_out) lane layout via MXU
            acc = acc + jax.lax.dot_general(
                out_h, sel_ref[hd],
                dimension_numbers=(((1,), (1,)), ((), ())),
                preferred_element_type=jnp.float32)                  # (N, H*F)

    if final:
        # BatchGAT final layer: head mean (+ bias) then log_softmax.
        res = acc * (1.0 / n_head) + bias_ref[...][:, :f_out]
        z = res - jnp.max(res, axis=-1, keepdims=True)
        lse = jnp.log(jnp.sum(jnp.exp(z), axis=-1, keepdims=True))
        out_ref[0] = z - lse
    else:
        # intermediate layer: bias + fused ELU epilogue, lane-dense store
        res = acc + bias_ref[...]
        out_ref[0] = jnp.where(res > 0.0, res, jnp.exp(res) - 1.0)


# ----------------------------------------------------------------------------
# Layer wrapper: host-side weight packing + pallas_call
# ----------------------------------------------------------------------------
def gat_layer(h, adj, w, a_src, a_dst, bias, *, final):
    """One BatchMultiHeadGraphAttention layer with fused epilogue.

    h:     (B, N, F_in)       float32
    adj:   (B, N, N)          float32 {0,1}
    w:     (H, F_in, F_out)   float32
    a_src: (H, F_out, 1)      float32
    a_dst: (H, F_out, 1)      float32
    bias:  (F_out,)           float32
    returns (B, N, H*F_out) with fused ELU if not final,
            (B, N, F_out)   head-mean + log_softmax if final.
    """
    bs, n, f_in = h.shape
    n_head, _, f_out = w.shape
    hf = n_head * f_out

    # ---- tiny host-side weight re-packing (per layer, negligible cost) ----
    # fused projection weights: column hd*F_out + f == w[hd, :, f]
    w_fused = jnp.transpose(w, (1, 0, 2)).reshape(f_in, hf)
    # selector sel[hd]: (H*F_out, F_out) identity block for head hd
    eye_h = jnp.eye(n_head, dtype=jnp.float32)
    eye_f = jnp.eye(f_out, dtype=jnp.float32)
    sel = (eye_h[:, :, None, None] * eye_f[None, None, :, :]
           ).reshape(n_head, hf, f_out)
    # block-sparse attention vectors living in the fused feature layout
    a_src_blk = jnp.matmul(sel, a_src)                       # (H, H*F_out, 1)
    a_dst_blk = jnp.swapaxes(jnp.matmul(sel, a_dst), 1, 2)   # (H, 1, H*F_out)
    bias_t = jnp.tile(bias, n_head)[None, :]                 # (1, H*F_out)

    out_dim = f_out if final else hf
    kernel = functools.partial(_gat_layer_kernel, n_head=n_head, f_out=f_out,
                               final=final)

    return pl.pallas_call(
        kernel,
        out_shape=jax.ShapeDtypeStruct((bs, n, out_dim), jnp.float32),
        grid_spec=pltpu.PrefetchScalarGridSpec(
            num_scalar_prefetch=0,
            grid=(bs,),
            in_specs=[
                pl.BlockSpec((1, n, f_in), lambda b: (b, 0, 0)),          # x
                pl.BlockSpec((1, n, n), lambda b: (b, 0, 0)),             # adj
                pl.BlockSpec((f_in, hf), lambda b: (0, 0)),               # W fused
                pl.BlockSpec((n_head, hf, 1), lambda b: (0, 0, 0)),       # a_src blk
                pl.BlockSpec((n_head, 1, hf), lambda b: (0, 0, 0)),       # a_dst blk
                pl.BlockSpec((n_head, hf, f_out), lambda b: (0, 0, 0)),   # selectors
                pl.BlockSpec((1, hf), lambda b: (0, 0)),                  # bias
            ],
            out_specs=pl.BlockSpec((1, n, out_dim), lambda b: (b, 0, 0)),
        ),
        compiler_params=pltpu.CompilerParams(
            dimension_semantics=("parallel",)),   # batch split across TCs (v7x)
    )(h, adj, w_fused, a_src_blk, a_dst_blk, sel, bias_t)


# ----------------------------------------------------------------------------
# BatchGAT forward (embedding/concat glue in JAX, GAT layers in Pallas)
# ----------------------------------------------------------------------------
def batch_gat_forward(params, x, vertices, adj, *, use_vertex_feature=True):
    emb = params["emb_weight"][vertices]                      # (B, N, emb_dim)
    h = jnp.concatenate([x, emb], axis=2)
    if use_vertex_feature:
        h = jnp.concatenate([h, params["vertex_feature"][vertices]], axis=2)
    # TODO(synk): instance_normalization path unused (inst_norm=False).
    n_layer = len(params["layers"])
    for i, lp in enumerate(params["layers"]):
        h = gat_layer(h, adj, lp["w"], lp["a_src"], lp["a_dst"], lp["bias"],
                      final=(i + 1 == n_layer))
        # TODO(synk): F.dropout skipped (module in eval mode -> identity)
    # final kernel already applied head-mean + log_softmax
    return h


# ----------------------------------------------------------------------------
# pure-JAX reference for verification
# ----------------------------------------------------------------------------
def _gat_layer_ref(h, adj, w, a_src, a_dst, bias):
    hp = jnp.einsum("bnf,hfo->bhno", h, w)
    t = jnp.tanh(hp)
    s = jnp.einsum("bhno,hoi->bhni", t, a_src)                # (B, H, N, 1)
    d = jnp.einsum("bhno,hoi->bhni", t, a_dst)                # (B, H, N, 1)
    attn = s + jnp.swapaxes(d, -1, -2)
    attn = jnp.where(attn >= 0, attn, 0.2 * attn)
    attn = jnp.where(adj[:, None, :, :] > 0, attn, -jnp.inf)
    attn = jax.nn.softmax(attn, axis=-1)
    return jnp.einsum("bhnm,bhmo->bhno", attn, hp) + bias


def _forward_ref(params, x, vertices, adj, *, use_vertex_feature=True):
    emb = params["emb_weight"][vertices]
    h = jnp.concatenate([x, emb], axis=2)
    if use_vertex_feature:
        h = jnp.concatenate([h, params["vertex_feature"][vertices]], axis=2)
    bs, n = adj.shape[:2]
    n_layer = len(params["layers"])
    for i, lp in enumerate(params["layers"]):
        out = _gat_layer_ref(h, adj, lp["w"], lp["a_src"], lp["a_dst"],
                             lp["bias"])
        if i + 1 == n_layer:
            h = out.mean(axis=1)
        else:
            h = jax.nn.elu(jnp.transpose(out, (0, 2, 1, 3)).reshape(bs, n, -1))
    return jax.nn.log_softmax(h, axis=-1)


# ----------------------------------------------------------------------------
# Deterministic parameter / input construction
# ----------------------------------------------------------------------------
def _xavier(key, shape, fan_in, fan_out):
    bound = (6.0 / (fan_in + fan_out)) ** 0.5
    return jax.random.uniform(key, shape, jnp.float32, -bound, bound)


def make_params(key, n_units, n_heads, emb_dim, vf_dim, num_vertices):
    # mimics BatchGAT.__init__: n_units[0] += emb_dim (+ vf_dim)
    n_units = list(n_units)
    n_units[0] += emb_dim + vf_dim
    keys = jax.random.split(key, 3 + 4 * (len(n_units) - 1))
    params = {
        "emb_weight": jax.random.normal(keys[0], (num_vertices, emb_dim),
                                        jnp.float32),
        "vertex_feature": jax.random.normal(keys[1], (num_vertices, vf_dim),
                                            jnp.float32),
        "layers": [],
    }
    kidx = 3
    for i in range(len(n_units) - 1):
        f_in = n_units[i] * n_heads[i - 1] if i else n_units[i]
        f_out = n_units[i + 1]
        nh = n_heads[i]
        params["layers"].append({
            "w": _xavier(keys[kidx + 0], (nh, f_in, f_out), f_in, f_out),
            "a_src": _xavier(keys[kidx + 1], (nh, f_out, 1), f_out, 1),
            "a_dst": _xavier(keys[kidx + 2], (nh, f_out, 1), f_out, 1),
            "bias": jnp.zeros((f_out,), jnp.float32),
        })
        kidx += 4
    return params


if __name__ == "__main__":
    key = jax.random.PRNGKey(0)
    k_p, k_x, k_v, k_a = jax.random.split(key, 4)

    # small shapes consistent with the module
    bs, n = 2, 16                 # batch, nodes per ego-network
    feat_dim = 4                  # raw influence features (n_units[0] pre-concat)
    emb_dim, vf_dim = 16, 8       # pretrained_emb / vertex_feature dims
    num_vertices = 32
    n_units = [feat_dim, 8, 7]
    n_heads = [8, 1]

    params = make_params(k_p, n_units, n_heads, emb_dim, vf_dim, num_vertices)

    x = jax.random.normal(k_x, (bs, n, feat_dim), jnp.float32)
    vertices = jax.random.randint(k_v, (bs, n), 0, num_vertices, jnp.int32)
    adj = (jax.random.uniform(k_a, (bs, n, n)) < 0.4).astype(jnp.float32)
    adj = jnp.maximum(adj, jnp.swapaxes(adj, -1, -2))            # symmetrize
    adj = jnp.maximum(adj, jnp.eye(n, dtype=jnp.float32)[None])  # self loops

    fwd = jax.jit(functools.partial(batch_gat_forward, use_vertex_feature=True))
    out = jax.block_until_ready(fwd(params, x, vertices, adj))

    ref = _forward_ref(params, x, vertices, adj, use_vertex_feature=True)
    assert out.shape == (bs, n, n_units[-1])
    assert bool(jnp.all(jnp.isfinite(out)))
    # tolerance accounts for the EUP approximate reciprocal in the softmax
    assert jnp.allclose(out, ref, atol=5e-3, rtol=5e-3)

    print("KERNEL_OK")
</pallas_src>

<mosaic_0001>
module attributes {stable_mosaic.version = 11 : i64} {
  func.func @_gat_layer_kernel(%arg0: i32, %arg1: memref<1x16x64xf32, #tpu.memory_space<vmem>>, %arg2: memref<1x16x16xf32, #tpu.memory_space<vmem>>, %arg3: memref<64x7xf32, #tpu.memory_space<vmem>>, %arg4: memref<1x7x1xf32, #tpu.memory_space<vmem>>, %arg5: memref<1x1x7xf32, #tpu.memory_space<vmem>>, %arg6: memref<1x7x7xf32, #tpu.memory_space<vmem>>, %arg7: memref<1x7xf32, #tpu.memory_space<vmem>>, %arg8: memref<1x16x7xf32, #tpu.memory_space<vmem>>) attributes {dimension_semantics = [#tpu.dimension_semantics<parallel>], iteration_bounds = array<i64: 2>, scalar_prefetch = 0 : i64, scratch_operands = 0 : i64, tpu.core_type = #tpu.core_type<tc>, window_params = [{transform_indices = @transform_0, window_bounds = array<i64: 1, 16, 64>}, {transform_indices = @transform_1, window_bounds = array<i64: 1, 16, 16>}, {pipeline_mode = #tpu.pipeline_mode<synchronous>, transform_indices = @transform_2, window_bounds = array<i64: 64, 7>}, {pipeline_mode = #tpu.pipeline_mode<synchronous>, transform_indices = @transform_3, window_bounds = array<i64: 1, 7, 1>}, {pipeline_mode = #tpu.pipeline_mode<synchronous>, transform_indices = @transform_4, window_bounds = array<i64: 1, 1, 7>}, {pipeline_mode = #tpu.pipeline_mode<synchronous>, transform_indices = @transform_5, window_bounds = array<i64: 1, 7, 7>}, {pipeline_mode = #tpu.pipeline_mode<synchronous>, transform_indices = @transform_6, window_bounds = array<i64: 1, 7>}, {transform_indices = @transform_7, window_bounds = array<i64: 1, 16, 7>}]} {
    %c0 = arith.constant 0 : index
    %c0_0 = arith.constant 0 : index
    %c0_1 = arith.constant 0 : index
    %0 = vector.load %arg1[%c0, %c0_0, %c0_1] : memref<1x16x64xf32, #tpu.memory_space<vmem>>, vector<1x16x64xf32>
    %1 = vector.shape_cast %0 : vector<1x16x64xf32> to vector<16x64xf32>
    %c0_2 = arith.constant 0 : index
    %c0_3 = arith.constant 0 : index
    %c0_4 = arith.constant 0 : index
    %2 = vector.load %arg2[%c0_2, %c0_3, %c0_4] : memref<1x16x16xf32, #tpu.memory_space<vmem>>, vector<1x16x16xf32>
    %3 = vector.shape_cast %2 : vector<1x16x16xf32> to vector<16x16xf32>
    %c0_5 = arith.constant 0 : index
    %c0_6 = arith.constant 0 : index
    %4 = vector.load %arg3[%c0_5, %c0_6] : memref<64x7xf32, #tpu.memory_space<vmem>>, vector<64x7xf32>
    %cst = arith.constant dense<0.000000e+00> : vector<16x7xf32>
    %5 = tpu.matmul %1, %4, %cst {dimension_numbers = #tpu.dot_dimension_numbers<[1], [0], [0], [1], [0, 0, 1, 1], [], []>} : vector<16x64xf32>, vector<64x7xf32>, vector<16x7xf32> -> vector<16x7xf32>
    %6 = math.tanh %5 : vector<16x7xf32>
    %cst_7 = arith.constant 0.000000e+00 : f32
    %7 = vector.broadcast %cst_7 : f32 to vector<16x7xf32>
    %c0_8 = arith.constant 0 : index
    %c0_9 = arith.constant 0 : index
    %c0_10 = arith.constant 0 : index
    %8 = vector.load %arg4[%c0_8, %c0_9, %c0_10] : memref<1x7x1xf32, #tpu.memory_space<vmem>>, vector<1x7x1xf32>
    %9 = vector.shape_cast %8 : vector<1x7x1xf32> to vector<7x1xf32>
    %cst_11 = arith.constant dense<0.000000e+00> : vector<16x1xf32>
    %10 = tpu.matmul %6, %9, %cst_11 {dimension_numbers = #tpu.dot_dimension_numbers<[1], [0], [0], [1], [0, 0, 1, 1], [], []>} : vector<16x7xf32>, vector<7x1xf32>, vector<16x1xf32> -> vector<16x1xf32>
    %c0_12 = arith.constant 0 : index
    %c0_13 = arith.constant 0 : index
    %c0_14 = arith.constant 0 : index
    %11 = vector.load %arg5[%c0_12, %c0_13, %c0_14] : memref<1x1x7xf32, #tpu.memory_space<vmem>>, vector<1x1x7xf32>
    %12 = vector.shape_cast %11 : vector<1x1x7xf32> to vector<1x7xf32>
    %cst_15 = arith.constant dense<0.000000e+00> : vector<1x16xf32>
    %13 = tpu.matmul %12, %6, %cst_15 {dimension_numbers = #tpu.dot_dimension_numbers<[1], [1], [0], [0], [0, 0, 1, 0], [], []>} : vector<1x7xf32>, vector<16x7xf32>, vector<1x16xf32> -> vector<1x16xf32>
    %14 = vector.broadcast %10 : vector<16x1xf32> to vector<16x16xf32>
    %15 = vector.broadcast %13 : vector<1x16xf32> to vector<16x16xf32>
    %16 = arith.addf %14, %15 : vector<16x16xf32>
    %cst_16 = arith.constant 2.000000e-01 : f32
    %17 = vector.broadcast %cst_16 : f32 to vector<16x16xf32>
    %18 = arith.mulf %17, %16 : vector<16x16xf32>
    %19 = arith.maximumf %16, %18 : vector<16x16xf32>
    %cst_17 = arith.constant 0.000000e+00 : f32
    %20 = vector.broadcast %cst_17 : f32 to vector<16x16xf32>
    %21 = arith.cmpf ogt, %3, %20 : vector<16x16xf32>
    %cst_18 = arith.constant -1.000000e+30 : f32
    %22 = vector.broadcast %cst_18 : f32 to vector<16x16xf32>
    %23 = arith.select %21, %19, %22 : vector<16x16xi1>, vector<16x16xf32>
    %cst_19 = arith.constant dense<0xFF800000> : vector<16xf32>
    %24 = vector.multi_reduction <maximumf>, %23, %cst_19 [1] : vector<16x16xf32> to vector<16xf32>
    %25 = vector.shape_cast %24 : vector<16xf32> to vector<16x1xf32>
    %26 = vector.broadcast %25 : vector<16x1xf32> to vector<16x16xf32>
    %27 = arith.subf %23, %26 : vector<16x16xf32>
    %28 = math.exp %27 : vector<16x16xf32>
    %cst_20 = arith.constant dense<0.000000e+00> : vector<16xf32>
    %29 = vector.multi_reduction <add>, %28, %cst_20 [1] : vector<16x16xf32> to vector<16xf32>
    %30 = vector.shape_cast %29 : vector<16xf32> to vector<16x1xf32>
    %31 = tpu.reciprocal %30 {approx = true} : vector<16x1xf32> -> vector<16x1xf32>
    %32 = vector.broadcast %31 : vector<16x1xf32> to vector<16x16xf32>
    %33 = arith.mulf %28, %32 : vector<16x16xf32>
    %cst_21 = arith.constant dense<0.000000e+00> : vector<16x7xf32>
    %34 = tpu.matmul %33, %5, %cst_21 {dimension_numbers = #tpu.dot_dimension_numbers<[1], [0], [0], [1], [0, 0, 1, 1], [], []>} : vector<16x16xf32>, vector<16x7xf32>, vector<16x7xf32> -> vector<16x7xf32>
    %35 = arith.addf %7, %34 : vector<16x7xf32>
    %cst_22 = arith.constant 1.000000e+00 : f32
    %36 = vector.broadcast %cst_22 : f32 to vector<16x7xf32>
    %37 = arith.mulf %35, %36 : vector<16x7xf32>
    %c0_23 = arith.constant 0 : index
    %c0_24 = arith.constant 0 : index
    %38 = vector.load %arg7[%c0_23, %c0_24] : memref<1x7xf32, #tpu.memory_space<vmem>>, vector<1x7xf32>
    %39 = vector.broadcast %38 : vector<1x7xf32> to vector<16x7xf32>
    %40 = arith.addf %37, %39 : vector<16x7xf32>
    %cst_25 = arith.constant dense<0xFF800000> : vector<16xf32>
    %41 = vector.multi_reduction <maximumf>, %40, %cst_25 [1] : vector<16x7xf32> to vector<16xf32>
    %42 = vector.shape_cast %41 : vector<16xf32> to vector<16x1xf32>
    %43 = vector.broadcast %42 : vector<16x1xf32> to vector<16x7xf32>
    %44 = arith.subf %40, %43 : vector<16x7xf32>
    %45 = math.exp %44 : vector<16x7xf32>
    %cst_26 = arith.constant dense<0.000000e+00> : vector<16xf32>
    %46 = vector.multi_reduction <add>, %45, %cst_26 [1] : vector<16x7xf32> to vector<16xf32>
    %47 = vector.shape_cast %46 : vector<16xf32> to vector<16x1xf32>
    %48 = math.log %47 : vector<16x1xf32>
    %49 = vector.broadcast %48 : vector<16x1xf32> to vector<16x7xf32>
    %50 = arith.subf %44, %49 : vector<16x7xf32>
    %c0_27 = arith.constant 0 : index
    %c0_28 = arith.constant 0 : index
    %c0_29 = arith.constant 0 : index
    %51 = vector.load %arg8[%c0_27, %c0_28, %c0_29] : memref<1x16x7xf32, #tpu.memory_space<vmem>>, vector<1x16x7xf32>
    %52 = vector.shape_cast %51 : vector<1x16x7xf32> to vector<16x7xf32>
    %53 = vector.shape_cast %50 : vector<16x7xf32> to vector<1x16x7xf32>
    tpu.vector_store %arg8[%c0_27, %c0_28, %c0_29], %53 {strides = array<i32>} : memref<1x16x7xf32, #tpu.memory_space<vmem>>, vector<1x16x7xf32>,
    return
  }
  func.func @transform_0(%arg0: i32) -> (i32, i32, i32) {
    %c0_i32 = arith.constant 0 : i32
    %c0_i32_0 = arith.constant 0 : i32
    %c0_i32_1 = arith.constant 0 : i32
    return %arg0, %c0_i32, %c0_i32_0 : i32, i32, i32
  }
  func.func @transform_1(%arg0: i32) -> (i32, i32, i32) {
    %c0_i32 = arith.constant 0 : i32
    %c0_i32_0 = arith.constant 0 : i32
    %c0_i32_1 = arith.constant 0 : i32
    return %arg0, %c0_i32, %c0_i32_0 : i32, i32, i32
  }
  func.func @transform_2(%arg0: i32) -> (i32, i32) {
    %c0_i32 = arith.constant 0 : i32
    %c0_i32_0 = arith.constant 0 : i32
    %c0_i32_1 = arith.constant 0 : i32
    return %c0_i32, %c0_i32_0 : i32, i32
  }
  func.func @transform_3(%arg0: i32) -> (i32, i32, i32) {
    %c0_i32 = arith.constant 0 : i32
    %c0_i32_0 = arith.constant 0 : i32
    %c0_i32_1 = arith.constant 0 : i32
    %c0_i32_2 = arith.constant 0 : i32
    return %c0_i32, %c0_i32_0, %c0_i32_1 : i32, i32, i32
  }
  func.func @transform_4(%arg0: i32) -> (i32, i32, i32) {
    %c0_i32 = arith.constant 0 : i32
    %c0_i32_0 = arith.constant 0 : i32
    %c0_i32_1 = arith.constant 0 : i32
    %c0_i32_2 = arith.constant 0 : i32
    return %c0_i32, %c0_i32_0, %c0_i32_1 : i32, i32, i32
  }
  func.func @transform_5(%arg0: i32) -> (i32, i32, i32) {
    %c0_i32 = arith.constant 0 : i32
    %c0_i32_0 = arith.constant 0 : i32
    %c0_i32_1 = arith.constant 0 : i32
    %c0_i32_2 = arith.constant 0 : i32
    return %c0_i32, %c0_i32_0, %c0_i32_1 : i32, i32, i32
  }
  func.func @transform_6(%arg0: i32) -> (i32, i32) {
    %c0_i32 = arith.constant 0 : i32
    %c0_i32_0 = arith.constant 0 : i32
    %c0_i32_1 = arith.constant 0 : i32
    return %c0_i32, %c0_i32_0 : i32, i32
  }
  func.func @transform_7(%arg0: i32) -> (i32, i32, i32) {
    %c0_i32 = arith.constant 0 : i32
    %c0_i32_0 = arith.constant 0 : i32
    %c0_i32_1 = arith.constant 0 : i32
    return %arg0, %c0_i32, %c0_i32_0 : i32, i32, i32
  }
}

module attributes {stable_mosaic.version = 11 : i64} {
  func.func @_gat_layer_kernel(%arg0: i32, %arg1: memref<1x16x28xf32, #tpu.memory_space<vmem>>, %arg2: memref<1x16x16xf32, #tpu.memory_space<vmem>>, %arg3: memref<28x64xf32, #tpu.memory_space<vmem>>, %arg4: memref<8x64x1xf32, #tpu.memory_space<vmem>>, %arg5: memref<8x1x64xf32, #tpu.memory_space<vmem>>, %arg6: memref<8x64x8xf32, #tpu.memory_space<vmem>>, %arg7: memref<1x64xf32, #tpu.memory_space<vmem>>, %arg8: memref<1x16x64xf32, #tpu.memory_space<vmem>>) attributes {dimension_semantics = [#tpu.dimension_semantics<parallel>], iteration_bounds = array<i64: 2>, scalar_prefetch = 0 : i64, scratch_operands = 0 : i64, tpu.core_type = #tpu.core_type<tc>, window_params = [{transform_indices = @transform_0, window_bounds = array<i64: 1, 16, 28>}, {transform_indices = @transform_1, window_bounds = array<i64: 1, 16, 16>}, {pipeline_mode = #tpu.pipeline_mode<synchronous>, transform_indices = @transform_2, window_bounds = array<i64: 28, 64>}, {pipeline_mode = #tpu.pipeline_mode<synchronous>, transform_indices = @transform_3, window_bounds = array<i64: 8, 64, 1>}, {pipeline_mode = #tpu.pipeline_mode<synchronous>, transform_indices = @transform_4, window_bounds = array<i64: 8, 1, 64>}, {pipeline_mode = #tpu.pipeline_mode<synchronous>, transform_indices = @transform_5, window_bounds = array<i64: 8, 64, 8>}, {pipeline_mode = #tpu.pipeline_mode<synchronous>, transform_indices = @transform_6, window_bounds = array<i64: 1, 64>}, {transform_indices = @transform_7, window_bounds = array<i64: 1, 16, 64>}]} {
    %c0 = arith.constant 0 : index
    %c0_0 = arith.constant 0 : index
    %c0_1 = arith.constant 0 : index
    %0 = vector.load %arg1[%c0, %c0_0, %c0_1] : memref<1x16x28xf32, #tpu.memory_space<vmem>>, vector<1x16x28xf32>
    %1 = vector.shape_cast %0 : vector<1x16x28xf32> to vector<16x28xf32>
    %c0_2 = arith.constant 0 : index
    %c0_3 = arith.constant 0 : index
    %c0_4 = arith.constant 0 : index
    %2 = vector.load %arg2[%c0_2, %c0_3, %c0_4] : memref<1x16x16xf32, #tpu.memory_space<vmem>>, vector<1x16x16xf32>
    %3 = vector.shape_cast %2 : vector<1x16x16xf32> to vector<16x16xf32>
    %c0_5 = arith.constant 0 : index
    %c0_6 = arith.constant 0 : index
    %4 = vector.load %arg3[%c0_5, %c0_6] : memref<28x64xf32, #tpu.memory_space<vmem>>, vector<28x64xf32>
    %cst = arith.constant dense<0.000000e+00> : vector<16x64xf32>
    %5 = tpu.matmul %1, %4, %cst {dimension_numbers = #tpu.dot_dimension_numbers<[1], [0], [0], [1], [0, 0, 1, 1], [], []>} : vector<16x28xf32>, vector<28x64xf32>, vector<16x64xf32> -> vector<16x64xf32>
    %6 = math.tanh %5 : vector<16x64xf32>
    %cst_7 = arith.constant 0.000000e+00 : f32
    %7 = vector.broadcast %cst_7 : f32 to vector<16x64xf32>
    %c0_8 = arith.constant 0 : index
    %c0_9 = arith.constant 0 : index
    %c0_10 = arith.constant 0 : index
    %8 = vector.load %arg4[%c0_8, %c0_9, %c0_10] : memref<8x64x1xf32, #tpu.memory_space<vmem>>, vector<1x64x1xf32>
    %9 = vector.shape_cast %8 : vector<1x64x1xf32> to vector<64x1xf32>
    %cst_11 = arith.constant dense<0.000000e+00> : vector<16x1xf32>
    %10 = tpu.matmul %6, %9, %cst_11 {dimension_numbers = #tpu.dot_dimension_numbers<[1], [0], [0], [1], [0, 0, 1, 1], [], []>} : vector<16x64xf32>, vector<64x1xf32>, vector<16x1xf32> -> vector<16x1xf32>
    %c0_12 = arith.constant 0 : index
    %c0_13 = arith.constant 0 : index
    %c0_14 = arith.constant 0 : index
    %11 = vector.load %arg5[%c0_12, %c0_13, %c0_14] : memref<8x1x64xf32, #tpu.memory_space<vmem>>, vector<1x1x64xf32>
    %12 = vector.shape_cast %11 : vector<1x1x64xf32> to vector<1x64xf32>
    %cst_15 = arith.constant dense<0.000000e+00> : vector<1x16xf32>
    %13 = tpu.matmul %12, %6, %cst_15 {dimension_numbers = #tpu.dot_dimension_numbers<[1], [1], [0], [0], [0, 0, 1, 0], [], []>} : vector<1x64xf32>, vector<16x64xf32>, vector<1x16xf32> -> vector<1x16xf32>
    %14 = vector.broadcast %10 : vector<16x1xf32> to vector<16x16xf32>
    %15 = vector.broadcast %13 : vector<1x16xf32> to vector<16x16xf32>
    %16 = arith.addf %14, %15 : vector<16x16xf32>
    %cst_16 = arith.constant 2.000000e-01 : f32
    %17 = vector.broadcast %cst_16 : f32 to vector<16x16xf32>
    %18 = arith.mulf %17, %16 : vector<16x16xf32>
    %19 = arith.maximumf %16, %18 : vector<16x16xf32>
    %cst_17 = arith.constant 0.000000e+00 : f32
    %20 = vector.broadcast %cst_17 : f32 to vector<16x16xf32>
    %21 = arith.cmpf ogt, %3, %20 : vector<16x16xf32>
    %cst_18 = arith.constant -1.000000e+30 : f32
    %22 = vector.broadcast %cst_18 : f32 to vector<16x16xf32>
    %23 = arith.select %21, %19, %22 : vector<16x16xi1>, vector<16x16xf32>
    %cst_19 = arith.constant dense<0xFF800000> : vector<16xf32>
    %24 = vector.multi_reduction <maximumf>, %23, %cst_19 [1] : vector<16x16xf32> to vector<16xf32>
    %25 = vector.shape_cast %24 : vector<16xf32> to vector<16x1xf32>
    %26 = vector.broadcast %25 : vector<16x1xf32> to vector<16x16xf32>
    %27 = arith.subf %23, %26 : vector<16x16xf32>
    %28 = math.exp %27 : vector<16x16xf32>
    %cst_20 = arith.constant dense<0.000000e+00> : vector<16xf32>
    %29 = vector.multi_reduction <add>, %28, %cst_20 [1] : vector<16x16xf32> to vector<16xf32>
    %30 = vector.shape_cast %29 : vector<16xf32> to vector<16x1xf32>
    %31 = tpu.reciprocal %30 {approx = true} : vector<16x1xf32> -> vector<16x1xf32>
    %32 = vector.broadcast %31 : vector<16x1xf32> to vector<16x16xf32>
    %33 = arith.mulf %28, %32 : vector<16x16xf32>
    %c0_21 = arith.constant 0 : index
    %c0_22 = arith.constant 0 : index
    %c0_23 = arith.constant 0 : index
    %34 = vector.load %arg6[%c0_21, %c0_22, %c0_23] : memref<8x64x8xf32, #tpu.memory_space<vmem>>, vector<1x64x8xf32>
    %35 = vector.shape_cast %34 : vector<1x64x8xf32> to vector<64x8xf32>
    %cst_24 = arith.constant dense<0.000000e+00> : vector<16x8xf32>
    %36 = tpu.matmul %5, %35, %cst_24 {dimension_numbers = #tpu.dot_dimension_numbers<[1], [0], [0], [1], [0, 0, 1, 1], [], []>} : vector<16x64xf32>, vector<64x8xf32>, vector<16x8xf32> -> vector<16x8xf32>
    %cst_25 = arith.constant dense<0.000000e+00> : vector<16x8xf32>
    %37 = tpu.matmul %33, %36, %cst_25 {dimension_numbers = #tpu.dot_dimension_numbers<[1], [0], [0], [1], [0, 0, 1, 1], [], []>} : vector<16x16xf32>, vector<16x8xf32>, vector<16x8xf32> -> vector<16x8xf32>
    %c0_26 = arith.constant 0 : index
    %c0_27 = arith.constant 0 : index
    %c0_28 = arith.constant 0 : index
    %38 = vector.load %arg6[%c0_26, %c0_27, %c0_28] : memref<8x64x8xf32, #tpu.memory_space<vmem>>, vector<1x64x8xf32>
    %39 = vector.shape_cast %38 : vector<1x64x8xf32> to vector<64x8xf32>
    %cst_29 = arith.constant dense<0.000000e+00> : vector<16x64xf32>
    %40 = tpu.matmul %37, %39, %cst_29 {dimension_numbers = #tpu.dot_dimension_numbers<[1], [1], [0], [0], [0, 0, 1, 0], [], []>} : vector<16x8xf32>, vector<64x8xf32>, vector<16x64xf32> -> vector<16x64xf32>
    %41 = arith.addf %7, %40 : vector<16x64xf32>
    %c1 = arith.constant 1 : index
    %c0_30 = arith.constant 0 : index
    %c0_31 = arith.constant 0 : index
    %42 = vector.load %arg4[%c1, %c0_30, %c0_31] : memref<8x64x1xf32, #tpu.memory_space<vmem>>, vector<1x64x1xf32>
    %43 = vector.shape_cast %42 : vector<1x64x1xf32> to vector<64x1xf32>
    %cst_32 = arith.constant dense<0.000000e+00> : vector<16x1xf32>
    %44 = tpu.matmul %6, %43, %cst_32 {dimension_numbers = #tpu.dot_dimension_numbers<[1], [0], [0], [1], [0, 0, 1, 1], [], []>} : vector<16x64xf32>, vector<64x1xf32>, vector<16x1xf32> -> vector<16x1xf32>
    %c1_33 = arith.constant 1 : index
    %c0_34 = arith.constant 0 : index
    %c0_35 = arith.constant 0 : index
    %45 = vector.load %arg5[%c1_33, %c0_34, %c0_35] : memref<8x1x64xf32, #tpu.memory_space<vmem>>, vector<1x1x64xf32>
    %46 = vector.shape_cast %45 : vector<1x1x64xf32> to vector<1x64xf32>
    %cst_36 = arith.constant dense<0.000000e+00> : vector<1x16xf32>
    %47 = tpu.matmul %46, %6, %cst_36 {dimension_numbers = #tpu.dot_dimension_numbers<[1], [1], [0], [0], [0, 0, 1, 0], [], []>} : vector<1x64xf32>, vector<16x64xf32>, vector<1x16xf32> -> vector<1x16xf32>
    %48 = vector.broadcast %44 : vector<16x1xf32> to vector<16x16xf32>
    %49 = vector.broadcast %47 : vector<1x16xf32> to vector<16x16xf32>
    %50 = arith.addf %48, %49 : vector<16x16xf32>
    %cst_37 = arith.constant 2.000000e-01 : f32
    %51 = vector.broadcast %cst_37 : f32 to vector<16x16xf32>
    %52 = arith.mulf %51, %50 : vector<16x16xf32>
    %53 = arith.maximumf %50, %52 : vector<16x16xf32>
    %cst_38 = arith.constant 0.000000e+00 : f32
    %54 = vector.broadcast %cst_38 : f32 to vector<16x16xf32>
    %55 = arith.cmpf ogt, %3, %54 : vector<16x16xf32>
    %cst_39 = arith.constant -1.000000e+30 : f32
    %56 = vector.broadcast %cst_39 : f32 to vector<16x16xf32>
    %57 = arith.select %55, %53, %56 : vector<16x16xi1>, vector<16x16xf32>
    %cst_40 = arith.constant dense<0xFF800000> : vector<16xf32>
    %58 = vector.multi_reduction <maximumf>, %57, %cst_40 [1] : vector<16x16xf32> to vector<16xf32>
    %59 = vector.shape_cast %58 : vector<16xf32> to vector<16x1xf32>
    %60 = vector.broadcast %59 : vector<16x1xf32> to vector<16x16xf32>
    %61 = arith.subf %57, %60 : vector<16x16xf32>
    %62 = math.exp %61 : vector<16x16xf32>
    %cst_41 = arith.constant dense<0.000000e+00> : vector<16xf32>
    %63 = vector.multi_reduction <add>, %62, %cst_41 [1] : vector<16x16xf32> to vector<16xf32>
    %64 = vector.shape_cast %63 : vector<16xf32> to vector<16x1xf32>
    %65 = tpu.reciprocal %64 {approx = true} : vector<16x1xf32> -> vector<16x1xf32>
    %66 = vector.broadcast %65 : vector<16x1xf32> to vector<16x16xf32>
    %67 = arith.mulf %62, %66 : vector<16x16xf32>
    %c1_42 = arith.constant 1 : index
    %c0_43 = arith.constant 0 : index
    %c0_44 = arith.constant 0 : index
    %68 = vector.load %arg6[%c1_42, %c0_43, %c0_44] : memref<8x64x8xf32, #tpu.memory_space<vmem>>, vector<1x64x8xf32>
    %69 = vector.shape_cast %68 : vector<1x64x8xf32> to vector<64x8xf32>
    %cst_45 = arith.constant dense<0.000000e+00> : vector<16x8xf32>
    %70 = tpu.matmul %5, %69, %cst_45 {dimension_numbers = #tpu.dot_dimension_numbers<[1], [0], [0], [1], [0, 0, 1, 1], [], []>} : vector<16x64xf32>, vector<64x8xf32>, vector<16x8xf32> -> vector<16x8xf32>
    %cst_46 = arith.constant dense<0.000000e+00> : vector<16x8xf32>
    %71 = tpu.matmul %67, %70, %cst_46 {dimension_numbers = #tpu.dot_dimension_numbers<[1], [0], [0], [1], [0, 0, 1, 1], [], []>} : vector<16x16xf32>, vector<16x8xf32>, vector<16x8xf32> -> vector<16x8xf32>
    %c1_47 = arith.constant 1 : index
    %c0_48 = arith.constant 0 : index
    %c0_49 = arith.constant 0 : index
    %72 = vector.load %arg6[%c1_47, %c0_48, %c0_49] : memref<8x64x8xf32, #tpu.memory_space<vmem>>, vector<1x64x8xf32>
    %73 = vector.shape_cast %72 : vector<1x64x8xf32> to vector<64x8xf32>
    %cst_50 = arith.constant dense<0.000000e+00> : vector<16x64xf32>
    %74 = tpu.matmul %71, %73, %cst_50 {dimension_numbers = #tpu.dot_dimension_numbers<[1], [1], [0], [0], [0, 0, 1, 0], [], []>} : vector<16x8xf32>, vector<64x8xf32>, vector<16x64xf32> -> vector<16x64xf32>
    %75 = arith.addf %41, %74 : vector<16x64xf32>
    %c2 = arith.constant 2 : index
    %c0_51 = arith.constant 0 : index
    %c0_52 = arith.constant 0 : index
    %76 = vector.load %arg4[%c2, %c0_51, %c0_52] : memref<8x64x1xf32, #tpu.memory_space<vmem>>, vector<1x64x1xf32>
    %77 = vector.shape_cast %76 : vector<1x64x1xf32> to vector<64x1xf32>
    %cst_53 = arith.constant dense<0.000000e+00> : vector<16x1xf32>
    %78 = tpu.matmul %6, %77, %cst_53 {dimension_numbers = #tpu.dot_dimension_numbers<[1], [0], [0], [1], [0, 0, 1, 1], [], []>} : vector<16x64xf32>, vector<64x1xf32>, vector<16x1xf32> -> vector<16x1xf32>
    %c2_54 = arith.constant 2 : index
    %c0_55 = arith.constant 0 : index
    %c0_56 = arith.constant 0 : index
    %79 = vector.load %arg5[%c2_54, %c0_55, %c0_56] : memref<8x1x64xf32, #tpu.memory_space<vmem>>, vector<1x1x64xf32>
    %80 = vector.shape_cast %79 : vector<1x1x64xf32> to vector<1x64xf32>
    %cst_57 = arith.constant dense<0.000000e+00> : vector<1x16xf32>
    %81 = tpu.matmul %80, %6, %cst_57 {dimension_numbers = #tpu.dot_dimension_numbers<[1], [1], [0], [0], [0, 0, 1, 0], [], []>} : vector<1x64xf32>, vector<16x64xf32>, vector<1x16xf32> -> vector<1x16xf32>
    %82 = vector.broadcast %78 : vector<16x1xf32> to vector<16x16xf32>
    %83 = vector.broadcast %81 : vector<1x16xf32> to vector<16x16xf32>
    %84 = arith.addf %82, %83 : vector<16x16xf32>
    %cst_58 = arith.constant 2.000000e-01 : f32
    %85 = vector.broadcast %cst_58 : f32 to vector<16x16xf32>
    %86 = arith.mulf %85, %84 : vector<16x16xf32>
    %87 = arith.maximumf %84, %86 : vector<16x16xf32>
    %cst_59 = arith.constant 0.000000e+00 : f32
    %88 = vector.broadcast %cst_59 : f32 to vector<16x16xf32>
    %89 = arith.cmpf ogt, %3, %88 : vector<16x16xf32>
    %cst_60 = arith.constant -1.000000e+30 : f32
    %90 = vector.broadcast %cst_60 : f32 to vector<16x16xf32>
    %91 = arith.select %89, %87, %90 : vector<16x16xi1>, vector<16x16xf32>
    %cst_61 = arith.constant dense<0xFF800000> : vector<16xf32>
    %92 = vector.multi_reduction <maximumf>, %91, %cst_61 [1] : vector<16x16xf32> to vector<16xf32>
    %93 = vector.shape_cast %92 : vector<16xf32> to vector<16x1xf32>
    %94 = vector.broadcast %93 : vector<16x1xf32> to vector<16x16xf32>
    %95 = arith.subf %91, %94 : vector<16x16xf32>
    %96 = math.exp %95 : vector<16x16xf32>
    %cst_62 = arith.constant dense<0.000000e+00> : vector<16xf32>
    %97 = vector.multi_reduction <add>, %96, %cst_62 [1] : vector<16x16xf32> to vector<16xf32>
    %98 = vector.shape_cast %97 : vector<16xf32> to vector<16x1xf32>
    %99 = tpu.reciprocal %98 {approx = true} : vector<16x1xf32> -> vector<16x1xf32>
    %100 = vector.broadcast %99 : vector<16x1xf32> to vector<16x16xf32>
    %101 = arith.mulf %96, %100 : vector<16x16xf32>
    %c2_63 = arith.constant 2 : index
    %c0_64 = arith.constant 0 : index
    %c0_65 = arith.constant 0 : index
    %102 = vector.load %arg6[%c2_63, %c0_64, %c0_65] : memref<8x64x8xf32, #tpu.memory_space<vmem>>, vector<1x64x8xf32>
    %103 = vector.shape_cast %102 : vector<1x64x8xf32> to vector<64x8xf32>
    %cst_66 = arith.constant dense<0.000000e+00> : vector<16x8xf32>
    %104 = tpu.matmul %5, %103, %cst_66 {dimension_numbers = #tpu.dot_dimension_numbers<[1], [0], [0], [1], [0, 0, 1, 1], [], []>} : vector<16x64xf32>, vector<64x8xf32>, vector<16x8xf32> -> vector<16x8xf32>
    %cst_67 = arith.constant dense<0.000000e+00> : vector<16x8xf32>
    %105 = tpu.matmul %101, %104, %cst_67 {dimension_numbers = #tpu.dot_dimension_numbers<[1], [0], [0], [1], [0, 0, 1, 1], [], []>} : vector<16x16xf32>, vector<16x8xf32>, vector<16x8xf32> -> vector<16x8xf32>
    %c2_68 = arith.constant 2 : index
    %c0_69 = arith.constant 0 : index
    %c0_70 = arith.constant 0 : index
    %106 = vector.load %arg6[%c2_68, %c0_69, %c0_70] : memref<8x64x8xf32, #tpu.memory_space<vmem>>, vector<1x64x8xf32>
    %107 = vector.shape_cast %106 : vector<1x64x8xf32> to vector<64x8xf32>
    %cst_71 = arith.constant dense<0.000000e+00> : vector<16x64xf32>
    %108 = tpu.matmul %105, %107, %cst_71 {dimension_numbers = #tpu.dot_dimension_numbers<[1], [1], [0], [0], [0, 0, 1, 0], [], []>} : vector<16x8xf32>, vector<64x8xf32>, vector<16x64xf32> -> vector<16x64xf32>
    %109 = arith.addf %75, %108 : vector<16x64xf32>
    %c3 = arith.constant 3 : index
    %c0_72 = arith.constant 0 : index
    %c0_73 = arith.constant 0 : index
    %110 = vector.load %arg4[%c3, %c0_72, %c0_73] : memref<8x64x1xf32, #tpu.memory_space<vmem>>, vector<1x64x1xf32>
    %111 = vector.shape_cast %110 : vector<1x64x1xf32> to vector<64x1xf32>
    %cst_74 = arith.constant dense<0.000000e+00> : vector<16x1xf32>
    %112 = tpu.matmul %6, %111, %cst_74 {dimension_numbers = #tpu.dot_dimension_numbers<[1], [0], [0], [1], [0, 0, 1, 1], [], []>} : vector<16x64xf32>, vector<64x1xf32>, vector<16x1xf32> -> vector<16x1xf32>
    %c3_75 = arith.constant 3 : index
    %c0_76 = arith.constant 0 : index
    %c0_77 = arith.constant 0 : index
    %113 = vector.load %arg5[%c3_75, %c0_76, %c0_77] : memref<8x1x64xf32, #tpu.memory_space<vmem>>, vector<1x1x64xf32>
    %114 = vector.shape_cast %113 : vector<1x1x64xf32> to vector<1x64xf32>
    %cst_78 = arith.constant dense<0.000000e+00> : vector<1x16xf32>
    %115 = tpu.matmul %114, %6, %cst_78 {dimension_numbers = #tpu.dot_dimension_numbers<[1], [1], [0], [0], [0, 0, 1, 0], [], []>} : vector<1x64xf32>, vector<16x64xf32>, vector<1x16xf32> -> vector<1x16xf32>
    %116 = vector.broadcast %112 : vector<16x1xf32> to vector<16x16xf32>
    %117 = vector.broadcast %115 : vector<1x16xf32> to vector<16x16xf32>
    %118 = arith.addf %116, %117 : vector<16x16xf32>
    %cst_79 = arith.constant 2.000000e-01 : f32
    %119 = vector.broadcast %cst_79 : f32 to vector<16x16xf32>
    %120 = arith.mulf %119, %118 : vector<16x16xf32>
    %121 = arith.maximumf %118, %120 : vector<16x16xf32>
    %cst_80 = arith.constant 0.000000e+00 : f32
    %122 = vector.broadcast %cst_80 : f32 to vector<16x16xf32>
    %123 = arith.cmpf ogt, %3, %122 : vector<16x16xf32>
    %cst_81 = arith.constant -1.000000e+30 : f32
    %124 = vector.broadcast %cst_81 : f32 to vector<16x16xf32>
    %125 = arith.select %123, %121, %124 : vector<16x16xi1>, vector<16x16xf32>
    %cst_82 = arith.constant dense<0xFF800000> : vector<16xf32>
    %126 = vector.multi_reduction <maximumf>, %125, %cst_82 [1] : vector<16x16xf32> to vector<16xf32>
    %127 = vector.shape_cast %126 : vector<16xf32> to vector<16x1xf32>
    %128 = vector.broadcast %127 : vector<16x1xf32> to vector<16x16xf32>
    %129 = arith.subf %125, %128 : vector<16x16xf32>
    %130 = math.exp %129 : vector<16x16xf32>
    %cst_83 = arith.constant dense<0.000000e+00> : vector<16xf32>
    %131 = vector.multi_reduction <add>, %130, %cst_83 [1] : vector<16x16xf32> to vector<16xf32>
    %132 = vector.shape_cast %131 : vector<16xf32> to vector<16x1xf32>
    %133 = tpu.reciprocal %132 {approx = true} : vector<16x1xf32> -> vector<16x1xf32>
    %134 = vector.broadcast %133 : vector<16x1xf32> to vector<16x16xf32>
    %135 = arith.mulf %130, %134 : vector<16x16xf32>
    %c3_84 = arith.constant 3 : index
    %c0_85 = arith.constant 0 : index
    %c0_86 = arith.constant 0 : index
    %136 = vector.load %arg6[%c3_84, %c0_85, %c0_86] : memref<8x64x8xf32, #tpu.memory_space<vmem>>, vector<1x64x8xf32>
    %137 = vector.shape_cast %136 : vector<1x64x8xf32> to vector<64x8xf32>
    %cst_87 = arith.constant dense<0.000000e+00> : vector<16x8xf32>
    %138 = tpu.matmul %5, %137, %cst_87 {dimension_numbers = #tpu.dot_dimension_numbers<[1], [0], [0], [1], [0, 0, 1, 1], [], []>} : vector<16x64xf32>, vector<64x8xf32>, vector<16x8xf32> -> vector<16x8xf32>
    %cst_88 = arith.constant dense<0.000000e+00> : vector<16x8xf32>
    %139 = tpu.matmul %135, %138, %cst_88 {dimension_numbers = #tpu.dot_dimension_numbers<[1], [0], [0], [1], [0, 0, 1, 1], [], []>} : vector<16x16xf32>, vector<16x8xf32>, vector<16x8xf32> -> vector<16x8xf32>
    %c3_89 = arith.constant 3 : index
    %c0_90 = arith.constant 0 : index
    %c0_91 = arith.constant 0 : index
    %140 = vector.load %arg6[%c3_89, %c0_90, %c0_91] : memref<8x64x8xf32, #tpu.memory_space<vmem>>, vector<1x64x8xf32>
    %141 = vector.shape_cast %140 : vector<1x64x8xf32> to vector<64x8xf32>
    %cst_92 = arith.constant dense<0.000000e+00> : vector<16x64xf32>
    %142 = tpu.matmul %139, %141, %cst_92 {dimension_numbers = #tpu.dot_dimension_numbers<[1], [1], [0], [0], [0, 0, 1, 0], [], []>} : vector<16x8xf32>, vector<64x8xf32>, vector<16x64xf32> -> vector<16x64xf32>
    %143 = arith.addf %109, %142 : vector<16x64xf32>
    %c4 = arith.constant 4 : index
    %c0_93 = arith.constant 0 : index
    %c0_94 = arith.constant 0 : index
    %144 = vector.load %arg4[%c4, %c0_93, %c0_94] : memref<8x64x1xf32, #tpu.memory_space<vmem>>, vector<1x64x1xf32>
    %145 = vector.shape_cast %144 : vector<1x64x1xf32> to vector<64x1xf32>
    %cst_95 = arith.constant dense<0.000000e+00> : vector<16x1xf32>
    %146 = tpu.matmul %6, %145, %cst_95 {dimension_numbers = #tpu.dot_dimension_numbers<[1], [0], [0], [1], [0, 0, 1, 1], [], []>} : vector<16x64xf32>, vector<64x1xf32>, vector<16x1xf32> -> vector<16x1xf32>
    %c4_96 = arith.constant 4 : index
    %c0_97 = arith.constant 0 : index
    %c0_98 = arith.constant 0 : index
    %147 = vector.load %arg5[%c4_96, %c0_97, %c0_98] : memref<8x1x64xf32, #tpu.memory_space<vmem>>, vector<1x1x64xf32>
    %148 = vector.shape_cast %147 : vector<1x1x64xf32> to vector<1x64xf32>
    %cst_99 = arith.constant dense<0.000000e+00> : vector<1x16xf32>
    %149 = tpu.matmul %148, %6, %cst_99 {dimension_numbers = #tpu.dot_dimension_numbers<[1], [1], [0], [0], [0, 0, 1, 0], [], []>} : vector<1x64xf32>, vector<16x64xf32>, vector<1x16xf32> -> vector<1x16xf32>
    %150 = vector.broadcast %146 : vector<16x1xf32> to vector<16x16xf32>
    %151 = vector.broadcast %149 : vector<1x16xf32> to vector<16x16xf32>
    %152 = arith.addf %150, %151 : vector<16x16xf32>
    %cst_100 = arith.constant 2.000000e-01 : f32
    %153 = vector.broadcast %cst_100 : f32 to vector<16x16xf32>
    %154 = arith.mulf %153, %152 : vector<16x16xf32>
    %155 = arith.maximumf %152, %154 : vector<16x16xf32>
    %cst_101 = arith.constant 0.000000e+00 : f32
    %156 = vector.broadcast %cst_101 : f32 to vector<16x16xf32>
    %157 = arith.cmpf ogt, %3, %156 : vector<16x16xf32>
    %cst_102 = arith.constant -1.000000e+30 : f32
    %158 = vector.broadcast %cst_102 : f32 to vector<16x16xf32>
    %159 = arith.select %157, %155, %158 : vector<16x16xi1>, vector<16x16xf32>
    %cst_103 = arith.constant dense<0xFF800000> : vector<16xf32>
    %160 = vector.multi_reduction <maximumf>, %159, %cst_103 [1] : vector<16x16xf32> to vector<16xf32>
    %161 = vector.shape_cast %160 : vector<16xf32> to vector<16x1xf32>
    %162 = vector.broadcast %161 : vector<16x1xf32> to vector<16x16xf32>
    %163 = arith.subf %159, %162 : vector<16x16xf32>
    %164 = math.exp %163 : vector<16x16xf32>
    %cst_104 = arith.constant dense<0.000000e+00> : vector<16xf32>
    %165 = vector.multi_reduction <add>, %164, %cst_104 [1] : vector<16x16xf32> to vector<16xf32>
    %166 = vector.shape_cast %165 : vector<16xf32> to vector<16x1xf32>
    %167 = tpu.reciprocal %166 {approx = true} : vector<16x1xf32> -> vector<16x1xf32>
    %168 = vector.broadcast %167 : vector<16x1xf32> to vector<16x16xf32>
    %169 = arith.mulf %164, %168 : vector<16x16xf32>
    %c4_105 = arith.constant 4 : index
    %c0_106 = arith.constant 0 : index
    %c0_107 = arith.constant 0 : index
    %170 = vector.load %arg6[%c4_105, %c0_106, %c0_107] : memref<8x64x8xf32, #tpu.memory_space<vmem>>, vector<1x64x8xf32>
    %171 = vector.shape_cast %170 : vector<1x64x8xf32> to vector<64x8xf32>
    %cst_108 = arith.constant dense<0.000000e+00> : vector<16x8xf32>
    %172 = tpu.matmul %5, %171, %cst_108 {dimension_numbers = #tpu.dot_dimension_numbers<[1], [0], [0], [1], [0, 0, 1, 1], [], []>} : vector<16x64xf32>, vector<64x8xf32>, vector<16x8xf32> -> vector<16x8xf32>
    %cst_109 = arith.constant dense<0.000000e+00> : vector<16x8xf32>
    %173 = tpu.matmul %169, %172, %cst_109 {dimension_numbers = #tpu.dot_dimension_numbers<[1], [0], [0], [1], [0, 0, 1, 1], [], []>} : vector<16x16xf32>, vector<16x8xf32>, vector<16x8xf32> -> vector<16x8xf32>
    %c4_110 = arith.constant 4 : index
    %c0_111 = arith.constant 0 : index
    %c0_112 = arith.constant 0 : index
    %174 = vector.load %arg6[%c4_110, %c0_111, %c0_112] : memref<8x64x8xf32, #tpu.memory_space<vmem>>, vector<1x64x8xf32>
    %175 = vector.shape_cast %174 : vector<1x64x8xf32> to vector<64x8xf32>
    %cst_113 = arith.constant dense<0.000000e+00> : vector<16x64xf32>
    %176 = tpu.matmul %173, %175, %cst_113 {dimension_numbers = #tpu.dot_dimension_numbers<[1], [1], [0], [0], [0, 0, 1, 0], [], []>} : vector<16x8xf32>, vector<64x8xf32>, vector<16x64xf32> -> vector<16x64xf32>
    %177 = arith.addf %143, %176 : vector<16x64xf32>
    %c5 = arith.constant 5 : index
    %c0_114 = arith.constant 0 : index
    %c0_115 = arith.constant 0 : index
    %178 = vector.load %arg4[%c5, %c0_114, %c0_115] : memref<8x64x1xf32, #tpu.memory_space<vmem>>, vector<1x64x1xf32>
    %179 = vector.shape_cast %178 : vector<1x64x1xf32> to vector<64x1xf32>
    %cst_116 = arith.constant dense<0.000000e+00> : vector<16x1xf32>
    %180 = tpu.matmul %6, %179, %cst_116 {dimension_numbers = #tpu.dot_dimension_numbers<[1], [0], [0], [1], [0, 0, 1, 1], [], []>} : vector<16x64xf32>, vector<64x1xf32>, vector<16x1xf32> -> vector<16x1xf32>
    %c5_117 = arith.constant 5 : index
    %c0_118 = arith.constant 0 : index
    %c0_119 = arith.constant 0 : index
    %181 = vector.load %arg5[%c5_117, %c0_118, %c0_119] : memref<8x1x64xf32, #tpu.memory_space<vmem>>, vector<1x1x64xf32>
    %182 = vector.shape_cast %181 : vector<1x1x64xf32> to vector<1x64xf32>
    %cst_120 = arith.constant dense<0.000000e+00> : vector<1x16xf32>
    %183 = tpu.matmul %182, %6, %cst_120 {dimension_numbers = #tpu.dot_dimension_numbers<[1], [1], [0], [0], [0, 0, 1, 0], [], []>} : vector<1x64xf32>, vector<16x64xf32>, vector<1x16xf32> -> vector<1x16xf32>
    %184 = vector.broadcast %180 : vector<16x1xf32> to vector<16x16xf32>
    %185 = vector.broadcast %183 : vector<1x16xf32> to vector<16x16xf32>
    %186 = arith.addf %184, %185 : vector<16x16xf32>
    %cst_121 = arith.constant 2.000000e-01 : f32
    %187 = vector.broadcast %cst_121 : f32 to vector<16x16xf32>
    %188 = arith.mulf %187, %186 : vector<16x16xf32>
    %189 = arith.maximumf %186, %188 : vector<16x16xf32>
    %cst_122 = arith.constant 0.000000e+00 : f32
    %190 = vector.broadcast %cst_122 : f32 to vector<16x16xf32>
    %191 = arith.cmpf ogt, %3, %190 : vector<16x16xf32>
    %cst_123 = arith.constant -1.000000e+30 : f32
    %192 = vector.broadcast %cst_123 : f32 to vector<16x16xf32>
    %193 = arith.select %191, %189, %192 : vector<16x16xi1>, vector<16x16xf32>
    %cst_124 = arith.constant dense<0xFF800000> : vector<16xf32>
    %194 = vector.multi_reduction <maximumf>, %193, %cst_124 [1] : vector<16x16xf32> to vector<16xf32>
    %195 = vector.shape_cast %194 : vector<16xf32> to vector<16x1xf32>
    %196 = vector.broadcast %195 : vector<16x1xf32> to vector<16x16xf32>
    %197 = arith.subf %193, %196 : vector<16x16xf32>
    %198 = math.exp %197 : vector<16x16xf32>
    %cst_125 = arith.constant dense<0.000000e+00> : vector<16xf32>
    %199 = vector.multi_reduction <add>, %198, %cst_125 [1] : vector<16x16xf32> to vector<16xf32>
    %200 = vector.shape_cast %199 : vector<16xf32> to vector<16x1xf32>
    %201 = tpu.reciprocal %200 {approx = true} : vector<16x1xf32> -> vector<16x1xf32>
    %202 = vector.broadcast %201 : vector<16x1xf32> to vector<16x16xf32>
    %203 = arith.mulf %198, %202 : vector<16x16xf32>
    %c5_126 = arith.constant 5 : index
    %c0_127 = arith.constant 0 : index
    %c0_128 = arith.constant 0 : index
    %204 = vector.load %arg6[%c5_126, %c0_127, %c0_128] : memref<8x64x8xf32, #tpu.memory_space<vmem>>, vector<1x64x8xf32>
    %205 = vector.shape_cast %204 : vector<1x64x8xf32> to vector<64x8xf32>
    %cst_129 = arith.constant dense<0.000000e+00> : vector<16x8xf32>
    %206 = tpu.matmul %5, %205, %cst_129 {dimension_numbers = #tpu.dot_dimension_numbers<[1], [0], [0], [1], [0, 0, 1, 1], [], []>} : vector<16x64xf32>, vector<64x8xf32>, vector<16x8xf32> -> vector<16x8xf32>
    %cst_130 = arith.constant dense<0.000000e+00> : vector<16x8xf32>
    %207 = tpu.matmul %203, %206, %cst_130 {dimension_numbers = #tpu.dot_dimension_numbers<[1], [0], [0], [1], [0, 0, 1, 1], [], []>} : vector<16x16xf32>, vector<16x8xf32>, vector<16x8xf32> -> vector<16x8xf32>
    %c5_131 = arith.constant 5 : index
    %c0_132 = arith.constant 0 : index
    %c0_133 = arith.constant 0 : index
    %208 = vector.load %arg6[%c5_131, %c0_132, %c0_133] : memref<8x64x8xf32, #tpu.memory_space<vmem>>, vector<1x64x8xf32>
    %209 = vector.shape_cast %208 : vector<1x64x8xf32> to vector<64x8xf32>
    %cst_134 = arith.constant dense<0.000000e+00> : vector<16x64xf32>
    %210 = tpu.matmul %207, %209, %cst_134 {dimension_numbers = #tpu.dot_dimension_numbers<[1], [1], [0], [0], [0, 0, 1, 0], [], []>} : vector<16x8xf32>, vector<64x8xf32>, vector<16x64xf32> -> vector<16x64xf32>
    %211 = arith.addf %177, %210 : vector<16x64xf32>
    %c6 = arith.constant 6 : index
    %c0_135 = arith.constant 0 : index
    %c0_136 = arith.constant 0 : index
    %212 = vector.load %arg4[%c6, %c0_135, %c0_136] : memref<8x64x1xf32, #tpu.memory_space<vmem>>, vector<1x64x1xf32>
    %213 = vector.shape_cast %212 : vector<1x64x1xf32> to vector<64x1xf32>
    %cst_137 = arith.constant dense<0.000000e+00> : vector<16x1xf32>
    %214 = tpu.matmul %6, %213, %cst_137 {dimension_numbers = #tpu.dot_dimension_numbers<[1], [0], [0], [1], [0, 0, 1, 1], [], []>} : vector<16x64xf32>, vector<64x1xf32>, vector<16x1xf32> -> vector<16x1xf32>
    %c6_138 = arith.constant 6 : index
    %c0_139 = arith.constant 0 : index
    %c0_140 = arith.constant 0 : index
    %215 = vector.load %arg5[%c6_138, %c0_139, %c0_140] : memref<8x1x64xf32, #tpu.memory_space<vmem>>, vector<1x1x64xf32>
    %216 = vector.shape_cast %215 : vector<1x1x64xf32> to vector<1x64xf32>
    %cst_141 = arith.constant dense<0.000000e+00> : vector<1x16xf32>
    %217 = tpu.matmul %216, %6, %cst_141 {dimension_numbers = #tpu.dot_dimension_numbers<[1], [1], [0], [0], [0, 0, 1, 0], [], []>} : vector<1x64xf32>, vector<16x64xf32>, vector<1x16xf32> -> vector<1x16xf32>
    %218 = vector.broadcast %214 : vector<16x1xf32> to vector<16x16xf32>
    %219 = vector.broadcast %217 : vector<1x16xf32> to vector<16x16xf32>
    %220 = arith.addf %218, %219 : vector<16x16xf32>
    %cst_142 = arith.constant 2.000000e-01 : f32
    %221 = vector.broadcast %cst_142 : f32 to vector<16x16xf32>
    %222 = arith.mulf %221, %220 : vector<16x16xf32>
    %223 = arith.maximumf %220, %222 : vector<16x16xf32>
    %cst_143 = arith.constant 0.000000e+00 : f32
    %224 = vector.broadcast %cst_143 : f32 to vector<16x16xf32>
    %225 = arith.cmpf ogt, %3, %224 : vector<16x16xf32>
    %cst_144 = arith.constant -1.000000e+30 : f32
    %226 = vector.broadcast %cst_144 : f32 to vector<16x16xf32>
    %227 = arith.select %225, %223, %226 : vector<16x16xi1>, vector<16x16xf32>
    %cst_145 = arith.constant dense<0xFF800000> : vector<16xf32>
    %228 = vector.multi_reduction <maximumf>, %227, %cst_145 [1] : vector<16x16xf32> to vector<16xf32>
    %229 = vector.shape_cast %228 : vector<16xf32> to vector<16x1xf32>
    %230 = vector.broadcast %229 : vector<16x1xf32> to vector<16x16xf32>
    %231 = arith.subf %227, %230 : vector<16x16xf32>
    %232 = math.exp %231 : vector<16x16xf32>
    %cst_146 = arith.constant dense<0.000000e+00> : vector<16xf32>
    %233 = vector.multi_reduction <add>, %232, %cst_146 [1] : vector<16x16xf32> to vector<16xf32>
    %234 = vector.shape_cast %233 : vector<16xf32> to vector<16x1xf32>
    %235 = tpu.reciprocal %234 {approx = true} : vector<16x1xf32> -> vector<16x1xf32>
    %236 = vector.broadcast %235 : vector<16x1xf32> to vector<16x16xf32>
    %237 = arith.mulf %232, %236 : vector<16x16xf32>
    %c6_147 = arith.constant 6 : index
    %c0_148 = arith.constant 0 : index
    %c0_149 = arith.constant 0 : index
    %238 = vector.load %arg6[%c6_147, %c0_148, %c0_149] : memref<8x64x8xf32, #tpu.memory_space<vmem>>, vector<1x64x8xf32>
    %239 = vector.shape_cast %238 : vector<1x64x8xf32> to vector<64x8xf32>
    %cst_150 = arith.constant dense<0.000000e+00> : vector<16x8xf32>
    %240 = tpu.matmul %5, %239, %cst_150 {dimension_numbers = #tpu.dot_dimension_numbers<[1], [0], [0], [1], [0, 0, 1, 1], [], []>} : vector<16x64xf32>, vector<64x8xf32>, vector<16x8xf32> -> vector<16x8xf32>
    %cst_151 = arith.constant dense<0.000000e+00> : vector<16x8xf32>
    %241 = tpu.matmul %237, %240, %cst_151 {dimension_numbers = #tpu.dot_dimension_numbers<[1], [0], [0], [1], [0, 0, 1, 1], [], []>} : vector<16x16xf32>, vector<16x8xf32>, vector<16x8xf32> -> vector<16x8xf32>
    %c6_152 = arith.constant 6 : index
    %c0_153 = arith.constant 0 : index
    %c0_154 = arith.constant 0 : index
    %242 = vector.load %arg6[%c6_152, %c0_153, %c0_154] : memref<8x64x8xf32, #tpu.memory_space<vmem>>, vector<1x64x8xf32>
    %243 = vector.shape_cast %242 : vector<1x64x8xf32> to vector<64x8xf32>
    %cst_155 = arith.constant dense<0.000000e+00> : vector<16x64xf32>
    %244 = tpu.matmul %241, %243, %cst_155 {dimension_numbers = #tpu.dot_dimension_numbers<[1], [1], [0], [0], [0, 0, 1, 0], [], []>} : vector<16x8xf32>, vector<64x8xf32>, vector<16x64xf32> -> vector<16x64xf32>
    %245 = arith.addf %211, %244 : vector<16x64xf32>
    %c7 = arith.constant 7 : index
    %c0_156 = arith.constant 0 : index
    %c0_157 = arith.constant 0 : index
    %246 = vector.load %arg4[%c7, %c0_156, %c0_157] : memref<8x64x1xf32, #tpu.memory_space<vmem>>, vector<1x64x1xf32>
    %247 = vector.shape_cast %246 : vector<1x64x1xf32> to vector<64x1xf32>
    %cst_158 = arith.constant dense<0.000000e+00> : vector<16x1xf32>
    %248 = tpu.matmul %6, %247, %cst_158 {dimension_numbers = #tpu.dot_dimension_numbers<[1], [0], [0], [1], [0, 0, 1, 1], [], []>} : vector<16x64xf32>, vector<64x1xf32>, vector<16x1xf32> -> vector<16x1xf32>
    %c7_159 = arith.constant 7 : index
    %c0_160 = arith.constant 0 : index
    %c0_161 = arith.constant 0 : index
    %249 = vector.load %arg5[%c7_159, %c0_160, %c0_161] : memref<8x1x64xf32, #tpu.memory_space<vmem>>, vector<1x1x64xf32>
    %250 = vector.shape_cast %249 : vector<1x1x64xf32> to vector<1x64xf32>
    %cst_162 = arith.constant dense<0.000000e+00> : vector<1x16xf32>
    %251 = tpu.matmul %250, %6, %cst_162 {dimension_numbers = #tpu.dot_dimension_numbers<[1], [1], [0], [0], [0, 0, 1, 0], [], []>} : vector<1x64xf32>, vector<16x64xf32>, vector<1x16xf32> -> vector<1x16xf32>
    %252 = vector.broadcast %248 : vector<16x1xf32> to vector<16x16xf32>
    %253 = vector.broadcast %251 : vector<1x16xf32> to vector<16x16xf32>
    %254 = arith.addf %252, %253 : vector<16x16xf32>
    %cst_163 = arith.constant 2.000000e-01 : f32
    %255 = vector.broadcast %cst_163 : f32 to vector<16x16xf32>
    %256 = arith.mulf %255, %254 : vector<16x16xf32>
    %257 = arith.maximumf %254, %256 : vector<16x16xf32>
    %cst_164 = arith.constant 0.000000e+00 : f32
    %258 = vector.broadcast %cst_164 : f32 to vector<16x16xf32>
    %259 = arith.cmpf ogt, %3, %258 : vector<16x16xf32>
    %cst_165 = arith.constant -1.000000e+30 : f32
    %260 = vector.broadcast %cst_165 : f32 to vector<16x16xf32>
    %261 = arith.select %259, %257, %260 : vector<16x16xi1>, vector<16x16xf32>
    %cst_166 = arith.constant dense<0xFF800000> : vector<16xf32>
    %262 = vector.multi_reduction <maximumf>, %261, %cst_166 [1] : vector<16x16xf32> to vector<16xf32>
    %263 = vector.shape_cast %262 : vector<16xf32> to vector<16x1xf32>
    %264 = vector.broadcast %263 : vector<16x1xf32> to vector<16x16xf32>
    %265 = arith.subf %261, %264 : vector<16x16xf32>
    %266 = math.exp %265 : vector<16x16xf32>
    %cst_167 = arith.constant dense<0.000000e+00> : vector<16xf32>
    %267 = vector.multi_reduction <add>, %266, %cst_167 [1] : vector<16x16xf32> to vector<16xf32>
    %268 = vector.shape_cast %267 : vector<16xf32> to vector<16x1xf32>
    %269 = tpu.reciprocal %268 {approx = true} : vector<16x1xf32> -> vector<16x1xf32>
    %270 = vector.broadcast %269 : vector<16x1xf32> to vector<16x16xf32>
    %271 = arith.mulf %266, %270 : vector<16x16xf32>
    %c7_168 = arith.constant 7 : index
    %c0_169 = arith.constant 0 : index
    %c0_170 = arith.constant 0 : index
    %272 = vector.load %arg6[%c7_168, %c0_169, %c0_170] : memref<8x64x8xf32, #tpu.memory_space<vmem>>, vector<1x64x8xf32>
    %273 = vector.shape_cast %272 : vector<1x64x8xf32> to vector<64x8xf32>
    %cst_171 = arith.constant dense<0.000000e+00> : vector<16x8xf32>
    %274 = tpu.matmul %5, %273, %cst_171 {dimension_numbers = #tpu.dot_dimension_numbers<[1], [0], [0], [1], [0, 0, 1, 1], [], []>} : vector<16x64xf32>, vector<64x8xf32>, vector<16x8xf32> -> vector<16x8xf32>
    %cst_172 = arith.constant dense<0.000000e+00> : vector<16x8xf32>
    %275 = tpu.matmul %271, %274, %cst_172 {dimension_numbers = #tpu.dot_dimension_numbers<[1], [0], [0], [1], [0, 0, 1, 1], [], []>} : vector<16x16xf32>, vector<16x8xf32>, vector<16x8xf32> -> vector<16x8xf32>
    %c7_173 = arith.constant 7 : index
    %c0_174 = arith.constant 0 : index
    %c0_175 = arith.constant 0 : index
    %276 = vector.load %arg6[%c7_173, %c0_174, %c0_175] : memref<8x64x8xf32, #tpu.memory_space<vmem>>, vector<1x64x8xf32>
    %277 = vector.shape_cast %276 : vector<1x64x8xf32> to vector<64x8xf32>
    %cst_176 = arith.constant dense<0.000000e+00> : vector<16x64xf32>
    %278 = tpu.matmul %275, %277, %cst_176 {dimension_numbers = #tpu.dot_dimension_numbers<[1], [1], [0], [0], [0, 0, 1, 0], [], []>} : vector<16x8xf32>, vector<64x8xf32>, vector<16x64xf32> -> vector<16x64xf32>
    %279 = arith.addf %245, %278 : vector<16x64xf32>
    %c0_177 = arith.constant 0 : index
    %c0_178 = arith.constant 0 : index
    %280 = vector.load %arg7[%c0_177, %c0_178] : memref<1x64xf32, #tpu.memory_space<vmem>>, vector<1x64xf32>
    %281 = vector.broadcast %280 : vector<1x64xf32> to vector<16x64xf32>
    %282 = arith.addf %279, %281 : vector<16x64xf32>
    %cst_179 = arith.constant 0.000000e+00 : f32
    %283 = vector.broadcast %cst_179 : f32 to vector<16x64xf32>
    %284 = arith.cmpf ogt, %282, %283 : vector<16x64xf32>
    %285 = math.exp %282 : vector<16x64xf32>
    %cst_180 = arith.constant 1.000000e+00 : f32
    %286 = vector.broadcast %cst_180 : f32 to vector<16x64xf32>
    %287 = arith.subf %285, %286 : vector<16x64xf32>
    %288 = arith.select %284, %282, %287 : vector<16x64xi1>, vector<16x64xf32>
    %c0_181 = arith.constant 0 : index
    %c0_182 = arith.constant 0 : index
    %c0_183 = arith.constant 0 : index
    %289 = vector.load %arg8[%c0_181, %c0_182, %c0_183] : memref<1x16x64xf32, #tpu.memory_space<vmem>>, vector<1x16x64xf32>
    %290 = vector.shape_cast %289 : vector<1x16x64xf32> to vector<16x64xf32>
    %291 = vector.shape_cast %288 : vector<16x64xf32> to vector<1x16x64xf32>
    tpu.vector_store %arg8[%c0_181, %c0_182, %c0_183], %291 {strides = array<i32>} : memref<1x16x64xf32, #tpu.memory_space<vmem>>, vector<1x16x64xf32>,
    return
  }
  func.func @transform_0(%arg0: i32) -> (i32, i32, i32) {
    %c0_i32 = arith.constant 0 : i32
    %c0_i32_0 = arith.constant 0 : i32
    %c0_i32_1 = arith.constant 0 : i32
    return %arg0, %c0_i32, %c0_i32_0 : i32, i32, i32
  }
  func.func @transform_1(%arg0: i32) -> (i32, i32, i32) {
    %c0_i32 = arith.constant 0 : i32
    %c0_i32_0 = arith.constant 0 : i32
    %c0_i32_1 = arith.constant 0 : i32
    return %arg0, %c0_i32, %c0_i32_0 : i32, i32, i32
  }
  func.func @transform_2(%arg0: i32) -> (i32, i32) {
    %c0_i32 = arith.constant 0 : i32
    %c0_i32_0 = arith.constant 0 : i32
    %c0_i32_1 = arith.constant 0 : i32
    return %c0_i32, %c0_i32_0 : i32, i32
  }
  func.func @transform_3(%arg0: i32) -> (i32, i32, i32) {
    %c0_i32 = arith.constant 0 : i32
    %c0_i32_0 = arith.constant 0 : i32
    %c0_i32_1 = arith.constant 0 : i32
    %c0_i32_2 = arith.constant 0 : i32
    return %c0_i32, %c0_i32_0, %c0_i32_1 : i32, i32, i32
  }
  func.func @transform_4(%arg0: i32) -> (i32, i32, i32) {
    %c0_i32 = arith.constant 0 : i32
    %c0_i32_0 = arith.constant 0 : i32
    %c0_i32_1 = arith.constant 0 : i32
    %c0_i32_2 = arith.constant 0 : i32
    return %c0_i32, %c0_i32_0, %c0_i32_1 : i32, i32, i32
  }
  func.func @transform_5(%arg0: i32) -> (i32, i32, i32) {
    %c0_i32 = arith.constant 0 : i32
    %c0_i32_0 = arith.constant 0 : i32
    %c0_i32_1 = arith.constant 0 : i32
    %c0_i32_2 = arith.constant 0 : i32
    return %c0_i32, %c0_i32_0, %c0_i32_1 : i32, i32, i32
  }
  func.func @transform_6(%arg0: i32) -> (i32, i32) {
    %c0_i32 = arith.constant 0 : i32
    %c0_i32_0 = arith.constant 0 : i32
    %c0_i32_1 = arith.constant 0 : i32
    return %c0_i32, %c0_i32_0 : i32, i32
  }
  func.func @transform_7(%arg0: i32) -> (i32, i32, i32) {
    %c0_i32 = arith.constant 0 : i32
    %c0_i32_0 = arith.constant 0 : i32
    %c0_i32_1 = arith.constant 0 : i32
    return %arg0, %c0_i32, %c0_i32_0 : i32, i32, i32
  }
}

</mosaic_0001>

<llo_original>
// kernel: tile.10
$region0: #{tile.10}
  %s0 = inlined_call_operand.vmem [shape: f32[8,8], index: 0, kind: input, shape index: {}]
  %s1 = inlined_call_operand.vmem [shape: f32[1,64], index: 1, kind: output, shape index: {}]
  $region1: #{tile.10} parent=0
    #allocation0 [shape = 'u8[4096]{0}', space=vmem, size = 0x1000, scoped, tag = 'scoped mem for output reshape']
    %v2 = vld [vmem:[%s0] sm:$0x1]
    %vm3 = vcmask 64512
    %4 = vst.msk [vmem:[#allocation0] sm:$0x1] %vm3, %v2
    %s5 = scalar_lea.vmem %s0, 7
    %v6 = vld [vmem:[%s5] sm:$0x1]
    %7 = vrot.lane.b32.xlu0 %v6, 56
    %v8 = vpop.permute.xlu0 %7
    %vm9 = vcmask 523712
    %10 = vst.msk [vmem:[#allocation0] sm:$0x1] %vm9, %v8
    %s11 = scalar_lea.vmem %s0, 6
    %v12 = vld [vmem:[%s11] sm:$0x1]
    %13 = vrot.lane.b32.xlu0 %v12, 48
    %v14 = vpop.permute.xlu0 %13
    %vm15 = vcmask 458112
    %16 = vst.msk [vmem:[#allocation0] sm:$0x1] %vm15, %v14
    %s17 = scalar_lea.vmem %s0, 5
    %v18 = vld [vmem:[%s17] sm:$0x1]
    %19 = vrot.lane.b32.xlu0 %v18, 40
    %v20 = vpop.permute.xlu0 %19
    %vm21 = vcmask 392512
    %22 = vst.msk [vmem:[#allocation0] sm:$0x1] %vm21, %v20
    %s23 = scalar_lea.vmem %s0, 4
    %v24 = vld [vmem:[%s23] sm:$0x1]
    %25 = vrot.lane.b32.xlu0 %v24, 32
    %v26 = vpop.permute.xlu0 %25
    %vm27 = vcmask 326912
    %28 = vst.msk [vmem:[#allocation0] sm:$0x1] %vm27, %v26
    %s29 = scalar_lea.vmem %s0, 3
    %v30 = vld [vmem:[%s29] sm:$0x1]
    %31 = vrot.lane.b32.xlu0 %v30, 24
    %v32 = vpop.permute.xlu0 %31
    %vm33 = vcmask 261312
    %34 = vst.msk [vmem:[#allocation0] sm:$0x1] %vm33, %v32
    %s35 = scalar_lea.vmem %s0, 2
    %v36 = vld [vmem:[%s35] sm:$0x1]
    %37 = vrot.lane.b32.xlu0 %v36, 16
    %v38 = vpop.permute.xlu0 %37
    %vm39 = vcmask 195712
    %40 = vst.msk [vmem:[#allocation0] sm:$0x1] %vm39, %v38
    %s41 = scalar_lea.vmem %s0, 1
    %v42 = vld [vmem:[%s41] sm:$0x1]
    %43 = vrot.lane.b32.xlu0 %v42, 8
    %v44 = vpop.permute.xlu0 %43
    %vm45 = vcmask 130112
    %46 = vst.msk [vmem:[#allocation0] sm:$0x1] %vm45, %v44
    %s48 = sshllo.u32 0, 1
    %v50 = vld [vmem:[#allocation0] sm:%s48]
    %s51 = sshllo.u32 0, 1
    %52 = vst [vmem:[%s1] sm:%s51] %v50

// kernel: tile.9
$region0: #{tile.9}
  #allocation0 [shape = 's32[1]{0}', space=sflag, size = 0x4, scoped, tag = 'scoped memory for tile.9']
  %s0 = inlined_call_operand.vmem [shape: f32[8], index: 0, kind: input, shape index: {}]
  %s1 = inlined_call_operand.vmem [shape: f32[8,8], index: 1, kind: output, shape index: {}]
  // Predicated region
  $region2: #{tile.9} parent=0 // pred_check
    _
  $region3: #{tile.9} parent=0 // pred_check_branch
    %3 = sbr.rel (0) target = $region5
  $region4: #{tile.9} parent=0 // pred_region
    _
  $region5: #{tile.9} parent=0 // pred_fallthru
    _
  %v4 = vld [vmem:[%s0] ss:$0 sm:$0xff]
  %5 = vst [vmem:[%s1] sm:$0xff] %v4

// kernel: batch_gat_forward.3
$region0: #{batch_gat_forward.3}
  #allocation0 [shape = 'u32[]', space=smem, size = 0x4, offset = 0x4, fixed_abs, tag = 'smem constant byte address 0x4 - core index']
  #allocation1 [shape = 'u32[144,128]{1,0:T(1,128)}', space=vmem, size = 0x12000, scoped, tag = 'internal scratch']
  %s0 = inlined_call_operand.vmem [shape: f32[2,16,64], index: 0, kind: input, shape index: {}]
  %s1 = inlined_call_operand.vmem [shape: f32[2,16,16], index: 1, kind: input, shape index: {}]
  %s2 = inlined_call_operand.vmem [shape: f32[64,7], index: 2, kind: input, shape index: {}]
  %s3 = inlined_call_operand.vmem [shape: f32[1,7,1], index: 3, kind: input, shape index: {}]
  %s4 = inlined_call_operand.vmem [shape: f32[1,1,7], index: 4, kind: input, shape index: {}]
  %s5 = inlined_call_operand.vmem [shape: f32[1,7,7], index: 5, kind: input, shape index: {}]
  %s6 = inlined_call_operand.vmem [shape: f32[1,7], index: 6, kind: input, shape index: {}]
  %s7 = inlined_call_operand.vmem [shape: f32[2,16,7], index: 7, kind: output, shape index: {}]
  %s8 = sld [smem:[#allocation0]]
  $region61: #{batch_gat_forward.3} parent=0
    _
  %s10 = ssub.s32 1, %s8
  %s11 = scalar_select 0, %s10, %s8
  loop: start=0, step=1, limit=4
  $region2: #{batch_gat_forward.3} parent=0 // loop_pre_header
    _
  $region3: #{batch_gat_forward.3} parent=0 // loop_header
    %s13 = sphi 0, %s17
    %p14 = scmp.ge.s32.totalorder %s13, 4
    %s23 = sphi 0, %s25
    %s26 = sphi 0, %s23
    %s27 = sphi 0, %s26
    %s43 = sphi 0, %s27
    %s49 = sphi 0, %s51
    %s52 = sphi 0, %s49
    %s53 = sphi 0, %s52
    %s69 = sphi 0, %s53
    %s73 = sphi 0, %s73
    %s75 = sphi 0, %s73
    %s76 = sphi 0, %s75
    %s90 = sphi 0, %s76
    %s94 = sphi 0, %s94
    %s96 = sphi 0, %s94
    %s97 = sphi 0, %s96
    %s111 = sphi 0, %s97
    %s115 = sphi 0, %s115
    %s117 = sphi 0, %s115
    %s118 = sphi 0, %s117
    %s132 = sphi 0, %s118
    %s136 = sphi 0, %s136
    %s138 = sphi 0, %s136
    %s139 = sphi 0, %s138
    %s153 = sphi 0, %s139
    %s157 = sphi 0, %s157
    %s159 = sphi 0, %s157
    %s160 = sphi 0, %s159
    %s174 = sphi 0, %s160
    %s180 = sphi 0, %s182
    %s183 = sphi 0, %s180
    %s184 = sphi 0, %s183
    %s200 = sphi 0, %s184
  $region4: #{batch_gat_forward.3} parent=0 // loop_header_branch
    %16 = sbr.rel (%p14) target = $region8
  $region5: #{batch_gat_forward.3} parent=0 // loop_body
    %s18 = ssub.s32 %s13, 1
    %s19 = ssub.s32 %s13, 2
    %s20 = sadd.s32 %s13, 1
    %s21 = ssub.s32 %s13, %s20
    %p22 = scmp.eq.s32.totalorder %s21, 0
    %s24 = sadd.s32 %s23, 1
    %s25 = scalar_select %p22, %s23, %s24
    %p28 = pneg %p22
    %p29 = scmp.eq.s32.totalorder %s13, 1
    %p30 = por %p28, %p29
    %p31 = scmp.ne.s32.totalorder %s23, %s26
    %p32 = scmp.eq.s32.totalorder %s13, 0
    %p33 = por %p31, %p32
    %p34 = scmp.ne.s32.totalorder %s23, %s26
    %p35 = scmp.eq.s32.totalorder %s18, 1
    %p36 = por %p34, %p35
    %p37 = scmp.ne.s32.totalorder %s26, %s27
    %p38 = scmp.eq.s32.totalorder %s18, 0
    %p39 = por %p37, %p38
    %p40 = scmp.ne.s32.totalorder %s26, %s27
    %p41 = scmp.eq.s32.totalorder %s19, 1
    %p42 = por %p40, %p41
    %p44 = scmp.ne.s32.totalorder %s27, %s43
    %p45 = scmp.eq.s32.totalorder %s19, 0
    %p46 = por %p44, %p45
    %s47 = ssub.s32 %s13, %s20
    %p48 = scmp.eq.s32.totalorder %s47, 0
    %s50 = sadd.s32 %s49, 1
    %s51 = scalar_select %p48, %s49, %s50
    %p54 = pneg %p48
    %p55 = scmp.eq.s32.totalorder %s13, 1
    %p56 = por %p54, %p55
    %p57 = scmp.ne.s32.totalorder %s49, %s52
    %p58 = scmp.eq.s32.totalorder %s13, 0
    %p59 = por %p57, %p58
    %p60 = scmp.ne.s32.totalorder %s49, %s52
    %p61 = scmp.eq.s32.totalorder %s18, 1
    %p62 = por %p60, %p61
    %p63 = scmp.ne.s32.totalorder %s52, %s53
    %p64 = scmp.eq.s32.totalorder %s18, 0
    %p65 = por %p63, %p64
    %p66 = scmp.ne.s32.totalorder %s52, %s53
    %p67 = scmp.eq.s32.totalorder %s19, 1
    %p68 = por %p66, %p67
    %p70 = scmp.ne.s32.totalorder %s53, %s69
    %p71 = scmp.eq.s32.totalorder %s19, 0
    %p72 = por %p70, %p71
    %s74 = sadd.s32 %s73, 1
    %p77 = scmp.eq.s32.totalorder %s13, 1
    %p78 = scmp.ne.s32.totalorder %s73, %s75
    %p79 = scmp.eq.s32.totalorder %s13, 0
    %p80 = por %p78, %p79
    %p81 = scmp.ne.s32.totalorder %s73, %s75
    %p82 = scmp.eq.s32.totalorder %s18, 1
    %p83 = por %p81, %p82
    %p84 = scmp.ne.s32.totalorder %s75, %s76
    %p85 = scmp.eq.s32.totalorder %s18, 0
    %p86 = por %p84, %p85
    %p87 = scmp.ne.s32.totalorder %s75, %s76
    %p88 = scmp.eq.s32.totalorder %s19, 1
    %p89 = por %p87, %p88
    %p91 = scmp.ne.s32.totalorder %s76, %s90
    %p92 = scmp.eq.s32.totalorder %s19, 0
    %p93 = por %p91, %p92
    %s95 = sadd.s32 %s94, 1
    %p98 = scmp.eq.s32.totalorder %s13, 1
    %p99 = scmp.ne.s32.totalorder %s94, %s96
    %p100 = scmp.eq.s32.totalorder %s13, 0
    %p101 = por %p99, %p100
    %p102 = scmp.ne.s32.totalorder %s94, %s96
    %p103 = scmp.eq.s32.totalorder %s18, 1
    %p104 = por %p102, %p103
    %p105 = scmp.ne.s32.totalorder %s96, %s97
    %p106 = scmp.eq.s32.totalorder %s18, 0
    %p107 = por %p105, %p106
    %p108 = scmp.ne.s32.totalorder %s96, %s97
    %p109 = scmp.eq.s32.totalorder %s19, 1
    %p110 = por %p108, %p109
    %p112 = scmp.ne.s32.totalorder %s97, %s111
    %p113 = scmp.eq.s32.totalorder %s19, 0
    %p114 = por %p112, %p113
    %s116 = sadd.s32 %s115, 1
    %p119 = scmp.eq.s32.totalorder %s13, 1
    %p120 = scmp.ne.s32.totalorder %s115, %s117
    %p121 = scmp.eq.s32.totalorder %s13, 0
    %p122 = por %p120, %p121
    %p123 = scmp.ne.s32.totalorder %s115, %s117
    %p124 = scmp.eq.s32.totalorder %s18, 1
    %p125 = por %p123, %p124
    %p126 = scmp.ne.s32.totalorder %s117, %s118
    %p127 = scmp.eq.s32.totalorder %s18, 0
    %p128 = por %p126, %p127
    %p129 = scmp.ne.s32.totalorder %s117, %s118
    %p130 = scmp.eq.s32.totalorder %s19, 1
    %p131 = por %p129, %p130
    %p133 = scmp.ne.s32.totalorder %s118, %s132
    %p134 = scmp.eq.s32.totalorder %s19, 0
    %p135 = por %p133, %p134
    %s137 = sadd.s32 %s136, 1
    %p140 = scmp.eq.s32.totalorder %s13, 1
    %p141 = scmp.ne.s32.totalorder %s136, %s138
    %p142 = scmp.eq.s32.totalorder %s13, 0
    %p143 = por %p141, %p142
    %p144 = scmp.ne.s32.totalorder %s136, %s138
    %p145 = scmp.eq.s32.totalorder %s18, 1
    %p146 = por %p144, %p145
    %p147 = scmp.ne.s32.totalorder %s138, %s139
    %p148 = scmp.eq.s32.totalorder %s18, 0
    %p149 = por %p147, %p148
    %p150 = scmp.ne.s32.totalorder %s138, %s139
    %p151 = scmp.eq.s32.totalorder %s19, 1
    %p152 = por %p150, %p151
    %p154 = scmp.ne.s32.totalorder %s139, %s153
    %p155 = scmp.eq.s32.totalorder %s19, 0
    %p156 = por %p154, %p155
    %s158 = sadd.s32 %s157, 1
    %p161 = scmp.eq.s32.totalorder %s13, 1
    %p162 = scmp.ne.s32.totalorder %s157, %s159
    %p163 = scmp.eq.s32.totalorder %s13, 0
    %p164 = por %p162, %p163
    %p165 = scmp.ne.s32.totalorder %s157, %s159
    %p166 = scmp.eq.s32.totalorder %s18, 1
    %p167 = por %p165, %p166
    %p168 = scmp.ne.s32.totalorder %s159, %s160
    %p169 = scmp.eq.s32.totalorder %s18, 0
    %p170 = por %p168, %p169
    %p171 = scmp.ne.s32.totalorder %s159, %s160
    %p172 = scmp.eq.s32.totalorder %s19, 1
    %p173 = por %p171, %p172
    %p175 = scmp.ne.s32.totalorder %s160, %s174
    %p176 = scmp.eq.s32.totalorder %s19, 0
    %p177 = por %p175, %p176
    %s178 = ssub.s32 %s13, %s20
    %p179 = scmp.eq.s32.totalorder %s178, 0
    %s181 = sadd.s32 %s180, 1
    %s182 = scalar_select %p179, %s180, %s181
    %p185 = pneg %p179
    %p186 = scmp.eq.s32.totalorder %s13, 1
    %p187 = por %p185, %p186
    %p188 = scmp.ne.s32.totalorder %s180, %s183
    %p189 = scmp.eq.s32.totalorder %s13, 0
    %p190 = por %p188, %p189
    %p191 = scmp.ne.s32.totalorder %s180, %s183
    %p192 = scmp.eq.s32.totalorder %s18, 1
    %p193 = por %p191, %p192
    %p194 = scmp.ne.s32.totalorder %s183, %s184
    %p195 = scmp.eq.s32.totalorder %s18, 0
    %p196 = por %p194, %p195
    %p197 = scmp.ne.s32.totalorder %s183, %s184
    %p198 = scmp.eq.s32.totalorder %s19, 1
    %p199 = por %p197, %p198
    %p201 = scmp.ne.s32.totalorder %s184, %s200
    %p202 = scmp.eq.s32.totalorder %s19, 0
    %p203 = por %p201, %p202
    %p204 = scmp.le.s32.totalorder 1, %s13
    %p205 = scmp.lt.s32.totalorder %s13, 3
    %p206 = pnand %p204, %p205
    %p207 = pneg %p206
    // Predicated region
    $region9: #{batch_gat_forward.3} parent=5 // pred_check
      _
    $region10: #{batch_gat_forward.3} parent=5 // pred_check_branch
      %209 = sbr.rel (%p206) target = $region12
    $region11: #{batch_gat_forward.3} parent=5 // pred_region
      %s210 = ssub.s32 %s13, 1
      // Predicated region
      $region13: #{batch_gat_forward.3} parent=11 // pred_check
        %p211 = pneg %p86
      $region14: #{batch_gat_forward.3} parent=11 // pred_check_branch
        %213 = sbr.rel (%p211) target = $region16
      $region15: #{batch_gat_forward.3} parent=11 // pred_region
        _
      $region16: #{batch_gat_forward.3} parent=11 // pred_fallthru
        _
      // Predicated region
      $region17: #{batch_gat_forward.3} parent=11 // pred_check
        %p214 = pneg %p107
      $region18: #{batch_gat_forward.3} parent=11 // pred_check_branch
        %216 = sbr.rel (%p214) target = $region20
      $region19: #{batch_gat_forward.3} parent=11 // pred_region
        _
      $region20: #{batch_gat_forward.3} parent=11 // pred_fallthru
        _
      // Predicated region
      $region21: #{batch_gat_forward.3} parent=11 // pred_check
        %p217 = pneg %p128
      $region22: #{batch_gat_forward.3} parent=11 // pred_check_branch
        %219 = sbr.rel (%p217) target = $region24
      $region23: #{batch_gat_forward.3} parent=11 // pred_region
        _
      $region24: #{batch_gat_forward.3} parent=11 // pred_fallthru
        _
      // Predicated region
      $region25: #{batch_gat_forward.3} parent=11 // pred_check
        %p220 = pneg %p149
      $region26: #{batch_gat_forward.3} parent=11 // pred_check_branch
        %222 = sbr.rel (%p220) target = $region28
      $region27: #{batch_gat_forward.3} parent=11 // pred_region
        _
      $region28: #{batch_gat_forward.3} parent=11 // pred_fallthru
        _
      // Predicated region
      $region29: #{batch_gat_forward.3} parent=11 // pred_check
        %p223 = pneg %p170
      $region30: #{batch_gat_forward.3} parent=11 // pred_check_branch
        %225 = sbr.rel (%p223) target = $region32
      $region31: #{batch_gat_forward.3} parent=11 // pred_region
        _
      $region32: #{batch_gat_forward.3} parent=11 // pred_fallthru
        _
    $region12: #{batch_gat_forward.3} parent=5 // pred_fallthru
      _
    %p226 = scmp.lt.s32.totalorder %s13, 2
    // Predicated region
    $region33: #{batch_gat_forward.3} parent=5 // pred_check
      %p227 = pneg %p226
    $region34: #{batch_gat_forward.3} parent=5 // pred_check_branch
      %229 = sbr.rel (%p227) target = $region36
    $region35: #{batch_gat_forward.3} parent=5 // pred_region
      // Predicated region
      $region37: #{batch_gat_forward.3} parent=35 // pred_check
        %p230 = pneg %p33
      $region38: #{batch_gat_forward.3} parent=35 // pred_check_branch
        %232 = sbr.rel (%p230) target = $region40
      $region39: #{batch_gat_forward.3} parent=35 // pred_region
        %p233 = scmp.lt.s32.totalorder %s13, 1
        %s234 = scalar_select %p233, %s13, 1
        %s235 = smul.addr %s234, 2
        %s236 = smul.addr %s235, 8
        %s237 = scalar_lea.vmem %s0, %s236
      $region40: #{batch_gat_forward.3} parent=35 // pred_fallthru
        _
      // Predicated region
      $region41: #{batch_gat_forward.3} parent=35 // pred_check
        %p238 = pneg %p59
      $region42: #{batch_gat_forward.3} parent=35 // pred_check_branch
        %240 = sbr.rel (%p238) target = $region44
      $region43: #{batch_gat_forward.3} parent=35 // pred_region
        %p241 = scmp.lt.s32.totalorder %s13, 1
        %s242 = scalar_select %p241, %s13, 1
        %s243 = smul.addr %s242, 2
        %s244 = smul.addr %s243, 8
        %s245 = scalar_lea.vmem %s1, %s244
      $region44: #{batch_gat_forward.3} parent=35 // pred_fallthru
        _
    $region36: #{batch_gat_forward.3} parent=5 // pred_fallthru
      _
    %p246 = scmp.le.s32.totalorder 1, %s13
    %p247 = scmp.lt.s32.totalorder %s13, 3
    %p248 = pnand %p246, %p247
    %p249 = pneg %p248
    // Predicated region
    $region45: #{batch_gat_forward.3} parent=5 // pred_check
      _
    $region46: #{batch_gat_forward.3} parent=5 // pred_check_branch
      %251 = sbr.rel (%p248) target = $region48
    $region47: #{batch_gat_forward.3} parent=5 // pred_region
      %s252 = ssub.s32 %s13, 1
      %p253 = scmp.lt.s32.totalorder %s18, 1
      %s254 = scalar_select %p253, %s18, 1
      %s255 = smul.addr %s254, 2
      %s256 = smul.addr %s255, 8
      %s257 = scalar_lea.vmem %s0, %s256
      %p258 = pneg %p39
      %p259 = pneg %p36
      %p260 = scmp.lt.s32.totalorder %s18, 1
      %s261 = scalar_select %p260, %s18, 1
      %s262 = smul.addr %s261, 2
      %s263 = smul.addr %s262, 8
      %s264 = scalar_lea.vmem %s1, %s263
      %p265 = pneg %p65
      %p266 = pneg %p62
      %p267 = pneg %p86
      %p268 = pneg %p83
      %p269 = pneg %p107
      %p270 = pneg %p104
      %p271 = pneg %p128
      %p272 = pneg %p125
      %p273 = pneg %p149
      %p274 = pneg %p146
      %p275 = pneg %p170
      %p276 = pneg %p167
      %p277 = pneg %p196
      %p278 = pneg %p193
      %p279 = scmp.lt.s32.totalorder %s18, 1
      %s280 = scalar_select %p279, %s18, 1
      %s281 = smul.addr %s280, 2
      %s282 = smul.addr %s281, 8
      %s283 = scalar_lea.vmem %s7, %s282
      %p284 = scmp.lt.s32.totalorder %s18, 1
      %s285 = scalar_select %p284, %s18, 1
      %s286 = smul.addr %s285, 2
      %s287 = smul.addr %s286, 8
      %s288 = scalar_lea.vmem %s0, %s287
      %p289 = scmp.lt.s32.totalorder %s18, 1
      %s290 = scalar_select %p289, %s18, 1
      %s291 = smul.addr %s290, 2
      %s292 = smul.addr %s291, 8
      %s293 = scalar_lea.vmem %s1, %s292
      %p294 = scmp.lt.s32.totalorder %s18, 1
      %s295 = scalar_select %p294, %s18, 1
      %s296 = smul.addr %s295, 2
      %s297 = smul.addr %s296, 8
      %s298 = scalar_lea.vmem %s7, %s297
      %v299 = vld [vmem:[%s288] sm:$0xff]
      %v300 = vld [vmem:[%s288 + $0x8] sm:$0xff]
      %v301 = vld [vmem:[%s293] sm:$0xff]
      %v302 = vld [vmem:[%s293 + $0x8] sm:$0xff]
      %v303 = vld [vmem:[%s2] sm:$0xff]
      %v304 = vld [vmem:[%s2 + $0x8] sm:$0xff]
      %v305 = vld [vmem:[%s2 + $0x10] sm:$0xff]
      %v306 = vld [vmem:[%s2 + $0x18] sm:$0xff]
      %v307 = vld [vmem:[%s2 + $0x20] sm:$0xff]
      %v308 = vld [vmem:[%s2 + $0x28] sm:$0xff]
      %v309 = vld [vmem:[%s2 + $0x30] sm:$0xff]
      %v310 = vld [vmem:[%s2 + $0x38] sm:$0xff]
      %vm311 = vcmask 523264
      %v313 = vsel %vm311, %v299, 0
      %v316 = vsel %vm311, %v300, 0
      %318 = vmatprep.subr.mxu0 0.0
      %319 = vmatpush1.msra.mxu0 %v303
      %320 = vmatprep.subr.mxu0 0.0
      %321 = vmatpush1.msra.mxu0 %v304
      %322 = vmatprep.subr.mxu0 0.0
      %323 = vmatpush1.msra.mxu0 %v305
      %324 = vmatprep.subr.mxu0 0.0
      %325 = vmatpush1.msra.mxu0 %v306
      %326 = vmatprep.subr.mxu0 0.0
      %327 = vmatpush1.msra.mxu0 %v307
      %328 = vmatprep.subr.mxu0 0.0
      %329 = vmatpush1.msra.mxu0 %v308
      %330 = vmatprep.subr.mxu0 0.0
      %331 = vmatpush1.msra.mxu0 %v309
      %332 = vmatprep.subr.mxu0 0.0
      %333 = vmatpush1.msra.mxu0 %v310
      %334 = vmatprep.subr.mxu0 0.0
      %335 = vmatpush1.msra.mxu0 0.0
      %336 = vmatprep.subr.mxu0 0.0
      %337 = vmatpush1.msra.mxu0 0.0
      %338 = vmatprep.subr.mxu0 0.0
      %339 = vmatpush1.msra.mxu0 0.0
      %340 = vmatprep.subr.mxu0 0.0
      %341 = vmatpush1.msra.mxu0 0.0
      %342 = vmatprep.subr.mxu0 0.0
      %343 = vmatpush1.msra.mxu0 0.0
      %344 = vmatprep.subr.mxu0 0.0
      %345 = vmatpush1.msra.mxu0 0.0
      %346 = vmatprep.subr.mxu0 0.0
      %347 = vmatpush1.msra.mxu0 0.0
      %348 = vmatprep.subr.mxu0 0.0
      %349 = vmatpush1.msra.mxu0 0.0
      %350 = vmatprep.subr.mxu0 0.0
      %351 = vmatpush1.msra.mxu0 0.0
      %352 = vmatprep.subr.mxu0 0.0
      %353 = vmatpush1.msra.mxu0 0.0
      %354 = vmatprep.subr.mxu0 0.0
      %355 = vmatpush1.msra.mxu0 0.0
      %356 = vmatprep.subr.mxu0 0.0
      %357 = vmatpush1.msra.mxu0 0.0
      %358 = vmatprep.subr.mxu0 0.0
      %359 = vmatpush1.msra.mxu0 0.0
      %360 = vmatprep.subr.mxu0 0.0
      %361 = vmatpush1.msra.mxu0 0.0
      %362 = vmatprep.subr.mxu0 0.0
      %363 = vmatpush1.msra.mxu0 0.0
      %364 = vmatprep.subr.mxu0 0.0
      %365 = vmatpush1.msra.mxu0 0.0
      %366 = vmatprep.subr.mxu0 0.0
      %367 = vmatpush1.msra.mxu0 0.0
      %368 = vmatprep.subr.mxu0 0.0
      %369 = vmatpush1.msra.mxu0 0.0
      %370 = vmatprep.subr.mxu0 0.0
      %371 = vmatpush1.msra.mxu0 0.0
      %372 = vmatprep.subr.mxu0 0.0
      %373 = vmatpush1.msra.mxu0 0.0
      %374 = vmatprep.subr.mxu0 0.0
      %375 = vmatpush1.msra.mxu0 0.0
      %376 = vmatprep.subr.mxu0 0.0
      %377 = vmatpush1.msra.mxu0 0.0
      %378 = vmatprep.subr.mxu0 0.0
      %379 = vmatpush1.msra.mxu0 0.0
      %380 = vmatprep.subr.mxu0 0.0
      %381 = vmatpush1.msra.mxu0 0.0
      %382 = vmatprep.mubr.f32.mxu0 0.0
      %383 = vmatmul.mubr.f32.gmra.mrb[0].mxu0 %v313
      %v384 = vpop.f32.mrb[0].mxu0
      %v385 = vadd.f32 0.0, %v384
      %v386 = vpop.f32.mrb[0].mxu0
      %387 = vmatprep.mubr.f32.mxu0 0.0
      %388 = vmatmul.mubr.f32.gmra.mrb[0].mxu0 %v316
      %v389 = vpop.f32.mrb[0].mxu0
      %v390 = vadd.f32 0.0, %v389
      %v391 = vpop.f32.mrb[0].mxu0
      %392 = vdwg.mxu0
      %v393 = vtanh.pop %v385
      %v394 = vtanh.pop %v390
      %v395 = vld [vmem:[%s3] sm:$0x7f]
      %vm396 = vcmask 56320
      %v398 = vsel %vm396, %v393, 0
      %v401 = vsel %vm396, %v394, 0
      %vm403 = vcmask 1046528
      %v405 = vsel %vm403, %v395, 0
      %407 = vmatprep.subr.mxu0 0.0
      %408 = vmatpush1.msra.mxu0 %v405
      %409 = vmatprep.subr.mxu0 0.0
      %410 = vmatpush1.msra.mxu0 0.0
      %411 = vmatprep.subr.mxu0 0.0
      %412 = vmatpush1.msra.mxu0 0.0
      %413 = vmatprep.subr.mxu0 0.0
      %414 = vmatpush1.msra.mxu0 0.0
      %415 = vmatprep.subr.mxu0 0.0
      %416 = vmatpush1.msra.mxu0 0.0
      %417 = vmatprep.subr.mxu0 0.0
      %418 = vmatpush1.msra.mxu0 0.0
      %419 = vmatprep.subr.mxu0 0.0
      %420 = vmatpush1.msra.mxu0 0.0
      %421 = vmatprep.subr.mxu0 0.0
      %422 = vmatpush1.msra.mxu0 0.0
      %423 = vmatprep.subr.mxu0 0.0
      %424 = vmatpush1.msra.mxu0 0.0
      %425 = vmatprep.subr.mxu0 0.0
      %426 = vmatpush1.msra.mxu0 0.0
      %427 = vmatprep.subr.mxu0 0.0
      %428 = vmatpush1.msra.mxu0 0.0
      %429 = vmatprep.subr.mxu0 0.0
      %430 = vmatpush1.msra.mxu0 0.0
      %431 = vmatprep.subr.mxu0 0.0
      %432 = vmatpush1.msra.mxu0 0.0
      %433 = vmatprep.subr.mxu0 0.0
      %434 = vmatpush1.msra.mxu0 0.0
      %435 = vmatprep.subr.mxu0 0.0
      %436 = vmatpush1.msra.mxu0 0.0
      %437 = vmatprep.subr.mxu0 0.0
      %438 = vmatpush1.msra.mxu0 0.0
      %439 = vmatprep.subr.mxu0 0.0
      %440 = vmatpush1.msra.mxu0 0.0
      %441 = vmatprep.subr.mxu0 0.0
      %442 = vmatpush1.msra.mxu0 0.0
      %443 = vmatprep.subr.mxu0 0.0
      %444 = vmatpush1.msra.mxu0 0.0
      %445 = vmatprep.subr.mxu0 0.0
      %446 = vmatpush1.msra.mxu0 0.0
      %447 = vmatprep.subr.mxu0 0.0
      %448 = vmatpush1.msra.mxu0 0.0
      %449 = vmatprep.subr.mxu0 0.0
      %450 = vmatpush1.msra.mxu0 0.0
      %451 = vmatprep.subr.mxu0 0.0
      %452 = vmatpush1.msra.mxu0 0.0
      %453 = vmatprep.subr.mxu0 0.0
      %454 = vmatpush1.msra.mxu0 0.0
      %455 = vmatprep.subr.mxu0 0.0
      %456 = vmatpush1.msra.mxu0 0.0
      %457 = vmatprep.subr.mxu0 0.0
      %458 = vmatpush1.msra.mxu0 0.0
      %459 = vmatprep.subr.mxu0 0.0
      %460 = vmatpush1.msra.mxu0 0.0
      %461 = vmatprep.subr.mxu0 0.0
      %462 = vmatpush1.msra.mxu0 0.0
      %463 = vmatprep.subr.mxu0 0.0
      %464 = vmatpush1.msra.mxu0 0.0
      %465 = vmatprep.subr.mxu0 0.0
      %466 = vmatpush1.msra.mxu0 0.0
      %467 = vmatprep.subr.mxu0 0.0
      %468 = vmatpush1.msra.mxu0 0.0
      %469 = vmatprep.subr.mxu0 0.0
      %470 = vmatpush1.msra.mxu0 0.0
      %471 = vmatprep.mubr.f32.mxu0 0.0
      %472 = vmatmul.mubr.f32.gmra.mrb[0].mxu0 %v398
      %v473 = vpop.f32.mrb[0].mxu0
      %v474 = vadd.f32 0.0, %v473
      %v475 = vpop.f32.mrb[0].mxu0
      %476 = vmatprep.mubr.f32.mxu0 0.0
      %477 = vmatmul.mubr.f32.gmra.mrb[0].mxu0 %v401
      %v478 = vpop.f32.mrb[0].mxu0
      %v479 = vadd.f32 0.0, %v478
      %v480 = vpop.f32.mrb[0].mxu0
      %481 = vdwg.mxu0
      %v482 = vld [vmem:[%s4] sm:$0x1]
      %v484 = vsel %vm396, %v482, 0
      %486 = vmatprep.subr.mxu0 0.0
      %487 = vmatpush1.xpose.msra.mxu0 %v398
      %488 = vmatprep.subr.mxu0 0.0
      %489 = vmatpush1.xpose.msra.mxu0 %v401
      %490 = vmatprep.subr.mxu0 0.0
      %491 = vmatpush1.xpose.msra.mxu0 0.0
      %492 = vmatprep.subr.mxu0 0.0
      %493 = vmatpush1.xpose.msra.mxu0 0.0
      %494 = vmatprep.subr.mxu0 0.0
      %495 = vmatpush1.xpose.msra.mxu0 0.0
      %496 = vmatprep.subr.mxu0 0.0
      %497 = vmatpush1.xpose.msra.mxu0 0.0
      %498 = vmatprep.subr.mxu0 0.0
      %499 = vmatpush1.xpose.msra.mxu0 0.0
      %500 = vmatprep.subr.mxu0 0.0
      %501 = vmatpush1.xpose.msra.mxu0 0.0
      %502 = vmatprep.subr.mxu0 0.0
      %503 = vmatpush1.xpose.msra.mxu0 0.0
      %504 = vmatprep.subr.mxu0 0.0
      %505 = vmatpush1.xpose.msra.mxu0 0.0
      %506 = vmatprep.subr.mxu0 0.0
      %507 = vmatpush1.xpose.msra.mxu0 0.0
      %508 = vmatprep.subr.mxu0 0.0
      %509 = vmatpush1.xpose.msra.mxu0 0.0
      %510 = vmatprep.subr.mxu0 0.0
      %511 = vmatpush1.xpose.msra.mxu0 0.0
      %512 = vmatprep.subr.mxu0 0.0
      %513 = vmatpush1.xpose.msra.mxu0 0.0
      %514 = vmatprep.subr.mxu0 0.0
      %515 = vmatpush1.xpose.msra.mxu0 0.0
      %516 = vmatprep.subr.mxu0 0.0
      %517 = vmatpush1.xpose.msra.mxu0 0.0
      %518 = vmatprep.subr.mxu0 0.0
      %519 = vmatpush1.xpose.msra.mxu0 0.0
      %520 = vmatprep.subr.mxu0 0.0
      %521 = vmatpush1.xpose.msra.mxu0 0.0
      %522 = vmatprep.subr.mxu0 0.0
      %523 = vmatpush1.xpose.msra.mxu0 0.0
      %524 = vmatprep.subr.mxu0 0.0
      %525 = vmatpush1.xpose.msra.mxu0 0.0
      %526 = vmatprep.subr.mxu0 0.0
      %527 = vmatpush1.xpose.msra.mxu0 0.0
      %528 = vmatprep.subr.mxu0 0.0
      %529 = vmatpush1.xpose.msra.mxu0 0.0
      %530 = vmatprep.subr.mxu0 0.0
      %531 = vmatpush1.xpose.msra.mxu0 0.0
      %532 = vmatprep.subr.mxu0 0.0
      %533 = vmatpush1.xpose.msra.mxu0 0.0
      %534 = vmatprep.subr.mxu0 0.0
      %535 = vmatpush1.xpose.msra.mxu0 0.0
      %536 = vmatprep.subr.mxu0 0.0
      %537 = vmatpush1.xpose.msra.mxu0 0.0
      %538 = vmatprep.subr.mxu0 0.0
      %539 = vmatpush1.xpose.msra.mxu0 0.0
      %540 = vmatprep.subr.mxu0 0.0
      %541 = vmatpush1.xpose.msra.mxu0 0.0
      %542 = vmatprep.subr.mxu0 0.0
      %543 = vmatpush1.xpose.msra.mxu0 0.0
      %544 = vmatprep.subr.mxu0 0.0
      %545 = vmatpush1.xpose.msra.mxu0 0.0
      %546 = vmatprep.subr.mxu0 0.0
      %547 = vmatpush1.xpose.msra.mxu0 0.0
      %548 = vmatprep.subr.mxu0 0.0
      %549 = vmatpush1.xpose.msra.mxu0 0.0
      %550 = vmatprep.mubr.f32.mxu0 0.0
      %551 = vmatmul.mubr.f32.gmra.mrb[0].mxu0 %v484
      %v552 = vpop.f32.mrb[0].mxu0
      %v553 = vadd.f32 0.0, %v552
      %v554 = vpop.f32.mrb[0].mxu0
      %555 = vdwg.mxu0
      %557 = vset.pattern.permute.xlu0 0
      %558 = vperm.xlu0 %557, %v474
      %v559 = vpop.permute.xlu0 %558
      %562 = vset.pattern.permute.xlu0 0
      %563 = vperm.xlu0 %562, %v479
      %v564 = vpop.permute.xlu0 %563
      %v566 = vlaneseq
      %v567 = vshrl.u32 %v566, 7
      %v568 = vsub.s32 0, %v567
      %v569 = vrot.slane %v553, %v568
      %v570 = vadd.f32 %v559, %v569
      %v571 = vadd.f32 %v564, %v569
      %v572 = vmul.f32 %v570, 0.2
      %v573 = vmul.f32 %v571, 0.2
      %v574 = vmax.f32 %v570, %v572
      %v575 = vmax.f32 %v571, %v573
      %vm576 = vcmp.gt.f32.partialorder %v301, 0.0
      %vm577 = vcmp.gt.f32.partialorder %v302, 0.0
      %v578 = vsel %vm576, %v574, -1e+30
      %v579 = vsel %vm577, %v575, -1e+30
      %vm580 = vcmask 130048
      %v581 = vsel %vm580, %v578, -inf
      %582 = vmax.xlane.f32.xlu0 %v581
      %v583 = vpop.xlane.xlu0 %582
      %v584 = vsel %vm580, %v579, -inf
      %585 = vmax.xlane.f32.xlu0 %v584
      %v586 = vpop.xlane.xlu0 %585
      %v587 = vsub.f32 %v578, %v583
      %v588 = vsub.f32 %v579, %v586
      %v589 = vmul.f32 %v587, 1.442695
      %v590 = vpow.pop %v589
      %v591 = vmul.f32 %v588, 1.442695
      %v592 = vpow.pop %v591
      %v593 = vsel %vm580, %v590, 0.0
      %594 = vadd.xlane.f32.xlu0 %v593
      %v595 = vpop.xlane.xlu0 %594
      %v596 = vsel %vm580, %v592, 0.0
      %597 = vadd.xlane.f32.xlu0 %v596
      %v598 = vpop.xlane.xlu0 %597
      %v599 = vrcp.pop %v595
      %v600 = vrcp.pop %v598
      %v601 = vmul.f32 %v590, %v599
      %v602 = vmul.f32 %v592, %v600
      %v603 = vld [vmem:[%s6] sm:$0x1]
      %v605 = vlaneseq
      %v606 = vshrl.u32 %v605, 7
      %v607 = vsub.s32 0, %v606
      %v608 = vrot.slane %v603, %v607
      %v611 = vsel %vm580, %v601, 0
      %v614 = vsel %vm580, %v602, 0
      %616 = vmatprep.subr.mxu0 0.0
      %617 = vmatpush1.msra.mxu0 %v385
      %618 = vmatprep.subr.mxu0 0.0
      %619 = vmatpush1.msra.mxu0 %v390
      %620 = vmatprep.subr.mxu0 0.0
      %621 = vmatpush1.msra.mxu0 0.0
      %622 = vmatprep.subr.mxu0 0.0
      %623 = vmatpush1.msra.mxu0 0.0
      %624 = vmatprep.subr.mxu0 0.0
      %625 = vmatpush1.msra.mxu0 0.0
      %626 = vmatprep.subr.mxu0 0.0
      %627 = vmatpush1.msra.mxu0 0.0
      %628 = vmatprep.subr.mxu0 0.0
      %629 = vmatpush1.msra.mxu0 0.0
      %630 = vmatprep.subr.mxu0 0.0
      %631 = vmatpush1.msra.mxu0 0.0
      %632 = vmatprep.subr.mxu0 0.0
      %633 = vmatpush1.msra.mxu0 0.0
      %634 = vmatprep.subr.mxu0 0.0
      %635 = vmatpush1.msra.mxu0 0.0
      %636 = vmatprep.subr.mxu0 0.0
      %637 = vmatpush1.msra.mxu0 0.0
      %638 = vmatprep.subr.mxu0 0.0
      %639 = vmatpush1.msra.mxu0 0.0
      %640 = vmatprep.subr.mxu0 0.0
      %641 = vmatpush1.msra.mxu0 0.0
      %642 = vmatprep.subr.mxu0 0.0
      %643 = vmatpush1.msra.mxu0 0.0
      %644 = vmatprep.subr.mxu0 0.0
      %645 = vmatpush1.msra.mxu0 0.0
      %646 = vmatprep.subr.mxu0 0.0
      %647 = vmatpush1.msra.mxu0 0.0
      %648 = vmatprep.subr.mxu0 0.0
      %649 = vmatpush1.msra.mxu0 0.0
      %650 = vmatprep.subr.mxu0 0.0
      %651 = vmatpush1.msra.mxu0 0.0
      %652 = vmatprep.subr.mxu0 0.0
      %653 = vmatpush1.msra.mxu0 0.0
      %654 = vmatprep.subr.mxu0 0.0
      %655 = vmatpush1.msra.mxu0 0.0
      %656 = vmatprep.subr.mxu0 0.0
      %657 = vmatpush1.msra.mxu0 0.0
      %658 = vmatprep.subr.mxu0 0.0
      %659 = vmatpush1.msra.mxu0 0.0
      %660 = vmatprep.subr.mxu0 0.0
      %661 = vmatpush1.msra.mxu0 0.0
      %662 = vmatprep.subr.mxu0 0.0
      %663 = vmatpush1.msra.mxu0 0.0
      %664 = vmatprep.subr.mxu0 0.0
      %665 = vmatpush1.msra.mxu0 0.0
      %666 = vmatprep.subr.mxu0 0.0
      %667 = vmatpush1.msra.mxu0 0.0
      %668 = vmatprep.subr.mxu0 0.0
      %669 = vmatpush1.msra.mxu0 0.0
      %670 = vmatprep.subr.mxu0 0.0
      %671 = vmatpush1.msra.mxu0 0.0
      %672 = vmatprep.subr.mxu0 0.0
      %673 = vmatpush1.msra.mxu0 0.0
      %674 = vmatprep.subr.mxu0 0.0
      %675 = vmatpush1.msra.mxu0 0.0
      %676 = vmatprep.subr.mxu0 0.0
      %677 = vmatpush1.msra.mxu0 0.0
      %678 = vmatprep.subr.mxu0 0.0
      %679 = vmatpush1.msra.mxu0 0.0
      %680 = vmatprep.mubr.f32.mxu0 0.0
      %681 = vmatmul.mubr.f32.gmra.mrb[0].mxu0 %v611
      %v682 = vpop.f32.mrb[0].mxu0
      %v683 = vadd.f32 %v608, %v682
      %v684 = vpop.f32.mrb[0].mxu0
      %685 = vmatprep.mubr.f32.mxu0 0.0
      %686 = vmatmul.mubr.f32.gmra.mrb[0].mxu0 %v614
      %v687 = vpop.f32.mrb[0].mxu0
      %v688 = vadd.f32 %v608, %v687
      %v689 = vpop.f32.mrb[0].mxu0
      %690 = vdwg.mxu0
      %v691 = vsel %vm396, %v683, -inf
      %692 = vmax.xlane.f32.xlu0 %v691
      %v693 = vpop.xlane.xlu0 %692
      %v694 = vsel %vm396, %v688, -inf
      %695 = vmax.xlane.f32.xlu0 %v694
      %v696 = vpop.xlane.xlu0 %695
      %v697 = vsub.f32 %v683, %v693
      %v698 = vsub.f32 %v688, %v696
      %v699 = vmul.f32 %v697, 1.442695
      %v700 = vpow.pop %v699
      %v701 = vmul.f32 %v698, 1.442695
      %v702 = vpow.pop %v701
      %v703 = vsel %vm396, %v700, 0.0
      %704 = vadd.xlane.f32.xlu0 %v703
      %v705 = vpop.xlane.xlu0 %704
      %v706 = vsel %vm396, %v702, 0.0
      %707 = vadd.xlane.f32.xlu0 %v706
      %v708 = vpop.xlane.xlu0 %707
      %v709 = vlog2.pop %v705
      %v710 = vmul.f32 %v709, 0.6931472
      %v711 = vlog2.pop %v708
      %v712 = vmul.f32 %v711, 0.6931472
      %v713 = vsub.f32 %v697, %v710
      %v714 = vsub.f32 %v698, %v712
      %715 = vst.msk [vmem:[%s298] sm:$0xff] %vm396, %v713
      %716 = vst.msk [vmem:[%s298 + $0x8] sm:$0xff] %vm396, %v714
      %p717 = scmp.lt.s32.totalorder %s18, 1
      %s718 = scalar_select %p717, %s18, 1
      %s719 = smul.addr %s718, 2
      %s720 = smul.addr %s719, 8
      %s721 = scalar_lea.vmem %s7, %s720
      // Predicated region
      $region49: #{batch_gat_forward.3} parent=47 // pred_check
        %p722 = pneg %p193
      $region50: #{batch_gat_forward.3} parent=47 // pred_check_branch
        %724 = sbr.rel (%p722) target = $region52
      $region51: #{batch_gat_forward.3} parent=47 // pred_region
        _
      $region52: #{batch_gat_forward.3} parent=47 // pred_fallthru
        _
    $region48: #{batch_gat_forward.3} parent=5 // pred_fallthru
      _
    %p725 = scmp.le.s32.totalorder 2, %s13
    // Predicated region
    $region53: #{batch_gat_forward.3} parent=5 // pred_check
      %p726 = pneg %p725
    $region54: #{batch_gat_forward.3} parent=5 // pred_check_branch
      %728 = sbr.rel (%p726) target = $region56
    $region55: #{batch_gat_forward.3} parent=5 // pred_region
      %s729 = ssub.s32 %s13, 2
      // Predicated region
      $region57: #{batch_gat_forward.3} parent=55 // pred_check
        %p730 = pneg %p199
      $region58: #{batch_gat_forward.3} parent=55 // pred_check_branch
        %732 = sbr.rel (%p730) target = $region60
      $region59: #{batch_gat_forward.3} parent=55 // pred_region
        %p733 = scmp.lt.s32.totalorder %s19, 1
        %s734 = scalar_select %p733, %s19, 1
        %s735 = smul.addr %s734, 2
        %s736 = smul.addr %s735, 8
        %s737 = scalar_lea.vmem %s7, %s736
      $region60: #{batch_gat_forward.3} parent=55 // pred_fallthru
        _
    $region56: #{batch_gat_forward.3} parent=5 // pred_fallthru
      _
  $region6: #{batch_gat_forward.3} parent=0 // loop_footer
    %s17 = sadd.s32 1, %s13
  $region7: #{batch_gat_forward.3} parent=0 // loop_footer_branch
    %12 = sbr.rel target = $region3
  $region8: #{batch_gat_forward.3} parent=0 // loop_exit
    _

// kernel: batch_gat_forward.2
$region0: #{batch_gat_forward.2}
  #allocation0 [shape = 'u32[]', space=smem, size = 0x4, offset = 0x4, fixed_abs, tag = 'smem constant byte address 0x4 - core index']
  #allocation1 [shape = 'u32[144,128]{1,0:T(1,128)}', space=vmem, size = 0x12000, scoped, tag = 'internal scratch']
  %s0 = inlined_call_operand.vmem [shape: f32[2,16,28], index: 0, kind: input, shape index: {}]
  %s1 = inlined_call_operand.vmem [shape: f32[2,16,16], index: 1, kind: input, shape index: {}]
  %s2 = inlined_call_operand.vmem [shape: f32[28,64], index: 2, kind: input, shape index: {}]
  %s3 = inlined_call_operand.vmem [shape: f32[8,64,1], index: 3, kind: input, shape index: {}]
  %s4 = inlined_call_operand.vmem [shape: f32[8,1,64], index: 4, kind: input, shape index: {}]
  %s5 = inlined_call_operand.vmem [shape: f32[8,64,8], index: 5, kind: input, shape index: {}]
  %s6 = inlined_call_operand.vmem [shape: f32[1,64], index: 6, kind: input, shape index: {}]
  %s7 = inlined_call_operand.vmem [shape: f32[2,16,64], index: 7, kind: output, shape index: {}]
  %s8 = sld [smem:[#allocation0]]
  $region61: #{batch_gat_forward.2} parent=0
    _
  %s10 = ssub.s32 1, %s8
  %s11 = scalar_select 0, %s10, %s8
  loop: start=0, step=1, limit=4
  $region2: #{batch_gat_forward.2} parent=0 // loop_pre_header
    _
  $region3: #{batch_gat_forward.2} parent=0 // loop_header
    %s13 = sphi 0, %s17
    %p14 = scmp.ge.s32.totalorder %s13, 4
    %s23 = sphi 0, %s25
    %s26 = sphi 0, %s23
    %s27 = sphi 0, %s26
    %s43 = sphi 0, %s27
    %s49 = sphi 0, %s51
    %s52 = sphi 0, %s49
    %s53 = sphi 0, %s52
    %s69 = sphi 0, %s53
    %s73 = sphi 0, %s73
    %s75 = sphi 0, %s73
    %s76 = sphi 0, %s75
    %s90 = sphi 0, %s76
    %s94 = sphi 0, %s94
    %s96 = sphi 0, %s94
    %s97 = sphi 0, %s96
    %s111 = sphi 0, %s97
    %s115 = sphi 0, %s115
    %s117 = sphi 0, %s115
    %s118 = sphi 0, %s117
    %s132 = sphi 0, %s118
    %s136 = sphi 0, %s136
    %s138 = sphi 0, %s136
    %s139 = sphi 0, %s138
    %s153 = sphi 0, %s139
    %s157 = sphi 0, %s157
    %s159 = sphi 0, %s157
    %s160 = sphi 0, %s159
    %s174 = sphi 0, %s160
    %s180 = sphi 0, %s182
    %s183 = sphi 0, %s180
    %s184 = sphi 0, %s183
    %s200 = sphi 0, %s184
  $region4: #{batch_gat_forward.2} parent=0 // loop_header_branch
    %16 = sbr.rel (%p14) target = $region8
  $region5: #{batch_gat_forward.2} parent=0 // loop_body
    %s18 = ssub.s32 %s13, 1
    %s19 = ssub.s32 %s13, 2
    %s20 = sadd.s32 %s13, 1
    %s21 = ssub.s32 %s13, %s20
    %p22 = scmp.eq.s32.totalorder %s21, 0
    %s24 = sadd.s32 %s23, 1
    %s25 = scalar_select %p22, %s23, %s24
    %p28 = pneg %p22
    %p29 = scmp.eq.s32.totalorder %s13, 1
    %p30 = por %p28, %p29
    %p31 = scmp.ne.s32.totalorder %s23, %s26
    %p32 = scmp.eq.s32.totalorder %s13, 0
    %p33 = por %p31, %p32
    %p34 = scmp.ne.s32.totalorder %s23, %s26
    %p35 = scmp.eq.s32.totalorder %s18, 1
    %p36 = por %p34, %p35
    %p37 = scmp.ne.s32.totalorder %s26, %s27
    %p38 = scmp.eq.s32.totalorder %s18, 0
    %p39 = por %p37, %p38
    %p40 = scmp.ne.s32.totalorder %s26, %s27
    %p41 = scmp.eq.s32.totalorder %s19, 1
    %p42 = por %p40, %p41
    %p44 = scmp.ne.s32.totalorder %s27, %s43
    %p45 = scmp.eq.s32.totalorder %s19, 0
    %p46 = por %p44, %p45
    %s47 = ssub.s32 %s13, %s20
    %p48 = scmp.eq.s32.totalorder %s47, 0
    %s50 = sadd.s32 %s49, 1
    %s51 = scalar_select %p48, %s49, %s50
    %p54 = pneg %p48
    %p55 = scmp.eq.s32.totalorder %s13, 1
    %p56 = por %p54, %p55
    %p57 = scmp.ne.s32.totalorder %s49, %s52
    %p58 = scmp.eq.s32.totalorder %s13, 0
    %p59 = por %p57, %p58
    %p60 = scmp.ne.s32.totalorder %s49, %s52
    %p61 = scmp.eq.s32.totalorder %s18, 1
    %p62 = por %p60, %p61
    %p63 = scmp.ne.s32.totalorder %s52, %s53
    %p64 = scmp.eq.s32.totalorder %s18, 0
    %p65 = por %p63, %p64
    %p66 = scmp.ne.s32.totalorder %s52, %s53
    %p67 = scmp.eq.s32.totalorder %s19, 1
    %p68 = por %p66, %p67
    %p70 = scmp.ne.s32.totalorder %s53, %s69
    %p71 = scmp.eq.s32.totalorder %s19, 0
    %p72 = por %p70, %p71
    %s74 = sadd.s32 %s73, 1
    %p77 = scmp.eq.s32.totalorder %s13, 1
    %p78 = scmp.ne.s32.totalorder %s73, %s75
    %p79 = scmp.eq.s32.totalorder %s13, 0
    %p80 = por %p78, %p79
    %p81 = scmp.ne.s32.totalorder %s73, %s75
    %p82 = scmp.eq.s32.totalorder %s18, 1
    %p83 = por %p81, %p82
    %p84 = scmp.ne.s32.totalorder %s75, %s76
    %p85 = scmp.eq.s32.totalorder %s18, 0
    %p86 = por %p84, %p85
    %p87 = scmp.ne.s32.totalorder %s75, %s76
    %p88 = scmp.eq.s32.totalorder %s19, 1
    %p89 = por %p87, %p88
    %p91 = scmp.ne.s32.totalorder %s76, %s90
    %p92 = scmp.eq.s32.totalorder %s19, 0
    %p93 = por %p91, %p92
    %s95 = sadd.s32 %s94, 1
    %p98 = scmp.eq.s32.totalorder %s13, 1
    %p99 = scmp.ne.s32.totalorder %s94, %s96
    %p100 = scmp.eq.s32.totalorder %s13, 0
    %p101 = por %p99, %p100
    %p102 = scmp.ne.s32.totalorder %s94, %s96
    %p103 = scmp.eq.s32.totalorder %s18, 1
    %p104 = por %p102, %p103
    %p105 = scmp.ne.s32.totalorder %s96, %s97
    %p106 = scmp.eq.s32.totalorder %s18, 0
    %p107 = por %p105, %p106
    %p108 = scmp.ne.s32.totalorder %s96, %s97
    %p109 = scmp.eq.s32.totalorder %s19, 1
    %p110 = por %p108, %p109
    %p112 = scmp.ne.s32.totalorder %s97, %s111
    %p113 = scmp.eq.s32.totalorder %s19, 0
    %p114 = por %p112, %p113
    %s116 = sadd.s32 %s115, 1
    %p119 = scmp.eq.s32.totalorder %s13, 1
    %p120 = scmp.ne.s32.totalorder %s115, %s117
    %p121 = scmp.eq.s32.totalorder %s13, 0
    %p122 = por %p120, %p121
    %p123 = scmp.ne.s32.totalorder %s115, %s117
    %p124 = scmp.eq.s32.totalorder %s18, 1
    %p125 = por %p123, %p124
    %p126 = scmp.ne.s32.totalorder %s117, %s118
    %p127 = scmp.eq.s32.totalorder %s18, 0
    %p128 = por %p126, %p127
    %p129 = scmp.ne.s32.totalorder %s117, %s118
    %p130 = scmp.eq.s32.totalorder %s19, 1
    %p131 = por %p129, %p130
    %p133 = scmp.ne.s32.totalorder %s118, %s132
    %p134 = scmp.eq.s32.totalorder %s19, 0
    %p135 = por %p133, %p134
    %s137 = sadd.s32 %s136, 1
    %p140 = scmp.eq.s32.totalorder %s13, 1
    %p141 = scmp.ne.s32.totalorder %s136, %s138
    %p142 = scmp.eq.s32.totalorder %s13, 0
    %p143 = por %p141, %p142
    %p144 = scmp.ne.s32.totalorder %s136, %s138
    %p145 = scmp.eq.s32.totalorder %s18, 1
    %p146 = por %p144, %p145
    %p147 = scmp.ne.s32.totalorder %s138, %s139
    %p148 = scmp.eq.s32.totalorder %s18, 0
    %p149 = por %p147, %p148
    %p150 = scmp.ne.s32.totalorder %s138, %s139
    %p151 = scmp.eq.s32.totalorder %s19, 1
    %p152 = por %p150, %p151
    %p154 = scmp.ne.s32.totalorder %s139, %s153
    %p155 = scmp.eq.s32.totalorder %s19, 0
    %p156 = por %p154, %p155
    %s158 = sadd.s32 %s157, 1
    %p161 = scmp.eq.s32.totalorder %s13, 1
    %p162 = scmp.ne.s32.totalorder %s157, %s159
    %p163 = scmp.eq.s32.totalorder %s13, 0
    %p164 = por %p162, %p163
    %p165 = scmp.ne.s32.totalorder %s157, %s159
    %p166 = scmp.eq.s32.totalorder %s18, 1
    %p167 = por %p165, %p166
    %p168 = scmp.ne.s32.totalorder %s159, %s160
    %p169 = scmp.eq.s32.totalorder %s18, 0
    %p170 = por %p168, %p169
    %p171 = scmp.ne.s32.totalorder %s159, %s160
    %p172 = scmp.eq.s32.totalorder %s19, 1
    %p173 = por %p171, %p172
    %p175 = scmp.ne.s32.totalorder %s160, %s174
    %p176 = scmp.eq.s32.totalorder %s19, 0
    %p177 = por %p175, %p176
    %s178 = ssub.s32 %s13, %s20
    %p179 = scmp.eq.s32.totalorder %s178, 0
    %s181 = sadd.s32 %s180, 1
    %s182 = scalar_select %p179, %s180, %s181
    %p185 = pneg %p179
    %p186 = scmp.eq.s32.totalorder %s13, 1
    %p187 = por %p185, %p186
    %p188 = scmp.ne.s32.totalorder %s180, %s183
    %p189 = scmp.eq.s32.totalorder %s13, 0
    %p190 = por %p188, %p189
    %p191 = scmp.ne.s32.totalorder %s180, %s183
    %p192 = scmp.eq.s32.totalorder %s18, 1
    %p193 = por %p191, %p192
    %p194 = scmp.ne.s32.totalorder %s183, %s184
    %p195 = scmp.eq.s32.totalorder %s18, 0
    %p196 = por %p194, %p195
    %p197 = scmp.ne.s32.totalorder %s183, %s184
    %p198 = scmp.eq.s32.totalorder %s19, 1
    %p199 = por %p197, %p198
    %p201 = scmp.ne.s32.totalorder %s184, %s200
    %p202 = scmp.eq.s32.totalorder %s19, 0
    %p203 = por %p201, %p202
    %p204 = scmp.le.s32.totalorder 1, %s13
    %p205 = scmp.lt.s32.totalorder %s13, 3
    %p206 = pnand %p204, %p205
    %p207 = pneg %p206
    // Predicated region
    $region9: #{batch_gat_forward.2} parent=5 // pred_check
      _
    $region10: #{batch_gat_forward.2} parent=5 // pred_check_branch
      %209 = sbr.rel (%p206) target = $region12
    $region11: #{batch_gat_forward.2} parent=5 // pred_region
      %s210 = ssub.s32 %s13, 1
      // Predicated region
      $region13: #{batch_gat_forward.2} parent=11 // pred_check
        %p211 = pneg %p86
      $region14: #{batch_gat_forward.2} parent=11 // pred_check_branch
        %213 = sbr.rel (%p211) target = $region16
      $region15: #{batch_gat_forward.2} parent=11 // pred_region
        _
      $region16: #{batch_gat_forward.2} parent=11 // pred_fallthru
        _
      // Predicated region
      $region17: #{batch_gat_forward.2} parent=11 // pred_check
        %p214 = pneg %p107
      $region18: #{batch_gat_forward.2} parent=11 // pred_check_branch
        %216 = sbr.rel (%p214) target = $region20
      $region19: #{batch_gat_forward.2} parent=11 // pred_region
        _
      $region20: #{batch_gat_forward.2} parent=11 // pred_fallthru
        _
      // Predicated region
      $region21: #{batch_gat_forward.2} parent=11 // pred_check
        %p217 = pneg %p128
      $region22: #{batch_gat_forward.2} parent=11 // pred_check_branch
        %219 = sbr.rel (%p217) target = $region24
      $region23: #{batch_gat_forward.2} parent=11 // pred_region
        _
      $region24: #{batch_gat_forward.2} parent=11 // pred_fallthru
        _
      // Predicated region
      $region25: #{batch_gat_forward.2} parent=11 // pred_check
        %p220 = pneg %p149
      $region26: #{batch_gat_forward.2} parent=11 // pred_check_branch
        %222 = sbr.rel (%p220) target = $region28
      $region27: #{batch_gat_forward.2} parent=11 // pred_region
        _
      $region28: #{batch_gat_forward.2} parent=11 // pred_fallthru
        _
      // Predicated region
      $region29: #{batch_gat_forward.2} parent=11 // pred_check
        %p223 = pneg %p170
      $region30: #{batch_gat_forward.2} parent=11 // pred_check_branch
        %225 = sbr.rel (%p223) target = $region32
      $region31: #{batch_gat_forward.2} parent=11 // pred_region
        _
      $region32: #{batch_gat_forward.2} parent=11 // pred_fallthru
        _
    $region12: #{batch_gat_forward.2} parent=5 // pred_fallthru
      _
    %p226 = scmp.lt.s32.totalorder %s13, 2
    // Predicated region
    $region33: #{batch_gat_forward.2} parent=5 // pred_check
      %p227 = pneg %p226
    $region34: #{batch_gat_forward.2} parent=5 // pred_check_branch
      %229 = sbr.rel (%p227) target = $region36
    $region35: #{batch_gat_forward.2} parent=5 // pred_region
      // Predicated region
      $region37: #{batch_gat_forward.2} parent=35 // pred_check
        %p230 = pneg %p33
      $region38: #{batch_gat_forward.2} parent=35 // pred_check_branch
        %232 = sbr.rel (%p230) target = $region40
      $region39: #{batch_gat_forward.2} parent=35 // pred_region
        %p233 = scmp.lt.s32.totalorder %s13, 1
        %s234 = scalar_select %p233, %s13, 1
        %s235 = smul.addr %s234, 2
        %s236 = smul.addr %s235, 8
        %s237 = scalar_lea.vmem %s0, %s236
      $region40: #{batch_gat_forward.2} parent=35 // pred_fallthru
        _
      // Predicated region
      $region41: #{batch_gat_forward.2} parent=35 // pred_check
        %p238 = pneg %p59
      $region42: #{batch_gat_forward.2} parent=35 // pred_check_branch
        %240 = sbr.rel (%p238) target = $region44
      $region43: #{batch_gat_forward.2} parent=35 // pred_region
        %p241 = scmp.lt.s32.totalorder %s13, 1
        %s242 = scalar_select %p241, %s13, 1
        %s243 = smul.addr %s242, 2
        %s244 = smul.addr %s243, 8
        %s245 = scalar_lea.vmem %s1, %s244
      $region44: #{batch_gat_forward.2} parent=35 // pred_fallthru
        _
    $region36: #{batch_gat_forward.2} parent=5 // pred_fallthru
      _
    %p246 = scmp.le.s32.totalorder 1, %s13
    %p247 = scmp.lt.s32.totalorder %s13, 3
    %p248 = pnand %p246, %p247
    %p249 = pneg %p248
    // Predicated region
    $region45: #{batch_gat_forward.2} parent=5 // pred_check
      _
    $region46: #{batch_gat_forward.2} parent=5 // pred_check_branch
      %251 = sbr.rel (%p248) target = $region48
    $region47: #{batch_gat_forward.2} parent=5 // pred_region
      %s252 = ssub.s32 %s13, 1
      %p253 = scmp.lt.s32.totalorder %s18, 1
      %s254 = scalar_select %p253, %s18, 1
      %s255 = smul.addr %s254, 2
      %s256 = smul.addr %s255, 8
      %s257 = scalar_lea.vmem %s0, %s256
      %p258 = pneg %p39
      %p259 = pneg %p36
      %p260 = scmp.lt.s32.totalorder %s18, 1
      %s261 = scalar_select %p260, %s18, 1
      %s262 = smul.addr %s261, 2
      %s263 = smul.addr %s262, 8
      %s264 = scalar_lea.vmem %s1, %s263
      %p265 = pneg %p65
      %p266 = pneg %p62
      %p267 = pneg %p86
      %p268 = pneg %p83
      %p269 = pneg %p107
      %p270 = pneg %p104
      %p271 = pneg %p128
      %p272 = pneg %p125
      %p273 = pneg %p149
      %p274 = pneg %p146
      %p275 = pneg %p170
      %p276 = pneg %p167
      %p277 = pneg %p196
      %p278 = pneg %p193
      %p279 = scmp.lt.s32.totalorder %s18, 1
      %s280 = scalar_select %p279, %s18, 1
      %s281 = smul.addr %s280, 2
      %s282 = smul.addr %s281, 8
      %s283 = scalar_lea.vmem %s7, %s282
      %p284 = scmp.lt.s32.totalorder %s18, 1
      %s285 = scalar_select %p284, %s18, 1
      %s286 = smul.addr %s285, 2
      %s287 = smul.addr %s286, 8
      %s288 = scalar_lea.vmem %s0, %s287
      %p289 = scmp.lt.s32.totalorder %s18, 1
      %s290 = scalar_select %p289, %s18, 1
      %s291 = smul.addr %s290, 2
      %s292 = smul.addr %s291, 8
      %s293 = scalar_lea.vmem %s1, %s292
      %p294 = scmp.lt.s32.totalorder %s18, 1
      %s295 = scalar_select %p294, %s18, 1
      %s296 = smul.addr %s295, 2
      %s297 = smul.addr %s296, 8
      %s298 = scalar_lea.vmem %s7, %s297
      %v299 = vld [vmem:[%s288] sm:$0xff]
      %v300 = vld [vmem:[%s288 + $0x8] sm:$0xff]
      %v301 = vld [vmem:[%s293] sm:$0xff]
      %v302 = vld [vmem:[%s293 + $0x8] sm:$0xff]
      %v303 = vld [vmem:[%s2] sm:$0xff]
      %v304 = vld [vmem:[%s2 + $0x8] sm:$0xff]
      %v305 = vld [vmem:[%s2 + $0x10] sm:$0xff]
      %v306 = vld [vmem:[%s2 + $0x18] sm:$0xf]
      %vm307 = vcmask 228352
      %v309 = vsel %vm307, %v299, 0
      %v312 = vsel %vm307, %v300, 0
      %vm314 = vcmask 1043456
      %v316 = vsel %vm314, %v306, 0
      %318 = vmatprep.subr.mxu0 0.0
      %319 = vmatpush1.msra.mxu0 %v303
      %320 = vmatprep.subr.mxu0 0.0
      %321 = vmatpush1.msra.mxu0 %v304
      %322 = vmatprep.subr.mxu0 0.0
      %323 = vmatpush1.msra.mxu0 %v305
      %324 = vmatprep.subr.mxu0 0.0
      %325 = vmatpush1.msra.mxu0 %v316
      %326 = vmatprep.subr.mxu0 0.0
      %327 = vmatpush1.msra.mxu0 0.0
      %328 = vmatprep.subr.mxu0 0.0
      %329 = vmatpush1.msra.mxu0 0.0
      %330 = vmatprep.subr.mxu0 0.0
      %331 = vmatpush1.msra.mxu0 0.0
      %332 = vmatprep.subr.mxu0 0.0
      %333 = vmatpush1.msra.mxu0 0.0
      %334 = vmatprep.subr.mxu0 0.0
      %335 = vmatpush1.msra.mxu0 0.0
      %336 = vmatprep.subr.mxu0 0.0
      %337 = vmatpush1.msra.mxu0 0.0
      %338 = vmatprep.subr.mxu0 0.0
      %339 = vmatpush1.msra.mxu0 0.0
      %340 = vmatprep.subr.mxu0 0.0
      %341 = vmatpush1.msra.mxu0 0.0
      %342 = vmatprep.subr.mxu0 0.0
      %343 = vmatpush1.msra.mxu0 0.0
      %344 = vmatprep.subr.mxu0 0.0
      %345 = vmatpush1.msra.mxu0 0.0
      %346 = vmatprep.subr.mxu0 0.0
      %347 = vmatpush1.msra.mxu0 0.0
      %348 = vmatprep.subr.mxu0 0.0
      %349 = vmatpush1.msra.mxu0 0.0
      %350 = vmatprep.subr.mxu0 0.0
      %351 = vmatpush1.msra.mxu0 0.0
      %352 = vmatprep.subr.mxu0 0.0
      %353 = vmatpush1.msra.mxu0 0.0
      %354 = vmatprep.subr.mxu0 0.0
      %355 = vmatpush1.msra.mxu0 0.0
      %356 = vmatprep.subr.mxu0 0.0
      %357 = vmatpush1.msra.mxu0 0.0
      %358 = vmatprep.subr.mxu0 0.0
      %359 = vmatpush1.msra.mxu0 0.0
      %360 = vmatprep.subr.mxu0 0.0
      %361 = vmatpush1.msra.mxu0 0.0
      %362 = vmatprep.subr.mxu0 0.0
      %363 = vmatpush1.msra.mxu0 0.0
      %364 = vmatprep.subr.mxu0 0.0
      %365 = vmatpush1.msra.mxu0 0.0
      %366 = vmatprep.subr.mxu0 0.0
      %367 = vmatpush1.msra.mxu0 0.0
      %368 = vmatprep.subr.mxu0 0.0
      %369 = vmatpush1.msra.mxu0 0.0
      %370 = vmatprep.subr.mxu0 0.0
      %371 = vmatpush1.msra.mxu0 0.0
      %372 = vmatprep.subr.mxu0 0.0
      %373 = vmatpush1.msra.mxu0 0.0
      %374 = vmatprep.subr.mxu0 0.0
      %375 = vmatpush1.msra.mxu0 0.0
      %376 = vmatprep.subr.mxu0 0.0
      %377 = vmatpush1.msra.mxu0 0.0
      %378 = vmatprep.subr.mxu0 0.0
      %379 = vmatpush1.msra.mxu0 0.0
      %380 = vmatprep.subr.mxu0 0.0
      %381 = vmatpush1.msra.mxu0 0.0
      %382 = vmatprep.mubr.f32.mxu0 0.0
      %383 = vmatmul.mubr.f32.gmra.mrb[0].mxu0 %v309
      %v384 = vpop.f32.mrb[0].mxu0
      %v385 = vadd.f32 0.0, %v384
      %v386 = vpop.f32.mrb[0].mxu0
      %387 = vmatprep.mubr.f32.mxu0 0.0
      %388 = vmatmul.mubr.f32.gmra.mrb[0].mxu0 %v312
      %v389 = vpop.f32.mrb[0].mxu0
      %v390 = vadd.f32 0.0, %v389
      %v391 = vpop.f32.mrb[0].mxu0
      %392 = vdwg.mxu0
      %v393 = vtanh.pop %v385
      %v394 = vtanh.pop %v390
      %v395 = vld [vmem:[%s3] sm:$0xff]
      %v396 = vld [vmem:[%s3 + $0x8] sm:$0xff]
      %v397 = vld [vmem:[%s3 + $0x10] sm:$0xff]
      %v398 = vld [vmem:[%s3 + $0x18] sm:$0xff]
      %v399 = vld [vmem:[%s3 + $0x20] sm:$0xff]
      %v400 = vld [vmem:[%s3 + $0x28] sm:$0xff]
      %v401 = vld [vmem:[%s3 + $0x30] sm:$0xff]
      %v402 = vld [vmem:[%s3 + $0x38] sm:$0xff]
      %vm403 = vcmask 523264
      %v405 = vsel %vm403, %v393, 0
      %v408 = vsel %vm403, %v394, 0
      %410 = vmatprep.subr.mxu0 0.0
      %411 = vmatpush1.msra.mxu0 %v395
      %412 = vmatprep.subr.mxu0 0.0
      %413 = vmatpush1.msra.mxu0 %v396
      %414 = vmatprep.subr.mxu0 0.0
      %415 = vmatpush1.msra.mxu0 %v397
      %416 = vmatprep.subr.mxu0 0.0
      %417 = vmatpush1.msra.mxu0 %v398
      %418 = vmatprep.subr.mxu0 0.0
      %419 = vmatpush1.msra.mxu0 %v399
      %420 = vmatprep.subr.mxu0 0.0
      %421 = vmatpush1.msra.mxu0 %v400
      %422 = vmatprep.subr.mxu0 0.0
      %423 = vmatpush1.msra.mxu0 %v401
      %424 = vmatprep.subr.mxu0 0.0
      %425 = vmatpush1.msra.mxu0 %v402
      %426 = vmatprep.subr.mxu0 0.0
      %427 = vmatpush1.msra.mxu0 0.0
      %428 = vmatprep.subr.mxu0 0.0
      %429 = vmatpush1.msra.mxu0 0.0
      %430 = vmatprep.subr.mxu0 0.0
      %431 = vmatpush1.msra.mxu0 0.0
      %432 = vmatprep.subr.mxu0 0.0
      %433 = vmatpush1.msra.mxu0 0.0
      %434 = vmatprep.subr.mxu0 0.0
      %435 = vmatpush1.msra.mxu0 0.0
      %436 = vmatprep.subr.mxu0 0.0
      %437 = vmatpush1.msra.mxu0 0.0
      %438 = vmatprep.subr.mxu0 0.0
      %439 = vmatpush1.msra.mxu0 0.0
      %440 = vmatprep.subr.mxu0 0.0
      %441 = vmatpush1.msra.mxu0 0.0
      %442 = vmatprep.subr.mxu0 0.0
      %443 = vmatpush1.msra.mxu0 0.0
      %444 = vmatprep.subr.mxu0 0.0
      %445 = vmatpush1.msra.mxu0 0.0
      %446 = vmatprep.subr.mxu0 0.0
      %447 = vmatpush1.msra.mxu0 0.0
      %448 = vmatprep.subr.mxu0 0.0
      %449 = vmatpush1.msra.mxu0 0.0
      %450 = vmatprep.subr.mxu0 0.0
      %451 = vmatpush1.msra.mxu0 0.0
      %452 = vmatprep.subr.mxu0 0.0
      %453 = vmatpush1.msra.mxu0 0.0
      %454 = vmatprep.subr.mxu0 0.0
      %455 = vmatpush1.msra.mxu0 0.0
      %456 = vmatprep.subr.mxu0 0.0
      %457 = vmatpush1.msra.mxu0 0.0
      %458 = vmatprep.subr.mxu0 0.0
      %459 = vmatpush1.msra.mxu0 0.0
      %460 = vmatprep.subr.mxu0 0.0
      %461 = vmatpush1.msra.mxu0 0.0
      %462 = vmatprep.subr.mxu0 0.0
      %463 = vmatpush1.msra.mxu0 0.0
      %464 = vmatprep.subr.mxu0 0.0
      %465 = vmatpush1.msra.mxu0 0.0
      %466 = vmatprep.subr.mxu0 0.0
      %467 = vmatpush1.msra.mxu0 0.0
      %468 = vmatprep.subr.mxu0 0.0
      %469 = vmatpush1.msra.mxu0 0.0
      %470 = vmatprep.subr.mxu0 0.0
      %471 = vmatpush1.msra.mxu0 0.0
      %472 = vmatprep.subr.mxu0 0.0
      %473 = vmatpush1.msra.mxu0 0.0
      %474 = vmatprep.mubr.f32.mxu0 0.0
      %475 = vmatmul.mubr.f32.gmra.mrb[0].mxu0 %v405
      %v476 = vpop.f32.mrb[0].mxu0
      %v477 = vadd.f32 0.0, %v476
      %v478 = vpop.f32.mrb[0].mxu0
      %479 = vmatprep.mubr.f32.mxu0 0.0
      %480 = vmatmul.mubr.f32.gmra.mrb[0].mxu0 %v408
      %v481 = vpop.f32.mrb[0].mxu0
      %v482 = vadd.f32 0.0, %v481
      %v483 = vpop.f32.mrb[0].mxu0
      %484 = vdwg.mxu0
      %v485 = vld [vmem:[%s4] sm:$0x1]
      %v487 = vsel %vm403, %v485, 0
      %489 = vmatprep.subr.mxu0 0.0
      %490 = vmatpush1.xpose.msra.mxu0 %v405
      %491 = vmatprep.subr.mxu0 0.0
      %492 = vmatpush1.xpose.msra.mxu0 %v408
      %493 = vmatprep.subr.mxu0 0.0
      %494 = vmatpush1.xpose.msra.mxu0 0.0
      %495 = vmatprep.subr.mxu0 0.0
      %496 = vmatpush1.xpose.msra.mxu0 0.0
      %497 = vmatprep.subr.mxu0 0.0
      %498 = vmatpush1.xpose.msra.mxu0 0.0
      %499 = vmatprep.subr.mxu0 0.0
      %500 = vmatpush1.xpose.msra.mxu0 0.0
      %501 = vmatprep.subr.mxu0 0.0
      %502 = vmatpush1.xpose.msra.mxu0 0.0
      %503 = vmatprep.subr.mxu0 0.0
      %504 = vmatpush1.xpose.msra.mxu0 0.0
      %505 = vmatprep.subr.mxu0 0.0
      %506 = vmatpush1.xpose.msra.mxu0 0.0
      %507 = vmatprep.subr.mxu0 0.0
      %508 = vmatpush1.xpose.msra.mxu0 0.0
      %509 = vmatprep.subr.mxu0 0.0
      %510 = vmatpush1.xpose.msra.mxu0 0.0
      %511 = vmatprep.subr.mxu0 0.0
      %512 = vmatpush1.xpose.msra.mxu0 0.0
      %513 = vmatprep.subr.mxu0 0.0
      %514 = vmatpush1.xpose.msra.mxu0 0.0
      %515 = vmatprep.subr.mxu0 0.0
      %516 = vmatpush1.xpose.msra.mxu0 0.0
      %517 = vmatprep.subr.mxu0 0.0
      %518 = vmatpush1.xpose.msra.mxu0 0.0
      %519 = vmatprep.subr.mxu0 0.0
      %520 = vmatpush1.xpose.msra.mxu0 0.0
      %521 = vmatprep.subr.mxu0 0.0
      %522 = vmatpush1.xpose.msra.mxu0 0.0
      %523 = vmatprep.subr.mxu0 0.0
      %524 = vmatpush1.xpose.msra.mxu0 0.0
      %525 = vmatprep.subr.mxu0 0.0
      %526 = vmatpush1.xpose.msra.mxu0 0.0
      %527 = vmatprep.subr.mxu0 0.0
      %528 = vmatpush1.xpose.msra.mxu0 0.0
      %529 = vmatprep.subr.mxu0 0.0
      %530 = vmatpush1.xpose.msra.mxu0 0.0
      %531 = vmatprep.subr.mxu0 0.0
      %532 = vmatpush1.xpose.msra.mxu0 0.0
      %533 = vmatprep.subr.mxu0 0.0
      %534 = vmatpush1.xpose.msra.mxu0 0.0
      %535 = vmatprep.subr.mxu0 0.0
      %536 = vmatpush1.xpose.msra.mxu0 0.0
      %537 = vmatprep.subr.mxu0 0.0
      %538 = vmatpush1.xpose.msra.mxu0 0.0
      %539 = vmatprep.subr.mxu0 0.0
      %540 = vmatpush1.xpose.msra.mxu0 0.0
      %541 = vmatprep.subr.mxu0 0.0
      %542 = vmatpush1.xpose.msra.mxu0 0.0
      %543 = vmatprep.subr.mxu0 0.0
      %544 = vmatpush1.xpose.msra.mxu0 0.0
      %545 = vmatprep.subr.mxu0 0.0
      %546 = vmatpush1.xpose.msra.mxu0 0.0
      %547 = vmatprep.subr.mxu0 0.0
      %548 = vmatpush1.xpose.msra.mxu0 0.0
      %549 = vmatprep.subr.mxu0 0.0
      %550 = vmatpush1.xpose.msra.mxu0 0.0
      %551 = vmatprep.subr.mxu0 0.0
      %552 = vmatpush1.xpose.msra.mxu0 0.0
      %553 = vmatprep.mubr.f32.mxu0 0.0
      %554 = vmatmul.mubr.f32.gmra.mrb[0].mxu0 %v487
      %v555 = vpop.f32.mrb[0].mxu0
      %v556 = vadd.f32 0.0, %v555
      %v557 = vpop.f32.mrb[0].mxu0
      %558 = vdwg.mxu0
      %560 = vset.pattern.permute.xlu0 0
      %561 = vperm.xlu0 %560, %v477
      %v562 = vpop.permute.xlu0 %561
      %565 = vset.pattern.permute.xlu0 0
      %566 = vperm.xlu0 %565, %v482
      %v567 = vpop.permute.xlu0 %566
      %v569 = vlaneseq
      %v570 = vshrl.u32 %v569, 7
      %v571 = vsub.s32 0, %v570
      %v572 = vrot.slane %v556, %v571
      %v573 = vadd.f32 %v562, %v572
      %v574 = vadd.f32 %v567, %v572
      %v575 = vmul.f32 %v573, 0.2
      %v576 = vmul.f32 %v574, 0.2
      %v577 = vmax.f32 %v573, %v575
      %v578 = vmax.f32 %v574, %v576
      %vm579 = vcmp.gt.f32.partialorder %v301, 0.0
      %vm580 = vcmp.gt.f32.partialorder %v302, 0.0
      %v581 = vsel %vm579, %v577, -1e+30
      %v582 = vsel %vm580, %v578, -1e+30
      %vm583 = vcmask 130048
      %v584 = vsel %vm583, %v581, -inf
      %585 = vmax.xlane.f32.xlu0 %v584
      %v586 = vpop.xlane.xlu0 %585
      %v587 = vsel %vm583, %v582, -inf
      %588 = vmax.xlane.f32.xlu0 %v587
      %v589 = vpop.xlane.xlu0 %588
      %v590 = vsub.f32 %v581, %v586
      %v591 = vsub.f32 %v582, %v589
      %v592 = vmul.f32 %v590, 1.442695
      %v593 = vpow.pop %v592
      %v594 = vmul.f32 %v591, 1.442695
      %v595 = vpow.pop %v594
      %v596 = vsel %vm583, %v593, 0.0
      %597 = vadd.xlane.f32.xlu0 %v596
      %v598 = vpop.xlane.xlu0 %597
      %v599 = vsel %vm583, %v595, 0.0
      %600 = vadd.xlane.f32.xlu0 %v599
      %v601 = vpop.xlane.xlu0 %600
      %v602 = vrcp.pop %v598
      %v603 = vrcp.pop %v601
      %v604 = vmul.f32 %v593, %v602
      %v605 = vmul.f32 %v595, %v603
      %v606 = vld [vmem:[%s5] sm:$0xff]
      %v607 = vld [vmem:[%s5 + $0x8] sm:$0xff]
      %v608 = vld [vmem:[%s5 + $0x10] sm:$0xff]
      %v609 = vld [vmem:[%s5 + $0x18] sm:$0xff]
      %v610 = vld [vmem:[%s5 + $0x20] sm:$0xff]
      %v611 = vld [vmem:[%s5 + $0x28] sm:$0xff]
      %v612 = vld [vmem:[%s5 + $0x30] sm:$0xff]
      %v613 = vld [vmem:[%s5 + $0x38] sm:$0xff]
      %v615 = vsel %vm403, %v385, 0
      %v618 = vsel %vm403, %v390, 0
      %620 = vmatprep.subr.mxu0 0.0
      %621 = vmatpush1.msra.mxu0 %v606
      %622 = vmatprep.subr.mxu0 0.0
      %623 = vmatpush1.msra.mxu0 %v607
      %624 = vmatprep.subr.mxu0 0.0
      %625 = vmatpush1.msra.mxu0 %v608
      %626 = vmatprep.subr.mxu0 0.0
      %627 = vmatpush1.msra.mxu0 %v609
      %628 = vmatprep.subr.mxu0 0.0
      %629 = vmatpush1.msra.mxu0 %v610
      %630 = vmatprep.subr.mxu0 0.0
      %631 = vmatpush1.msra.mxu0 %v611
      %632 = vmatprep.subr.mxu0 0.0
      %633 = vmatpush1.msra.mxu0 %v612
      %634 = vmatprep.subr.mxu0 0.0
      %635 = vmatpush1.msra.mxu0 %v613
      %636 = vmatprep.subr.mxu0 0.0
      %637 = vmatpush1.msra.mxu0 0.0
      %638 = vmatprep.subr.mxu0 0.0
      %639 = vmatpush1.msra.mxu0 0.0
      %640 = vmatprep.subr.mxu0 0.0
      %641 = vmatpush1.msra.mxu0 0.0
      %642 = vmatprep.subr.mxu0 0.0
      %643 = vmatpush1.msra.mxu0 0.0
      %644 = vmatprep.subr.mxu0 0.0
      %645 = vmatpush1.msra.mxu0 0.0
      %646 = vmatprep.subr.mxu0 0.0
      %647 = vmatpush1.msra.mxu0 0.0
      %648 = vmatprep.subr.mxu0 0.0
      %649 = vmatpush1.msra.mxu0 0.0
      %650 = vmatprep.subr.mxu0 0.0
      %651 = vmatpush1.msra.mxu0 0.0
      %652 = vmatprep.subr.mxu0 0.0
      %653 = vmatpush1.msra.mxu0 0.0
      %654 = vmatprep.subr.mxu0 0.0
      %655 = vmatpush1.msra.mxu0 0.0
      %656 = vmatprep.subr.mxu0 0.0
      %657 = vmatpush1.msra.mxu0 0.0
      %658 = vmatprep.subr.mxu0 0.0
      %659 = vmatpush1.msra.mxu0 0.0
      %660 = vmatprep.subr.mxu0 0.0
      %661 = vmatpush1.msra.mxu0 0.0
      %662 = vmatprep.subr.mxu0 0.0
      %663 = vmatpush1.msra.mxu0 0.0
      %664 = vmatprep.subr.mxu0 0.0
      %665 = vmatpush1.msra.mxu0 0.0
      %666 = vmatprep.subr.mxu0 0.0
      %667 = vmatpush1.msra.mxu0 0.0
      %668 = vmatprep.subr.mxu0 0.0
      %669 = vmatpush1.msra.mxu0 0.0
      %670 = vmatprep.subr.mxu0 0.0
      %671 = vmatpush1.msra.mxu0 0.0
      %672 = vmatprep.subr.mxu0 0.0
      %673 = vmatpush1.msra.mxu0 0.0
      %674 = vmatprep.subr.mxu0 0.0
      %675 = vmatpush1.msra.mxu0 0.0
      %676 = vmatprep.subr.mxu0 0.0
      %677 = vmatpush1.msra.mxu0 0.0
      %678 = vmatprep.subr.mxu0 0.0
      %679 = vmatpush1.msra.mxu0 0.0
      %680 = vmatprep.subr.mxu0 0.0
      %681 = vmatpush1.msra.mxu0 0.0
      %682 = vmatprep.subr.mxu0 0.0
      %683 = vmatpush1.msra.mxu0 0.0
      %684 = vmatprep.mubr.f32.mxu0 0.0
      %685 = vmatmul.mubr.f32.gmra.mrb[0].mxu0 %v615
      %v686 = vpop.f32.mrb[0].mxu0
      %v687 = vadd.f32 0.0, %v686
      %v688 = vpop.f32.mrb[0].mxu0
      %689 = vmatprep.mubr.f32.mxu0 0.0
      %690 = vmatmul.mubr.f32.gmra.mrb[0].mxu0 %v618
      %v691 = vpop.f32.mrb[0].mxu0
      %v692 = vadd.f32 0.0, %v691
      %v693 = vpop.f32.mrb[0].mxu0
      %694 = vdwg.mxu0
      %v696 = vsel %vm583, %v604, 0
      %v699 = vsel %vm583, %v605, 0
      %701 = vmatprep.subr.mxu0 0.0
      %702 = vmatpush1.msra.mxu0 %v687
      %703 = vmatprep.subr.mxu0 0.0
      %704 = vmatpush1.msra.mxu0 %v692
      %705 = vmatprep.subr.mxu0 0.0
      %706 = vmatpush1.msra.mxu0 0.0
      %707 = vmatprep.subr.mxu0 0.0
      %708 = vmatpush1.msra.mxu0 0.0
      %709 = vmatprep.subr.mxu0 0.0
      %710 = vmatpush1.msra.mxu0 0.0
      %711 = vmatprep.subr.mxu0 0.0
      %712 = vmatpush1.msra.mxu0 0.0
      %713 = vmatprep.subr.mxu0 0.0
      %714 = vmatpush1.msra.mxu0 0.0
      %715 = vmatprep.subr.mxu0 0.0
      %716 = vmatpush1.msra.mxu0 0.0
      %717 = vmatprep.subr.mxu0 0.0
      %718 = vmatpush1.msra.mxu0 0.0
      %719 = vmatprep.subr.mxu0 0.0
      %720 = vmatpush1.msra.mxu0 0.0
      %721 = vmatprep.subr.mxu0 0.0
      %722 = vmatpush1.msra.mxu0 0.0
      %723 = vmatprep.subr.mxu0 0.0
      %724 = vmatpush1.msra.mxu0 0.0
      %725 = vmatprep.subr.mxu0 0.0
      %726 = vmatpush1.msra.mxu0 0.0
      %727 = vmatprep.subr.mxu0 0.0
      %728 = vmatpush1.msra.mxu0 0.0
      %729 = vmatprep.subr.mxu0 0.0
      %730 = vmatpush1.msra.mxu0 0.0
      %731 = vmatprep.subr.mxu0 0.0
      %732 = vmatpush1.msra.mxu0 0.0
      %733 = vmatprep.subr.mxu0 0.0
      %734 = vmatpush1.msra.mxu0 0.0
      %735 = vmatprep.subr.mxu0 0.0
      %736 = vmatpush1.msra.mxu0 0.0
      %737 = vmatprep.subr.mxu0 0.0
      %738 = vmatpush1.msra.mxu0 0.0
      %739 = vmatprep.subr.mxu0 0.0
      %740 = vmatpush1.msra.mxu0 0.0
      %741 = vmatprep.subr.mxu0 0.0
      %742 = vmatpush1.msra.mxu0 0.0
      %743 = vmatprep.subr.mxu0 0.0
      %744 = vmatpush1.msra.mxu0 0.0
      %745 = vmatprep.subr.mxu0 0.0
      %746 = vmatpush1.msra.mxu0 0.0
      %747 = vmatprep.subr.mxu0 0.0
      %748 = vmatpush1.msra.mxu0 0.0
      %749 = vmatprep.subr.mxu0 0.0
      %750 = vmatpush1.msra.mxu0 0.0
      %751 = vmatprep.subr.mxu0 0.0
      %752 = vmatpush1.msra.mxu0 0.0
      %753 = vmatprep.subr.mxu0 0.0
      %754 = vmatpush1.msra.mxu0 0.0
      %755 = vmatprep.subr.mxu0 0.0
      %756 = vmatpush1.msra.mxu0 0.0
      %757 = vmatprep.subr.mxu0 0.0
      %758 = vmatpush1.msra.mxu0 0.0
      %759 = vmatprep.subr.mxu0 0.0
      %760 = vmatpush1.msra.mxu0 0.0
      %761 = vmatprep.subr.mxu0 0.0
      %762 = vmatpush1.msra.mxu0 0.0
      %763 = vmatprep.subr.mxu0 0.0
      %764 = vmatpush1.msra.mxu0 0.0
      %765 = vmatprep.mubr.f32.mxu0 0.0
      %766 = vmatmul.mubr.f32.gmra.mrb[0].mxu0 %v696
      %v767 = vpop.f32.mrb[0].mxu0
      %v768 = vadd.f32 0.0, %v767
      %v769 = vpop.f32.mrb[0].mxu0
      %770 = vmatprep.mubr.f32.mxu0 0.0
      %771 = vmatmul.mubr.f32.gmra.mrb[0].mxu0 %v699
      %v772 = vpop.f32.mrb[0].mxu0
      %v773 = vadd.f32 0.0, %v772
      %v774 = vpop.f32.mrb[0].mxu0
      %775 = vdwg.mxu0
      %s776 = scalar_lea.vmem %s3, 64
      %v777 = vld [vmem:[%s776] sm:$0xff]
      %v778 = vld [vmem:[%s776 + $0x8] sm:$0xff]
      %v779 = vld [vmem:[%s776 + $0x10] sm:$0xff]
      %v780 = vld [vmem:[%s776 + $0x18] sm:$0xff]
      %v781 = vld [vmem:[%s776 + $0x20] sm:$0xff]
      %v782 = vld [vmem:[%s776 + $0x28] sm:$0xff]
      %v783 = vld [vmem:[%s776 + $0x30] sm:$0xff]
      %v784 = vld [vmem:[%s776 + $0x38] sm:$0xff]
      %785 = vmatprep.subr.mxu0 0.0
      %786 = vmatpush1.msra.mxu0 %v777
      %787 = vmatprep.subr.mxu0 0.0
      %788 = vmatpush1.msra.mxu0 %v778
      %789 = vmatprep.subr.mxu0 0.0
      %790 = vmatpush1.msra.mxu0 %v779
      %791 = vmatprep.subr.mxu0 0.0
      %792 = vmatpush1.msra.mxu0 %v780
      %793 = vmatprep.subr.mxu0 0.0
      %794 = vmatpush1.msra.mxu0 %v781
      %795 = vmatprep.subr.mxu0 0.0
      %796 = vmatpush1.msra.mxu0 %v782
      %797 = vmatprep.subr.mxu0 0.0
      %798 = vmatpush1.msra.mxu0 %v783
      %799 = vmatprep.subr.mxu0 0.0
      %800 = vmatpush1.msra.mxu0 %v784
      %801 = vmatprep.subr.mxu0 0.0
      %802 = vmatpush1.msra.mxu0 0.0
      %803 = vmatprep.subr.mxu0 0.0
      %804 = vmatpush1.msra.mxu0 0.0
      %805 = vmatprep.subr.mxu0 0.0
      %806 = vmatpush1.msra.mxu0 0.0
      %807 = vmatprep.subr.mxu0 0.0
      %808 = vmatpush1.msra.mxu0 0.0
      %809 = vmatprep.subr.mxu0 0.0
      %810 = vmatpush1.msra.mxu0 0.0
      %811 = vmatprep.subr.mxu0 0.0
      %812 = vmatpush1.msra.mxu0 0.0
      %813 = vmatprep.subr.mxu0 0.0
      %814 = vmatpush1.msra.mxu0 0.0
      %815 = vmatprep.subr.mxu0 0.0
      %816 = vmatpush1.msra.mxu0 0.0
      %817 = vmatprep.subr.mxu0 0.0
      %818 = vmatpush1.msra.mxu0 0.0
      %819 = vmatprep.subr.mxu0 0.0
      %820 = vmatpush1.msra.mxu0 0.0
      %821 = vmatprep.subr.mxu0 0.0
      %822 = vmatpush1.msra.mxu0 0.0
      %823 = vmatprep.subr.mxu0 0.0
      %824 = vmatpush1.msra.mxu0 0.0
      %825 = vmatprep.subr.mxu0 0.0
      %826 = vmatpush1.msra.mxu0 0.0
      %827 = vmatprep.subr.mxu0 0.0
      %828 = vmatpush1.msra.mxu0 0.0
      %829 = vmatprep.subr.mxu0 0.0
      %830 = vmatpush1.msra.mxu0 0.0
      %831 = vmatprep.subr.mxu0 0.0
      %832 = vmatpush1.msra.mxu0 0.0
      %833 = vmatprep.subr.mxu0 0.0
      %834 = vmatpush1.msra.mxu0 0.0
      %835 = vmatprep.subr.mxu0 0.0
      %836 = vmatpush1.msra.mxu0 0.0
      %837 = vmatprep.subr.mxu0 0.0
      %838 = vmatpush1.msra.mxu0 0.0
      %839 = vmatprep.subr.mxu0 0.0
      %840 = vmatpush1.msra.mxu0 0.0
      %841 = vmatprep.subr.mxu0 0.0
      %842 = vmatpush1.msra.mxu0 0.0
      %843 = vmatprep.subr.mxu0 0.0
      %844 = vmatpush1.msra.mxu0 0.0
      %845 = vmatprep.subr.mxu0 0.0
      %846 = vmatpush1.msra.mxu0 0.0
      %847 = vmatprep.subr.mxu0 0.0
      %848 = vmatpush1.msra.mxu0 0.0
      %849 = vmatprep.mubr.f32.mxu0 0.0
      %850 = vmatmul.mubr.f32.gmra.mrb[0].mxu0 %v405
      %v851 = vpop.f32.mrb[0].mxu0
      %v852 = vadd.f32 0.0, %v851
      %v853 = vpop.f32.mrb[0].mxu0
      %854 = vmatprep.mubr.f32.mxu0 0.0
      %855 = vmatmul.mubr.f32.gmra.mrb[0].mxu0 %v408
      %v856 = vpop.f32.mrb[0].mxu0
      %v857 = vadd.f32 0.0, %v856
      %v858 = vpop.f32.mrb[0].mxu0
      %859 = vdwg.mxu0
      %s860 = scalar_lea.vmem %s4, 1
      %v861 = vld [vmem:[%s860] sm:$0x1]
      %v863 = vsel %vm403, %v861, 0
      %865 = vmatprep.subr.mxu0 0.0
      %866 = vmatpush1.xpose.msra.mxu0 %v405
      %867 = vmatprep.subr.mxu0 0.0
      %868 = vmatpush1.xpose.msra.mxu0 %v408
      %869 = vmatprep.subr.mxu0 0.0
      %870 = vmatpush1.xpose.msra.mxu0 0.0
      %871 = vmatprep.subr.mxu0 0.0
      %872 = vmatpush1.xpose.msra.mxu0 0.0
      %873 = vmatprep.subr.mxu0 0.0
      %874 = vmatpush1.xpose.msra.mxu0 0.0
      %875 = vmatprep.subr.mxu0 0.0
      %876 = vmatpush1.xpose.msra.mxu0 0.0
      %877 = vmatprep.subr.mxu0 0.0
      %878 = vmatpush1.xpose.msra.mxu0 0.0
      %879 = vmatprep.subr.mxu0 0.0
      %880 = vmatpush1.xpose.msra.mxu0 0.0
      %881 = vmatprep.subr.mxu0 0.0
      %882 = vmatpush1.xpose.msra.mxu0 0.0
      %883 = vmatprep.subr.mxu0 0.0
      %884 = vmatpush1.xpose.msra.mxu0 0.0
      %885 = vmatprep.subr.mxu0 0.0
      %886 = vmatpush1.xpose.msra.mxu0 0.0
      %887 = vmatprep.subr.mxu0 0.0
      %888 = vmatpush1.xpose.msra.mxu0 0.0
      %889 = vmatprep.subr.mxu0 0.0
      %890 = vmatpush1.xpose.msra.mxu0 0.0
      %891 = vmatprep.subr.mxu0 0.0
      %892 = vmatpush1.xpose.msra.mxu0 0.0
      %893 = vmatprep.subr.mxu0 0.0
      %894 = vmatpush1.xpose.msra.mxu0 0.0
      %895 = vmatprep.subr.mxu0 0.0
      %896 = vmatpush1.xpose.msra.mxu0 0.0
      %897 = vmatprep.subr.mxu0 0.0
      %898 = vmatpush1.xpose.msra.mxu0 0.0
      %899 = vmatprep.subr.mxu0 0.0
      %900 = vmatpush1.xpose.msra.mxu0 0.0
      %901 = vmatprep.subr.mxu0 0.0
      %902 = vmatpush1.xpose.msra.mxu0 0.0
      %903 = vmatprep.subr.mxu0 0.0
      %904 = vmatpush1.xpose.msra.mxu0 0.0
      %905 = vmatprep.subr.mxu0 0.0
      %906 = vmatpush1.xpose.msra.mxu0 0.0
      %907 = vmatprep.subr.mxu0 0.0
      %908 = vmatpush1.xpose.msra.mxu0 0.0
      %909 = vmatprep.subr.mxu0 0.0
      %910 = vmatpush1.xpose.msra.mxu0 0.0
      %911 = vmatprep.subr.mxu0 0.0
      %912 = vmatpush1.xpose.msra.mxu0 0.0
      %913 = vmatprep.subr.mxu0 0.0
      %914 = vmatpush1.xpose.msra.mxu0 0.0
      %915 = vmatprep.subr.mxu0 0.0
      %916 = vmatpush1.xpose.msra.mxu0 0.0
      %917 = vmatprep.subr.mxu0 0.0
      %918 = vmatpush1.xpose.msra.mxu0 0.0
      %919 = vmatprep.subr.mxu0 0.0
      %920 = vmatpush1.xpose.msra.mxu0 0.0
      %921 = vmatprep.subr.mxu0 0.0
      %922 = vmatpush1.xpose.msra.mxu0 0.0
      %923 = vmatprep.subr.mxu0 0.0
      %924 = vmatpush1.xpose.msra.mxu0 0.0
      %925 = vmatprep.subr.mxu0 0.0
      %926 = vmatpush1.xpose.msra.mxu0 0.0
      %927 = vmatprep.subr.mxu0 0.0
      %928 = vmatpush1.xpose.msra.mxu0 0.0
      %929 = vmatprep.mubr.f32.mxu0 0.0
      %930 = vmatmul.mubr.f32.gmra.mrb[0].mxu0 %v863
      %v931 = vpop.f32.mrb[0].mxu0
      %v932 = vadd.f32 0.0, %v931
      %v933 = vpop.f32.mrb[0].mxu0
      %934 = vdwg.mxu0
      %936 = vset.pattern.permute.xlu0 0
      %937 = vperm.xlu0 %936, %v852
      %v938 = vpop.permute.xlu0 %937
      %941 = vset.pattern.permute.xlu0 0
      %942 = vperm.xlu0 %941, %v857
      %v943 = vpop.permute.xlu0 %942
      %v945 = vlaneseq
      %v946 = vshrl.u32 %v945, 7
      %v947 = vsub.s32 0, %v946
      %v948 = vrot.slane %v932, %v947
      %v949 = vadd.f32 %v938, %v948
      %v950 = vadd.f32 %v943, %v948
      %v951 = vmul.f32 %v949, 0.2
      %v952 = vmul.f32 %v950, 0.2
      %v953 = vmax.f32 %v949, %v951
      %v954 = vmax.f32 %v950, %v952
      %v955 = vsel %vm579, %v953, -1e+30
      %v956 = vsel %vm580, %v954, -1e+30
      %v957 = vsel %vm583, %v955, -inf
      %958 = vmax.xlane.f32.xlu0 %v957
      %v959 = vpop.xlane.xlu0 %958
      %v960 = vsel %vm583, %v956, -inf
      %961 = vmax.xlane.f32.xlu0 %v960
      %v962 = vpop.xlane.xlu0 %961
      %v963 = vsub.f32 %v955, %v959
      %v964 = vsub.f32 %v956, %v962
      %v965 = vmul.f32 %v963, 1.442695
      %v966 = vpow.pop %v965
      %v967 = vmul.f32 %v964, 1.442695
      %v968 = vpow.pop %v967
      %v969 = vsel %vm583, %v966, 0.0
      %970 = vadd.xlane.f32.xlu0 %v969
      %v971 = vpop.xlane.xlu0 %970
      %v972 = vsel %vm583, %v968, 0.0
      %973 = vadd.xlane.f32.xlu0 %v972
      %v974 = vpop.xlane.xlu0 %973
      %v975 = vrcp.pop %v971
      %v976 = vrcp.pop %v974
      %v977 = vmul.f32 %v966, %v975
      %v978 = vmul.f32 %v968, %v976
      %s979 = scalar_lea.vmem %s5, 64
      %v980 = vld [vmem:[%s979] sm:$0xff]
      %v981 = vld [vmem:[%s979 + $0x8] sm:$0xff]
      %v982 = vld [vmem:[%s979 + $0x10] sm:$0xff]
      %v983 = vld [vmem:[%s979 + $0x18] sm:$0xff]
      %v984 = vld [vmem:[%s979 + $0x20] sm:$0xff]
      %v985 = vld [vmem:[%s979 + $0x28] sm:$0xff]
      %v986 = vld [vmem:[%s979 + $0x30] sm:$0xff]
      %v987 = vld [vmem:[%s979 + $0x38] sm:$0xff]
      %988 = vmatprep.subr.mxu0 0.0
      %989 = vmatpush1.msra.mxu0 %v980
      %990 = vmatprep.subr.mxu0 0.0
      %991 = vmatpush1.msra.mxu0 %v981
      %992 = vmatprep.subr.mxu0 0.0
      %993 = vmatpush1.msra.mxu0 %v982
      %994 = vmatprep.subr.mxu0 0.0
      %995 = vmatpush1.msra.mxu0 %v983
      %996 = vmatprep.subr.mxu0 0.0
      %997 = vmatpush1.msra.mxu0 %v984
      %998 = vmatprep.subr.mxu0 0.0
      %999 = vmatpush1.msra.mxu0 %v985
      %1000 = vmatprep.subr.mxu0 0.0
      %1001 = vmatpush1.msra.mxu0 %v986
      %1002 = vmatprep.subr.mxu0 0.0
      %1003 = vmatpush1.msra.mxu0 %v987
      %1004 = vmatprep.subr.mxu0 0.0
      %1005 = vmatpush1.msra.mxu0 0.0
      %1006 = vmatprep.subr.mxu0 0.0
      %1007 = vmatpush1.msra.mxu0 0.0
      %1008 = vmatprep.subr.mxu0 0.0
      %1009 = vmatpush1.msra.mxu0 0.0
      %1010 = vmatprep.subr.mxu0 0.0
      %1011 = vmatpush1.msra.mxu0 0.0
      %1012 = vmatprep.subr.mxu0 0.0
      %1013 = vmatpush1.msra.mxu0 0.0
      %1014 = vmatprep.subr.mxu0 0.0
      %1015 = vmatpush1.msra.mxu0 0.0
      %1016 = vmatprep.subr.mxu0 0.0
      %1017 = vmatpush1.msra.mxu0 0.0
      %1018 = vmatprep.subr.mxu0 0.0
      %1019 = vmatpush1.msra.mxu0 0.0
      %1020 = vmatprep.subr.mxu0 0.0
      %1021 = vmatpush1.msra.mxu0 0.0
      %1022 = vmatprep.subr.mxu0 0.0
      %1023 = vmatpush1.msra.mxu0 0.0
      %1024 = vmatprep.subr.mxu0 0.0
      %1025 = vmatpush1.msra.mxu0 0.0
      %1026 = vmatprep.subr.mxu0 0.0
      %1027 = vmatpush1.msra.mxu0 0.0
      %1028 = vmatprep.subr.mxu0 0.0
      %1029 = vmatpush1.msra.mxu0 0.0
      %1030 = vmatprep.subr.mxu0 0.0
      %1031 = vmatpush1.msra.mxu0 0.0
      %1032 = vmatprep.subr.mxu0 0.0
      %1033 = vmatpush1.msra.mxu0 0.0
      %1034 = vmatprep.subr.mxu0 0.0
      %1035 = vmatpush1.msra.mxu0 0.0
      %1036 = vmatprep.subr.mxu0 0.0
      %1037 = vmatpush1.msra.mxu0 0.0
      %1038 = vmatprep.subr.mxu0 0.0
      %1039 = vmatpush1.msra.mxu0 0.0
      %1040 = vmatprep.subr.mxu0 0.0
      %1041 = vmatpush1.msra.mxu0 0.0
      %1042 = vmatprep.subr.mxu0 0.0
      %1043 = vmatpush1.msra.mxu0 0.0
      %1044 = vmatprep.subr.mxu0 0.0
      %1045 = vmatpush1.msra.mxu0 0.0
      %1046 = vmatprep.subr.mxu0 0.0
      %1047 = vmatpush1.msra.mxu0 0.0
      %1048 = vmatprep.subr.mxu0 0.0
      %1049 = vmatpush1.msra.mxu0 0.0
      %1050 = vmatprep.subr.mxu0 0.0
      %1051 = vmatpush1.msra.mxu0 0.0
      %1052 = vmatprep.mubr.f32.mxu0 0.0
      %1053 = vmatmul.mubr.f32.gmra.mrb[0].mxu0 %v615
      %v1054 = vpop.f32.mrb[0].mxu0
      %v1055 = vadd.f32 0.0, %v1054
      %v1056 = vpop.f32.mrb[0].mxu0
      %1057 = vmatprep.mubr.f32.mxu0 0.0
      %1058 = vmatmul.mubr.f32.gmra.mrb[0].mxu0 %v618
      %v1059 = vpop.f32.mrb[0].mxu0
      %v1060 = vadd.f32 0.0, %v1059
      %v1061 = vpop.f32.mrb[0].mxu0
      %1062 = vdwg.mxu0
      %v1064 = vsel %vm583, %v977, 0
      %v1067 = vsel %vm583, %v978, 0
      %1069 = vmatprep.subr.mxu0 0.0
      %1070 = vmatpush1.msra.mxu0 %v1055
      %1071 = vmatprep.subr.mxu0 0.0
      %1072 = vmatpush1.msra.mxu0 %v1060
      %1073 = vmatprep.subr.mxu0 0.0
      %1074 = vmatpush1.msra.mxu0 0.0
      %1075 = vmatprep.subr.mxu0 0.0
      %1076 = vmatpush1.msra.mxu0 0.0
      %1077 = vmatprep.subr.mxu0 0.0
      %1078 = vmatpush1.msra.mxu0 0.0
      %1079 = vmatprep.subr.mxu0 0.0
      %1080 = vmatpush1.msra.mxu0 0.0
      %1081 = vmatprep.subr.mxu0 0.0
      %1082 = vmatpush1.msra.mxu0 0.0
      %1083 = vmatprep.subr.mxu0 0.0
      %1084 = vmatpush1.msra.mxu0 0.0
      %1085 = vmatprep.subr.mxu0 0.0
      %1086 = vmatpush1.msra.mxu0 0.0
      %1087 = vmatprep.subr.mxu0 0.0
      %1088 = vmatpush1.msra.mxu0 0.0
      %1089 = vmatprep.subr.mxu0 0.0
      %1090 = vmatpush1.msra.mxu0 0.0
      %1091 = vmatprep.subr.mxu0 0.0
      %1092 = vmatpush1.msra.mxu0 0.0
      %1093 = vmatprep.subr.mxu0 0.0
      %1094 = vmatpush1.msra.mxu0 0.0
      %1095 = vmatprep.subr.mxu0 0.0
      %1096 = vmatpush1.msra.mxu0 0.0
      %1097 = vmatprep.subr.mxu0 0.0
      %1098 = vmatpush1.msra.mxu0 0.0
      %1099 = vmatprep.subr.mxu0 0.0
      %1100 = vmatpush1.msra.mxu0 0.0
      %1101 = vmatprep.subr.mxu0 0.0
      %1102 = vmatpush1.msra.mxu0 0.0
      %1103 = vmatprep.subr.mxu0 0.0
      %1104 = vmatpush1.msra.mxu0 0.0
      %1105 = vmatprep.subr.mxu0 0.0
      %1106 = vmatpush1.msra.mxu0 0.0
      %1107 = vmatprep.subr.mxu0 0.0
      %1108 = vmatpush1.msra.mxu0 0.0
      %1109 = vmatprep.subr.mxu0 0.0
      %1110 = vmatpush1.msra.mxu0 0.0
      %1111 = vmatprep.subr.mxu0 0.0
      %1112 = vmatpush1.msra.mxu0 0.0
      %1113 = vmatprep.subr.mxu0 0.0
      %1114 = vmatpush1.msra.mxu0 0.0
      %1115 = vmatprep.subr.mxu0 0.0
      %1116 = vmatpush1.msra.mxu0 0.0
      %1117 = vmatprep.subr.mxu0 0.0
      %1118 = vmatpush1.msra.mxu0 0.0
      %1119 = vmatprep.subr.mxu0 0.0
      %1120 = vmatpush1.msra.mxu0 0.0
      %1121 = vmatprep.subr.mxu0 0.0
      %1122 = vmatpush1.msra.mxu0 0.0
      %1123 = vmatprep.subr.mxu0 0.0
      %1124 = vmatpush1.msra.mxu0 0.0
      %1125 = vmatprep.subr.mxu0 0.0
      %1126 = vmatpush1.msra.mxu0 0.0
      %1127 = vmatprep.subr.mxu0 0.0
      %1128 = vmatpush1.msra.mxu0 0.0
      %1129 = vmatprep.subr.mxu0 0.0
      %1130 = vmatpush1.msra.mxu0 0.0
      %1131 = vmatprep.subr.mxu0 0.0
      %1132 = vmatpush1.msra.mxu0 0.0
      %1133 = vmatprep.mubr.f32.mxu0 0.0
      %1134 = vmatmul.mubr.f32.gmra.mrb[0].mxu0 %v1064
      %v1135 = vpop.f32.mrb[0].mxu0
      %v1136 = vadd.f32 0.0, %v1135
      %v1137 = vpop.f32.mrb[0].mxu0
      %1138 = vmatprep.mubr.f32.mxu0 0.0
      %1139 = vmatmul.mubr.f32.gmra.mrb[0].mxu0 %v1067
      %v1140 = vpop.f32.mrb[0].mxu0
      %v1141 = vadd.f32 0.0, %v1140
      %v1142 = vpop.f32.mrb[0].mxu0
      %1143 = vdwg.mxu0
      %vm1144 = vcmask 64512
      %v1146 = vsel %vm1144, %v1136, 0
      %v1149 = vsel %vm1144, %v1141, 0
      %v1152 = vsel %vm1144, %v980, 0
      %v1155 = vsel %vm1144, %v981, 0
      %v1158 = vsel %vm1144, %v982, 0
      %v1161 = vsel %vm1144, %v983, 0
      %v1164 = vsel %vm1144, %v984, 0
      %v1167 = vsel %vm1144, %v985, 0
      %v1170 = vsel %vm1144, %v986, 0
      %v1173 = vsel %vm1144, %v987, 0
      %1175 = vmatprep.subr.mxu0 0.0
      %1176 = vmatpush1.xpose.msra.mxu0 %v1152
      %1177 = vmatprep.subr.mxu0 0.0
      %1178 = vmatpush1.xpose.msra.mxu0 %v1155
      %1179 = vmatprep.subr.mxu0 0.0
      %1180 = vmatpush1.xpose.msra.mxu0 %v1158
      %1181 = vmatprep.subr.mxu0 0.0
      %1182 = vmatpush1.xpose.msra.mxu0 %v1161
      %1183 = vmatprep.subr.mxu0 0.0
      %1184 = vmatpush1.xpose.msra.mxu0 %v1164
      %1185 = vmatprep.subr.mxu0 0.0
      %1186 = vmatpush1.xpose.msra.mxu0 %v1167
      %1187 = vmatprep.subr.mxu0 0.0
      %1188 = vmatpush1.xpose.msra.mxu0 %v1170
      %1189 = vmatprep.subr.mxu0 0.0
      %1190 = vmatpush1.xpose.msra.mxu0 %v1173
      %1191 = vmatprep.subr.mxu0 0.0
      %1192 = vmatpush1.xpose.msra.mxu0 0.0
      %1193 = vmatprep.subr.mxu0 0.0
      %1194 = vmatpush1.xpose.msra.mxu0 0.0
      %1195 = vmatprep.subr.mxu0 0.0
      %1196 = vmatpush1.xpose.msra.mxu0 0.0
      %1197 = vmatprep.subr.mxu0 0.0
      %1198 = vmatpush1.xpose.msra.mxu0 0.0
      %1199 = vmatprep.subr.mxu0 0.0
      %1200 = vmatpush1.xpose.msra.mxu0 0.0
      %1201 = vmatprep.subr.mxu0 0.0
      %1202 = vmatpush1.xpose.msra.mxu0 0.0
      %1203 = vmatprep.subr.mxu0 0.0
      %1204 = vmatpush1.xpose.msra.mxu0 0.0
      %1205 = vmatprep.subr.mxu0 0.0
      %1206 = vmatpush1.xpose.msra.mxu0 0.0
      %1207 = vmatprep.subr.mxu0 0.0
      %1208 = vmatpush1.xpose.msra.mxu0 0.0
      %1209 = vmatprep.subr.mxu0 0.0
      %1210 = vmatpush1.xpose.msra.mxu0 0.0
      %1211 = vmatprep.subr.mxu0 0.0
      %1212 = vmatpush1.xpose.msra.mxu0 0.0
      %1213 = vmatprep.subr.mxu0 0.0
      %1214 = vmatpush1.xpose.msra.mxu0 0.0
      %1215 = vmatprep.subr.mxu0 0.0
      %1216 = vmatpush1.xpose.msra.mxu0 0.0
      %1217 = vmatprep.subr.mxu0 0.0
      %1218 = vmatpush1.xpose.msra.mxu0 0.0
      %1219 = vmatprep.subr.mxu0 0.0
      %1220 = vmatpush1.xpose.msra.mxu0 0.0
      %1221 = vmatprep.subr.mxu0 0.0
      %1222 = vmatpush1.xpose.msra.mxu0 0.0
      %1223 = vmatprep.subr.mxu0 0.0
      %1224 = vmatpush1.xpose.msra.mxu0 0.0
      %1225 = vmatprep.subr.mxu0 0.0
      %1226 = vmatpush1.xpose.msra.mxu0 0.0
      %1227 = vmatprep.subr.mxu0 0.0
      %1228 = vmatpush1.xpose.msra.mxu0 0.0
      %1229 = vmatprep.subr.mxu0 0.0
      %1230 = vmatpush1.xpose.msra.mxu0 0.0
      %1231 = vmatprep.subr.mxu0 0.0
      %1232 = vmatpush1.xpose.msra.mxu0 0.0
      %1233 = vmatprep.subr.mxu0 0.0
      %1234 = vmatpush1.xpose.msra.mxu0 0.0
      %1235 = vmatprep.subr.mxu0 0.0
      %1236 = vmatpush1.xpose.msra.mxu0 0.0
      %1237 = vmatprep.subr.mxu0 0.0
      %1238 = vmatpush1.xpose.msra.mxu0 0.0
      %1239 = vmatprep.mubr.f32.mxu0 0.0
      %1240 = vmatmul.mubr.f32.gmra.mrb[0].mxu0 %v1146
      %v1241 = vpop.f32.mrb[0].mxu0
      %v1242 = vadd.f32 0.0, %v1241
      %v1243 = vpop.f32.mrb[0].mxu0
      %1244 = vmatprep.mubr.f32.mxu0 0.0
      %1245 = vmatmul.mubr.f32.gmra.mrb[0].mxu0 %v1149
      %v1246 = vpop.f32.mrb[0].mxu0
      %v1247 = vadd.f32 0.0, %v1246
      %v1248 = vpop.f32.mrb[0].mxu0
      %1249 = vdwg.mxu0
      %v1251 = vsel %vm1144, %v768, 0
      %v1254 = vsel %vm1144, %v773, 0
      %v1257 = vsel %vm1144, %v606, 0
      %v1260 = vsel %vm1144, %v607, 0
      %v1263 = vsel %vm1144, %v608, 0
      %v1266 = vsel %vm1144, %v609, 0
      %v1269 = vsel %vm1144, %v610, 0
      %v1272 = vsel %vm1144, %v611, 0
      %v1275 = vsel %vm1144, %v612, 0
      %v1278 = vsel %vm1144, %v613, 0
      %1280 = vmatprep.subr.mxu0 0.0
      %1281 = vmatpush1.xpose.msra.mxu0 %v1257
      %1282 = vmatprep.subr.mxu0 0.0
      %1283 = vmatpush1.xpose.msra.mxu0 %v1260
      %1284 = vmatprep.subr.mxu0 0.0
      %1285 = vmatpush1.xpose.msra.mxu0 %v1263
      %1286 = vmatprep.subr.mxu0 0.0
      %1287 = vmatpush1.xpose.msra.mxu0 %v1266
      %1288 = vmatprep.subr.mxu0 0.0
      %1289 = vmatpush1.xpose.msra.mxu0 %v1269
      %1290 = vmatprep.subr.mxu0 0.0
      %1291 = vmatpush1.xpose.msra.mxu0 %v1272
      %1292 = vmatprep.subr.mxu0 0.0
      %1293 = vmatpush1.xpose.msra.mxu0 %v1275
      %1294 = vmatprep.subr.mxu0 0.0
      %1295 = vmatpush1.xpose.msra.mxu0 %v1278
      %1296 = vmatprep.subr.mxu0 0.0
      %1297 = vmatpush1.xpose.msra.mxu0 0.0
      %1298 = vmatprep.subr.mxu0 0.0
      %1299 = vmatpush1.xpose.msra.mxu0 0.0
      %1300 = vmatprep.subr.mxu0 0.0
      %1301 = vmatpush1.xpose.msra.mxu0 0.0
      %1302 = vmatprep.subr.mxu0 0.0
      %1303 = vmatpush1.xpose.msra.mxu0 0.0
      %1304 = vmatprep.subr.mxu0 0.0
      %1305 = vmatpush1.xpose.msra.mxu0 0.0
      %1306 = vmatprep.subr.mxu0 0.0
      %1307 = vmatpush1.xpose.msra.mxu0 0.0
      %1308 = vmatprep.subr.mxu0 0.0
      %1309 = vmatpush1.xpose.msra.mxu0 0.0
      %1310 = vmatprep.subr.mxu0 0.0
      %1311 = vmatpush1.xpose.msra.mxu0 0.0
      %1312 = vmatprep.subr.mxu0 0.0
      %1313 = vmatpush1.xpose.msra.mxu0 0.0
      %1314 = vmatprep.subr.mxu0 0.0
      %1315 = vmatpush1.xpose.msra.mxu0 0.0
      %1316 = vmatprep.subr.mxu0 0.0
      %1317 = vmatpush1.xpose.msra.mxu0 0.0
      %1318 = vmatprep.subr.mxu0 0.0
      %1319 = vmatpush1.xpose.msra.mxu0 0.0
      %1320 = vmatprep.subr.mxu0 0.0
      %1321 = vmatpush1.xpose.msra.mxu0 0.0
      %1322 = vmatprep.subr.mxu0 0.0
      %1323 = vmatpush1.xpose.msra.mxu0 0.0
      %1324 = vmatprep.subr.mxu0 0.0
      %1325 = vmatpush1.xpose.msra.mxu0 0.0
      %1326 = vmatprep.subr.mxu0 0.0
      %1327 = vmatpush1.xpose.msra.mxu0 0.0
      %1328 = vmatprep.subr.mxu0 0.0
      %1329 = vmatpush1.xpose.msra.mxu0 0.0
      %1330 = vmatprep.subr.mxu0 0.0
      %1331 = vmatpush1.xpose.msra.mxu0 0.0
      %1332 = vmatprep.subr.mxu0 0.0
      %1333 = vmatpush1.xpose.msra.mxu0 0.0
      %1334 = vmatprep.subr.mxu0 0.0
      %1335 = vmatpush1.xpose.msra.mxu0 0.0
      %1336 = vmatprep.subr.mxu0 0.0
      %1337 = vmatpush1.xpose.msra.mxu0 0.0
      %1338 = vmatprep.subr.mxu0 0.0
      %1339 = vmatpush1.xpose.msra.mxu0 0.0
      %1340 = vmatprep.subr.mxu0 0.0
      %1341 = vmatpush1.xpose.msra.mxu0 0.0
      %1342 = vmatprep.subr.mxu0 0.0
      %1343 = vmatpush1.xpose.msra.mxu0 0.0
      %1344 = vmatprep.mubr.f32.mxu0 0.0
      %1345 = vmatmul.mubr.f32.gmra.mrb[0].mxu0 %v1251
      %v1346 = vpop.f32.mrb[0].mxu0
      %v1347 = vadd.f32 %v1242, %v1346
      %v1348 = vpop.f32.mrb[0].mxu0
      %1349 = vmatprep.mubr.f32.mxu0 0.0
      %1350 = vmatmul.mubr.f32.gmra.mrb[0].mxu0 %v1254
      %v1351 = vpop.f32.mrb[0].mxu0
      %v1352 = vadd.f32 %v1247, %v1351
      %v1353 = vpop.f32.mrb[0].mxu0
      %1354 = vdwg.mxu0
      %s1355 = scalar_lea.vmem %s3, 128
      %v1356 = vld [vmem:[%s1355] sm:$0xff]
      %v1357 = vld [vmem:[%s1355 + $0x8] sm:$0xff]
      %v1358 = vld [vmem:[%s1355 + $0x10] sm:$0xff]
      %v1359 = vld [vmem:[%s1355 + $0x18] sm:$0xff]
      %v1360 = vld [vmem:[%s1355 + $0x20] sm:$0xff]
      %v1361 = vld [vmem:[%s1355 + $0x28] sm:$0xff]
      %v1362 = vld [vmem:[%s1355 + $0x30] sm:$0xff]
      %v1363 = vld [vmem:[%s1355 + $0x38] sm:$0xff]
      %1364 = vmatprep.subr.mxu0 0.0
      %1365 = vmatpush1.msra.mxu0 %v1356
      %1366 = vmatprep.subr.mxu0 0.0
      %1367 = vmatpush1.msra.mxu0 %v1357
      %1368 = vmatprep.subr.mxu0 0.0
      %1369 = vmatpush1.msra.mxu0 %v1358
      %1370 = vmatprep.subr.mxu0 0.0
      %1371 = vmatpush1.msra.mxu0 %v1359
      %1372 = vmatprep.subr.mxu0 0.0
      %1373 = vmatpush1.msra.mxu0 %v1360
      %1374 = vmatprep.subr.mxu0 0.0
      %1375 = vmatpush1.msra.mxu0 %v1361
      %1376 = vmatprep.subr.mxu0 0.0
      %1377 = vmatpush1.msra.mxu0 %v1362
      %1378 = vmatprep.subr.mxu0 0.0
      %1379 = vmatpush1.msra.mxu0 %v1363
      %1380 = vmatprep.subr.mxu0 0.0
      %1381 = vmatpush1.msra.mxu0 0.0
      %1382 = vmatprep.subr.mxu0 0.0
      %1383 = vmatpush1.msra.mxu0 0.0
      %1384 = vmatprep.subr.mxu0 0.0
      %1385 = vmatpush1.msra.mxu0 0.0
      %1386 = vmatprep.subr.mxu0 0.0
      %1387 = vmatpush1.msra.mxu0 0.0
      %1388 = vmatprep.subr.mxu0 0.0
      %1389 = vmatpush1.msra.mxu0 0.0
      %1390 = vmatprep.subr.mxu0 0.0
      %1391 = vmatpush1.msra.mxu0 0.0
      %1392 = vmatprep.subr.mxu0 0.0
      %1393 = vmatpush1.msra.mxu0 0.0
      %1394 = vmatprep.subr.mxu0 0.0
      %1395 = vmatpush1.msra.mxu0 0.0
      %1396 = vmatprep.subr.mxu0 0.0
      %1397 = vmatpush1.msra.mxu0 0.0
      %1398 = vmatprep.subr.mxu0 0.0
      %1399 = vmatpush1.msra.mxu0 0.0
      %1400 = vmatprep.subr.mxu0 0.0
      %1401 = vmatpush1.msra.mxu0 0.0
      %1402 = vmatprep.subr.mxu0 0.0
      %1403 = vmatpush1.msra.mxu0 0.0
      %1404 = vmatprep.subr.mxu0 0.0
      %1405 = vmatpush1.msra.mxu0 0.0
      %1406 = vmatprep.subr.mxu0 0.0
      %1407 = vmatpush1.msra.mxu0 0.0
      %1408 = vmatprep.subr.mxu0 0.0
      %1409 = vmatpush1.msra.mxu0 0.0
      %1410 = vmatprep.subr.mxu0 0.0
      %1411 = vmatpush1.msra.mxu0 0.0
      %1412 = vmatprep.subr.mxu0 0.0
      %1413 = vmatpush1.msra.mxu0 0.0
      %1414 = vmatprep.subr.mxu0 0.0
      %1415 = vmatpush1.msra.mxu0 0.0
      %1416 = vmatprep.subr.mxu0 0.0
      %1417 = vmatpush1.msra.mxu0 0.0
      %1418 = vmatprep.subr.mxu0 0.0
      %1419 = vmatpush1.msra.mxu0 0.0
      %1420 = vmatprep.subr.mxu0 0.0
      %1421 = vmatpush1.msra.mxu0 0.0
      %1422 = vmatprep.subr.mxu0 0.0
      %1423 = vmatpush1.msra.mxu0 0.0
      %1424 = vmatprep.subr.mxu0 0.0
      %1425 = vmatpush1.msra.mxu0 0.0
      %1426 = vmatprep.subr.mxu0 0.0
      %1427 = vmatpush1.msra.mxu0 0.0
      %1428 = vmatprep.mubr.f32.mxu0 0.0
      %1429 = vmatmul.mubr.f32.gmra.mrb[0].mxu0 %v405
      %v1430 = vpop.f32.mrb[0].mxu0
      %v1431 = vadd.f32 0.0, %v1430
      %v1432 = vpop.f32.mrb[0].mxu0
      %1433 = vmatprep.mubr.f32.mxu0 0.0
      %1434 = vmatmul.mubr.f32.gmra.mrb[0].mxu0 %v408
      %v1435 = vpop.f32.mrb[0].mxu0
      %v1436 = vadd.f32 0.0, %v1435
      %v1437 = vpop.f32.mrb[0].mxu0
      %1438 = vdwg.mxu0
      %s1439 = scalar_lea.vmem %s4, 2
      %v1440 = vld [vmem:[%s1439] sm:$0x1]
      %v1442 = vsel %vm403, %v1440, 0
      %1444 = vmatprep.subr.mxu0 0.0
      %1445 = vmatpush1.xpose.msra.mxu0 %v405
      %1446 = vmatprep.subr.mxu0 0.0
      %1447 = vmatpush1.xpose.msra.mxu0 %v408
      %1448 = vmatprep.subr.mxu0 0.0
      %1449 = vmatpush1.xpose.msra.mxu0 0.0
      %1450 = vmatprep.subr.mxu0 0.0
      %1451 = vmatpush1.xpose.msra.mxu0 0.0
      %1452 = vmatprep.subr.mxu0 0.0
      %1453 = vmatpush1.xpose.msra.mxu0 0.0
      %1454 = vmatprep.subr.mxu0 0.0
      %1455 = vmatpush1.xpose.msra.mxu0 0.0
      %1456 = vmatprep.subr.mxu0 0.0
      %1457 = vmatpush1.xpose.msra.mxu0 0.0
      %1458 = vmatprep.subr.mxu0 0.0
      %1459 = vmatpush1.xpose.msra.mxu0 0.0
      %1460 = vmatprep.subr.mxu0 0.0
      %1461 = vmatpush1.xpose.msra.mxu0 0.0
      %1462 = vmatprep.subr.mxu0 0.0
      %1463 = vmatpush1.xpose.msra.mxu0 0.0
      %1464 = vmatprep.subr.mxu0 0.0
      %1465 = vmatpush1.xpose.msra.mxu0 0.0
      %1466 = vmatprep.subr.mxu0 0.0
      %1467 = vmatpush1.xpose.msra.mxu0 0.0
      %1468 = vmatprep.subr.mxu0 0.0
      %1469 = vmatpush1.xpose.msra.mxu0 0.0
      %1470 = vmatprep.subr.mxu0 0.0
      %1471 = vmatpush1.xpose.msra.mxu0 0.0
      %1472 = vmatprep.subr.mxu0 0.0
      %1473 = vmatpush1.xpose.msra.mxu0 0.0
      %1474 = vmatprep.subr.mxu0 0.0
      %1475 = vmatpush1.xpose.msra.mxu0 0.0
      %1476 = vmatprep.subr.mxu0 0.0
      %1477 = vmatpush1.xpose.msra.mxu0 0.0
      %1478 = vmatprep.subr.mxu0 0.0
      %1479 = vmatpush1.xpose.msra.mxu0 0.0
      %1480 = vmatprep.subr.mxu0 0.0
      %1481 = vmatpush1.xpose.msra.mxu0 0.0
      %1482 = vmatprep.subr.mxu0 0.0
      %1483 = vmatpush1.xpose.msra.mxu0 0.0
      %1484 = vmatprep.subr.mxu0 0.0
      %1485 = vmatpush1.xpose.msra.mxu0 0.0
      %1486 = vmatprep.subr.mxu0 0.0
      %1487 = vmatpush1.xpose.msra.mxu0 0.0
      %1488 = vmatprep.subr.mxu0 0.0
      %1489 = vmatpush1.xpose.msra.mxu0 0.0
      %1490 = vmatprep.subr.mxu0 0.0
      %1491 = vmatpush1.xpose.msra.mxu0 0.0
      %1492 = vmatprep.subr.mxu0 0.0
      %1493 = vmatpush1.xpose.msra.mxu0 0.0
      %1494 = vmatprep.subr.mxu0 0.0
      %1495 = vmatpush1.xpose.msra.mxu0 0.0
      %1496 = vmatprep.subr.mxu0 0.0
      %1497 = vmatpush1.xpose.msra.mxu0 0.0
      %1498 = vmatprep.subr.mxu0 0.0
      %1499 = vmatpush1.xpose.msra.mxu0 0.0
      %1500 = vmatprep.subr.mxu0 0.0
      %1501 = vmatpush1.xpose.msra.mxu0 0.0
      %1502 = vmatprep.subr.mxu0 0.0
      %1503 = vmatpush1.xpose.msra.mxu0 0.0
      %1504 = vmatprep.subr.mxu0 0.0
      %1505 = vmatpush1.xpose.msra.mxu0 0.0
      %1506 = vmatprep.subr.mxu0 0.0
      %1507 = vmatpush1.xpose.msra.mxu0 0.0
      %1508 = vmatprep.mubr.f32.mxu0 0.0
      %1509 = vmatmul.mubr.f32.gmra.mrb[0].mxu0 %v1442
      %v1510 = vpop.f32.mrb[0].mxu0
      %v1511 = vadd.f32 0.0, %v1510
      %v1512 = vpop.f32.mrb[0].mxu0
      %1513 = vdwg.mxu0
      %1515 = vset.pattern.permute.xlu0 0
      %1516 = vperm.xlu0 %1515, %v1431
      %v1517 = vpop.permute.xlu0 %1516
      %1520 = vset.pattern.permute.xlu0 0
      %1521 = vperm.xlu0 %1520, %v1436
      %v1522 = vpop.permute.xlu0 %1521
      %v1524 = vlaneseq
      %v1525 = vshrl.u32 %v1524, 7
      %v1526 = vsub.s32 0, %v1525
      %v1527 = vrot.slane %v1511, %v1526
      %v1528 = vadd.f32 %v1517, %v1527
      %v1529 = vadd.f32 %v1522, %v1527
      %v1530 = vmul.f32 %v1528, 0.2
      %v1531 = vmul.f32 %v1529, 0.2
      %v1532 = vmax.f32 %v1528, %v1530
      %v1533 = vmax.f32 %v1529, %v1531
      %v1534 = vsel %vm579, %v1532, -1e+30
      %v1535 = vsel %vm580, %v1533, -1e+30
      %v1536 = vsel %vm583, %v1534, -inf
      %1537 = vmax.xlane.f32.xlu0 %v1536
      %v1538 = vpop.xlane.xlu0 %1537
      %v1539 = vsel %vm583, %v1535, -inf
      %1540 = vmax.xlane.f32.xlu0 %v1539
      %v1541 = vpop.xlane.xlu0 %1540
      %v1542 = vsub.f32 %v1534, %v1538
      %v1543 = vsub.f32 %v1535, %v1541
      %v1544 = vmul.f32 %v1542, 1.442695
      %v1545 = vpow.pop %v1544
      %v1546 = vmul.f32 %v1543, 1.442695
      %v1547 = vpow.pop %v1546
      %v1548 = vsel %vm583, %v1545, 0.0
      %1549 = vadd.xlane.f32.xlu0 %v1548
      %v1550 = vpop.xlane.xlu0 %1549
      %v1551 = vsel %vm583, %v1547, 0.0
      %1552 = vadd.xlane.f32.xlu0 %v1551
      %v1553 = vpop.xlane.xlu0 %1552
      %v1554 = vrcp.pop %v1550
      %v1555 = vrcp.pop %v1553
      %v1556 = vmul.f32 %v1545, %v1554
      %v1557 = vmul.f32 %v1547, %v1555
      %s1558 = scalar_lea.vmem %s5, 128
      %v1559 = vld [vmem:[%s1558] sm:$0xff]
      %v1560 = vld [vmem:[%s1558 + $0x8] sm:$0xff]
      %v1561 = vld [vmem:[%s1558 + $0x10] sm:$0xff]
      %v1562 = vld [vmem:[%s1558 + $0x18] sm:$0xff]
      %v1563 = vld [vmem:[%s1558 + $0x20] sm:$0xff]
      %v1564 = vld [vmem:[%s1558 + $0x28] sm:$0xff]
      %v1565 = vld [vmem:[%s1558 + $0x30] sm:$0xff]
      %v1566 = vld [vmem:[%s1558 + $0x38] sm:$0xff]
      %1567 = vmatprep.subr.mxu0 0.0
      %1568 = vmatpush1.msra.mxu0 %v1559
      %1569 = vmatprep.subr.mxu0 0.0
      %1570 = vmatpush1.msra.mxu0 %v1560
      %1571 = vmatprep.subr.mxu0 0.0
      %1572 = vmatpush1.msra.mxu0 %v1561
      %1573 = vmatprep.subr.mxu0 0.0
      %1574 = vmatpush1.msra.mxu0 %v1562
      %1575 = vmatprep.subr.mxu0 0.0
      %1576 = vmatpush1.msra.mxu0 %v1563
      %1577 = vmatprep.subr.mxu0 0.0
      %1578 = vmatpush1.msra.mxu0 %v1564
      %1579 = vmatprep.subr.mxu0 0.0
      %1580 = vmatpush1.msra.mxu0 %v1565
      %1581 = vmatprep.subr.mxu0 0.0
      %1582 = vmatpush1.msra.mxu0 %v1566
      %1583 = vmatprep.subr.mxu0 0.0
      %1584 = vmatpush1.msra.mxu0 0.0
      %1585 = vmatprep.subr.mxu0 0.0
      %1586 = vmatpush1.msra.mxu0 0.0
      %1587 = vmatprep.subr.mxu0 0.0
      %1588 = vmatpush1.msra.mxu0 0.0
      %1589 = vmatprep.subr.mxu0 0.0
      %1590 = vmatpush1.msra.mxu0 0.0
      %1591 = vmatprep.subr.mxu0 0.0
      %1592 = vmatpush1.msra.mxu0 0.0
      %1593 = vmatprep.subr.mxu0 0.0
      %1594 = vmatpush1.msra.mxu0 0.0
      %1595 = vmatprep.subr.mxu0 0.0
      %1596 = vmatpush1.msra.mxu0 0.0
      %1597 = vmatprep.subr.mxu0 0.0
      %1598 = vmatpush1.msra.mxu0 0.0
      %1599 = vmatprep.subr.mxu0 0.0
      %1600 = vmatpush1.msra.mxu0 0.0
      %1601 = vmatprep.subr.mxu0 0.0
      %1602 = vmatpush1.msra.mxu0 0.0
      %1603 = vmatprep.subr.mxu0 0.0
      %1604 = vmatpush1.msra.mxu0 0.0
      %1605 = vmatprep.subr.mxu0 0.0
      %1606 = vmatpush1.msra.mxu0 0.0
      %1607 = vmatprep.subr.mxu0 0.0
      %1608 = vmatpush1.msra.mxu0 0.0
      %1609 = vmatprep.subr.mxu0 0.0
      %1610 = vmatpush1.msra.mxu0 0.0
      %1611 = vmatprep.subr.mxu0 0.0
      %1612 = vmatpush1.msra.mxu0 0.0
      %1613 = vmatprep.subr.mxu0 0.0
      %1614 = vmatpush1.msra.mxu0 0.0
      %1615 = vmatprep.subr.mxu0 0.0
      %1616 = vmatpush1.msra.mxu0 0.0
      %1617 = vmatprep.subr.mxu0 0.0
      %1618 = vmatpush1.msra.mxu0 0.0
      %1619 = vmatprep.subr.mxu0 0.0
      %1620 = vmatpush1.msra.mxu0 0.0
      %1621 = vmatprep.subr.mxu0 0.0
      %1622 = vmatpush1.msra.mxu0 0.0
      %1623 = vmatprep.subr.mxu0 0.0
      %1624 = vmatpush1.msra.mxu0 0.0
      %1625 = vmatprep.subr.mxu0 0.0
      %1626 = vmatpush1.msra.mxu0 0.0
      %1627 = vmatprep.subr.mxu0 0.0
      %1628 = vmatpush1.msra.mxu0 0.0
      %1629 = vmatprep.subr.mxu0 0.0
      %1630 = vmatpush1.msra.mxu0 0.0
      %1631 = vmatprep.mubr.f32.mxu0 0.0
      %1632 = vmatmul.mubr.f32.gmra.mrb[0].mxu0 %v615
      %v1633 = vpop.f32.mrb[0].mxu0
      %v1634 = vadd.f32 0.0, %v1633
      %v1635 = vpop.f32.mrb[0].mxu0
      %1636 = vmatprep.mubr.f32.mxu0 0.0
      %1637 = vmatmul.mubr.f32.gmra.mrb[0].mxu0 %v618
      %v1638 = vpop.f32.mrb[0].mxu0
      %v1639 = vadd.f32 0.0, %v1638
      %v1640 = vpop.f32.mrb[0].mxu0
      %1641 = vdwg.mxu0
      %v1643 = vsel %vm583, %v1556, 0
      %v1646 = vsel %vm583, %v1557, 0
      %1648 = vmatprep.subr.mxu0 0.0
      %1649 = vmatpush1.msra.mxu0 %v1634
      %1650 = vmatprep.subr.mxu0 0.0
      %1651 = vmatpush1.msra.mxu0 %v1639
      %1652 = vmatprep.subr.mxu0 0.0
      %1653 = vmatpush1.msra.mxu0 0.0
      %1654 = vmatprep.subr.mxu0 0.0
      %1655 = vmatpush1.msra.mxu0 0.0
      %1656 = vmatprep.subr.mxu0 0.0
      %1657 = vmatpush1.msra.mxu0 0.0
      %1658 = vmatprep.subr.mxu0 0.0
      %1659 = vmatpush1.msra.mxu0 0.0
      %1660 = vmatprep.subr.mxu0 0.0
      %1661 = vmatpush1.msra.mxu0 0.0
      %1662 = vmatprep.subr.mxu0 0.0
      %1663 = vmatpush1.msra.mxu0 0.0
      %1664 = vmatprep.subr.mxu0 0.0
      %1665 = vmatpush1.msra.mxu0 0.0
      %1666 = vmatprep.subr.mxu0 0.0
      %1667 = vmatpush1.msra.mxu0 0.0
      %1668 = vmatprep.subr.mxu0 0.0
      %1669 = vmatpush1.msra.mxu0 0.0
      %1670 = vmatprep.subr.mxu0 0.0
      %1671 = vmatpush1.msra.mxu0 0.0
      %1672 = vmatprep.subr.mxu0 0.0
      %1673 = vmatpush1.msra.mxu0 0.0
      %1674 = vmatprep.subr.mxu0 0.0
      %1675 = vmatpush1.msra.mxu0 0.0
      %1676 = vmatprep.subr.mxu0 0.0
      %1677 = vmatpush1.msra.mxu0 0.0
      %1678 = vmatprep.subr.mxu0 0.0
      %1679 = vmatpush1.msra.mxu0 0.0
      %1680 = vmatprep.subr.mxu0 0.0
      %1681 = vmatpush1.msra.mxu0 0.0
      %1682 = vmatprep.subr.mxu0 0.0
      %1683 = vmatpush1.msra.mxu0 0.0
      %1684 = vmatprep.subr.mxu0 0.0
      %1685 = vmatpush1.msra.mxu0 0.0
      %1686 = vmatprep.subr.mxu0 0.0
      %1687 = vmatpush1.msra.mxu0 0.0
      %1688 = vmatprep.subr.mxu0 0.0
      %1689 = vmatpush1.msra.mxu0 0.0
      %1690 = vmatprep.subr.mxu0 0.0
      %1691 = vmatpush1.msra.mxu0 0.0
      %1692 = vmatprep.subr.mxu0 0.0
      %1693 = vmatpush1.msra.mxu0 0.0
      %1694 = vmatprep.subr.mxu0 0.0
      %1695 = vmatpush1.msra.mxu0 0.0
      %1696 = vmatprep.subr.mxu0 0.0
      %1697 = vmatpush1.msra.mxu0 0.0
      %1698 = vmatprep.subr.mxu0 0.0
      %1699 = vmatpush1.msra.mxu0 0.0
      %1700 = vmatprep.subr.mxu0 0.0
      %1701 = vmatpush1.msra.mxu0 0.0
      %1702 = vmatprep.subr.mxu0 0.0
      %1703 = vmatpush1.msra.mxu0 0.0
      %1704 = vmatprep.subr.mxu0 0.0
      %1705 = vmatpush1.msra.mxu0 0.0
      %1706 = vmatprep.subr.mxu0 0.0
      %1707 = vmatpush1.msra.mxu0 0.0
      %1708 = vmatprep.subr.mxu0 0.0
      %1709 = vmatpush1.msra.mxu0 0.0
      %1710 = vmatprep.subr.mxu0 0.0
      %1711 = vmatpush1.msra.mxu0 0.0
      %1712 = vmatprep.mubr.f32.mxu0 0.0
      %1713 = vmatmul.mubr.f32.gmra.mrb[0].mxu0 %v1643
      %v1714 = vpop.f32.mrb[0].mxu0
      %v1715 = vadd.f32 0.0, %v1714
      %v1716 = vpop.f32.mrb[0].mxu0
      %1717 = vmatprep.mubr.f32.mxu0 0.0
      %1718 = vmatmul.mubr.f32.gmra.mrb[0].mxu0 %v1646
      %v1719 = vpop.f32.mrb[0].mxu0
      %v1720 = vadd.f32 0.0, %v1719
      %v1721 = vpop.f32.mrb[0].mxu0
      %1722 = vdwg.mxu0
      %v1724 = vsel %vm1144, %v1715, 0
      %v1727 = vsel %vm1144, %v1720, 0
      %v1730 = vsel %vm1144, %v1559, 0
      %v1733 = vsel %vm1144, %v1560, 0
      %v1736 = vsel %vm1144, %v1561, 0
      %v1739 = vsel %vm1144, %v1562, 0
      %v1742 = vsel %vm1144, %v1563, 0
      %v1745 = vsel %vm1144, %v1564, 0
      %v1748 = vsel %vm1144, %v1565, 0
      %v1751 = vsel %vm1144, %v1566, 0
      %1753 = vmatprep.subr.mxu0 0.0
      %1754 = vmatpush1.xpose.msra.mxu0 %v1730
      %1755 = vmatprep.subr.mxu0 0.0
      %1756 = vmatpush1.xpose.msra.mxu0 %v1733
      %1757 = vmatprep.subr.mxu0 0.0
      %1758 = vmatpush1.xpose.msra.mxu0 %v1736
      %1759 = vmatprep.subr.mxu0 0.0
      %1760 = vmatpush1.xpose.msra.mxu0 %v1739
      %1761 = vmatprep.subr.mxu0 0.0
      %1762 = vmatpush1.xpose.msra.mxu0 %v1742
      %1763 = vmatprep.subr.mxu0 0.0
      %1764 = vmatpush1.xpose.msra.mxu0 %v1745
      %1765 = vmatprep.subr.mxu0 0.0
      %1766 = vmatpush1.xpose.msra.mxu0 %v1748
      %1767 = vmatprep.subr.mxu0 0.0
      %1768 = vmatpush1.xpose.msra.mxu0 %v1751
      %1769 = vmatprep.subr.mxu0 0.0
      %1770 = vmatpush1.xpose.msra.mxu0 0.0
      %1771 = vmatprep.subr.mxu0 0.0
      %1772 = vmatpush1.xpose.msra.mxu0 0.0
      %1773 = vmatprep.subr.mxu0 0.0
      %1774 = vmatpush1.xpose.msra.mxu0 0.0
      %1775 = vmatprep.subr.mxu0 0.0
      %1776 = vmatpush1.xpose.msra.mxu0 0.0
      %1777 = vmatprep.subr.mxu0 0.0
      %1778 = vmatpush1.xpose.msra.mxu0 0.0
      %1779 = vmatprep.subr.mxu0 0.0
      %1780 = vmatpush1.xpose.msra.mxu0 0.0
      %1781 = vmatprep.subr.mxu0 0.0
      %1782 = vmatpush1.xpose.msra.mxu0 0.0
      %1783 = vmatprep.subr.mxu0 0.0
      %1784 = vmatpush1.xpose.msra.mxu0 0.0
      %1785 = vmatprep.subr.mxu0 0.0
      %1786 = vmatpush1.xpose.msra.mxu0 0.0
      %1787 = vmatprep.subr.mxu0 0.0
      %1788 = vmatpush1.xpose.msra.mxu0 0.0
      %1789 = vmatprep.subr.mxu0 0.0
      %1790 = vmatpush1.xpose.msra.mxu0 0.0
      %1791 = vmatprep.subr.mxu0 0.0
      %1792 = vmatpush1.xpose.msra.mxu0 0.0
      %1793 = vmatprep.subr.mxu0 0.0
      %1794 = vmatpush1.xpose.msra.mxu0 0.0
      %1795 = vmatprep.subr.mxu0 0.0
      %1796 = vmatpush1.xpose.msra.mxu0 0.0
      %1797 = vmatprep.subr.mxu0 0.0
      %1798 = vmatpush1.xpose.msra.mxu0 0.0
      %1799 = vmatprep.subr.mxu0 0.0
      %1800 = vmatpush1.xpose.msra.mxu0 0.0
      %1801 = vmatprep.subr.mxu0 0.0
      %1802 = vmatpush1.xpose.msra.mxu0 0.0
      %1803 = vmatprep.subr.mxu0 0.0
      %1804 = vmatpush1.xpose.msra.mxu0 0.0
      %1805 = vmatprep.subr.mxu0 0.0
      %1806 = vmatpush1.xpose.msra.mxu0 0.0
      %1807 = vmatprep.subr.mxu0 0.0
      %1808 = vmatpush1.xpose.msra.mxu0 0.0
      %1809 = vmatprep.subr.mxu0 0.0
      %1810 = vmatpush1.xpose.msra.mxu0 0.0
      %1811 = vmatprep.subr.mxu0 0.0
      %1812 = vmatpush1.xpose.msra.mxu0 0.0
      %1813 = vmatprep.subr.mxu0 0.0
      %1814 = vmatpush1.xpose.msra.mxu0 0.0
      %1815 = vmatprep.subr.mxu0 0.0
      %1816 = vmatpush1.xpose.msra.mxu0 0.0
      %1817 = vmatprep.mubr.f32.mxu0 0.0
      %1818 = vmatmul.mubr.f32.gmra.mrb[0].mxu0 %v1724
      %v1819 = vpop.f32.mrb[0].mxu0
      %v1820 = vadd.f32 0.0, %v1819
      %v1821 = vpop.f32.mrb[0].mxu0
      %1822 = vmatprep.mubr.f32.mxu0 0.0
      %1823 = vmatmul.mubr.f32.gmra.mrb[0].mxu0 %v1727
      %v1824 = vpop.f32.mrb[0].mxu0
      %v1825 = vadd.f32 0.0, %v1824
      %v1826 = vpop.f32.mrb[0].mxu0
      %1827 = vdwg.mxu0
      %v1828 = vadd.f32 %v1347, %v1820
      %v1829 = vadd.f32 %v1352, %v1825
      %s1830 = scalar_lea.vmem %s3, 192
      %v1831 = vld [vmem:[%s1830] sm:$0xff]
      %v1832 = vld [vmem:[%s1830 + $0x8] sm:$0xff]
      %v1833 = vld [vmem:[%s1830 + $0x10] sm:$0xff]
      %v1834 = vld [vmem:[%s1830 + $0x18] sm:$0xff]
      %v1835 = vld [vmem:[%s1830 + $0x20] sm:$0xff]
      %v1836 = vld [vmem:[%s1830 + $0x28] sm:$0xff]
      %v1837 = vld [vmem:[%s1830 + $0x30] sm:$0xff]
      %v1838 = vld [vmem:[%s1830 + $0x38] sm:$0xff]
      %1839 = vmatprep.subr.mxu0 0.0
      %1840 = vmatpush1.msra.mxu0 %v1831
      %1841 = vmatprep.subr.mxu0 0.0
      %1842 = vmatpush1.msra.mxu0 %v1832
      %1843 = vmatprep.subr.mxu0 0.0
      %1844 = vmatpush1.msra.mxu0 %v1833
      %1845 = vmatprep.subr.mxu0 0.0
      %1846 = vmatpush1.msra.mxu0 %v1834
      %1847 = vmatprep.subr.mxu0 0.0
      %1848 = vmatpush1.msra.mxu0 %v1835
      %1849 = vmatprep.subr.mxu0 0.0
      %1850 = vmatpush1.msra.mxu0 %v1836
      %1851 = vmatprep.subr.mxu0 0.0
      %1852 = vmatpush1.msra.mxu0 %v1837
      %1853 = vmatprep.subr.mxu0 0.0
      %1854 = vmatpush1.msra.mxu0 %v1838
      %1855 = vmatprep.subr.mxu0 0.0
      %1856 = vmatpush1.msra.mxu0 0.0
      %1857 = vmatprep.subr.mxu0 0.0
      %1858 = vmatpush1.msra.mxu0 0.0
      %1859 = vmatprep.subr.mxu0 0.0
      %1860 = vmatpush1.msra.mxu0 0.0
      %1861 = vmatprep.subr.mxu0 0.0
      %1862 = vmatpush1.msra.mxu0 0.0
      %1863 = vmatprep.subr.mxu0 0.0
      %1864 = vmatpush1.msra.mxu0 0.0
      %1865 = vmatprep.subr.mxu0 0.0
      %1866 = vmatpush1.msra.mxu0 0.0
      %1867 = vmatprep.subr.mxu0 0.0
      %1868 = vmatpush1.msra.mxu0 0.0
      %1869 = vmatprep.subr.mxu0 0.0
      %1870 = vmatpush1.msra.mxu0 0.0
      %1871 = vmatprep.subr.mxu0 0.0
      %1872 = vmatpush1.msra.mxu0 0.0
      %1873 = vmatprep.subr.mxu0 0.0
      %1874 = vmatpush1.msra.mxu0 0.0
      %1875 = vmatprep.subr.mxu0 0.0
      %1876 = vmatpush1.msra.mxu0 0.0
      %1877 = vmatprep.subr.mxu0 0.0
      %1878 = vmatpush1.msra.mxu0 0.0
      %1879 = vmatprep.subr.mxu0 0.0
      %1880 = vmatpush1.msra.mxu0 0.0
      %1881 = vmatprep.subr.mxu0 0.0
      %1882 = vmatpush1.msra.mxu0 0.0
      %1883 = vmatprep.subr.mxu0 0.0
      %1884 = vmatpush1.msra.mxu0 0.0
      %1885 = vmatprep.subr.mxu0 0.0
      %1886 = vmatpush1.msra.mxu0 0.0
      %1887 = vmatprep.subr.mxu0 0.0
      %1888 = vmatpush1.msra.mxu0 0.0
      %1889 = vmatprep.subr.mxu0 0.0
      %1890 = vmatpush1.msra.mxu0 0.0
      %1891 = vmatprep.subr.mxu0 0.0
      %1892 = vmatpush1.msra.mxu0 0.0
      %1893 = vmatprep.subr.mxu0 0.0
      %1894 = vmatpush1.msra.mxu0 0.0
      %1895 = vmatprep.subr.mxu0 0.0
      %1896 = vmatpush1.msra.mxu0 0.0
      %1897 = vmatprep.subr.mxu0 0.0
      %1898 = vmatpush1.msra.mxu0 0.0
      %1899 = vmatprep.subr.mxu0 0.0
      %1900 = vmatpush1.msra.mxu0 0.0
      %1901 = vmatprep.subr.mxu0 0.0
      %1902 = vmatpush1.msra.mxu0 0.0
      %1903 = vmatprep.mubr.f32.mxu0 0.0
      %1904 = vmatmul.mubr.f32.gmra.mrb[0].mxu0 %v405
      %v1905 = vpop.f32.mrb[0].mxu0
      %v1906 = vadd.f32 0.0, %v1905
      %v1907 = vpop.f32.mrb[0].mxu0
      %1908 = vmatprep.mubr.f32.mxu0 0.0
      %1909 = vmatmul.mubr.f32.gmra.mrb[0].mxu0 %v408
      %v1910 = vpop.f32.mrb[0].mxu0
      %v1911 = vadd.f32 0.0, %v1910
      %v1912 = vpop.f32.mrb[0].mxu0
      %1913 = vdwg.mxu0
      %s1914 = scalar_lea.vmem %s4, 3
      %v1915 = vld [vmem:[%s1914] sm:$0x1]
      %v1917 = vsel %vm403, %v1915, 0
      %1919 = vmatprep.subr.mxu0 0.0
      %1920 = vmatpush1.xpose.msra.mxu0 %v405
      %1921 = vmatprep.subr.mxu0 0.0
      %1922 = vmatpush1.xpose.msra.mxu0 %v408
      %1923 = vmatprep.subr.mxu0 0.0
      %1924 = vmatpush1.xpose.msra.mxu0 0.0
      %1925 = vmatprep.subr.mxu0 0.0
      %1926 = vmatpush1.xpose.msra.mxu0 0.0
      %1927 = vmatprep.subr.mxu0 0.0
      %1928 = vmatpush1.xpose.msra.mxu0 0.0
      %1929 = vmatprep.subr.mxu0 0.0
      %1930 = vmatpush1.xpose.msra.mxu0 0.0
      %1931 = vmatprep.subr.mxu0 0.0
      %1932 = vmatpush1.xpose.msra.mxu0 0.0
      %1933 = vmatprep.subr.mxu0 0.0
      %1934 = vmatpush1.xpose.msra.mxu0 0.0
      %1935 = vmatprep.subr.mxu0 0.0
      %1936 = vmatpush1.xpose.msra.mxu0 0.0
      %1937 = vmatprep.subr.mxu0 0.0
      %1938 = vmatpush1.xpose.msra.mxu0 0.0
      %1939 = vmatprep.subr.mxu0 0.0
      %1940 = vmatpush1.xpose.msra.mxu0 0.0
      %1941 = vmatprep.subr.mxu0 0.0
      %1942 = vmatpush1.xpose.msra.mxu0 0.0
      %1943 = vmatprep.subr.mxu0 0.0
      %1944 = vmatpush1.xpose.msra.mxu0 0.0
      %1945 = vmatprep.subr.mxu0 0.0
      %1946 = vmatpush1.xpose.msra.mxu0 0.0
      %1947 = vmatprep.subr.mxu0 0.0
      %1948 = vmatpush1.xpose.msra.mxu0 0.0
      %1949 = vmatprep.subr.mxu0 0.0
      %1950 = vmatpush1.xpose.msra.mxu0 0.0
      %1951 = vmatprep.subr.mxu0 0.0
      %1952 = vmatpush1.xpose.msra.mxu0 0.0
      %1953 = vmatprep.subr.mxu0 0.0
      %1954 = vmatpush1.xpose.msra.mxu0 0.0
      %1955 = vmatprep.subr.mxu0 0.0
      %1956 = vmatpush1.xpose.msra.mxu0 0.0
      %1957 = vmatprep.subr.mxu0 0.0
      %1958 = vmatpush1.xpose.msra.mxu0 0.0
      %1959 = vmatprep.subr.mxu0 0.0
      %1960 = vmatpush1.xpose.msra.mxu0 0.0
      %1961 = vmatprep.subr.mxu0 0.0
      %1962 = vmatpush1.xpose.msra.mxu0 0.0
      %1963 = vmatprep.subr.mxu0 0.0
      %1964 = vmatpush1.xpose.msra.mxu0 0.0
      %1965 = vmatprep.subr.mxu0 0.0
      %1966 = vmatpush1.xpose.msra.mxu0 0.0
      %1967 = vmatprep.subr.mxu0 0.0
      %1968 = vmatpush1.xpose.msra.mxu0 0.0
      %1969 = vmatprep.subr.mxu0 0.0
      %1970 = vmatpush1.xpose.msra.mxu0 0.0
      %1971 = vmatprep.subr.mxu0 0.0
      %1972 = vmatpush1.xpose.msra.mxu0 0.0
      %1973 = vmatprep.subr.mxu0 0.0
      %1974 = vmatpush1.xpose.msra.mxu0 0.0
      %1975 = vmatprep.subr.mxu0 0.0
      %1976 = vmatpush1.xpose.msra.mxu0 0.0
      %1977 = vmatprep.subr.mxu0 0.0
      %1978 = vmatpush1.xpose.msra.mxu0 0.0
      %1979 = vmatprep.subr.mxu0 0.0
      %1980 = vmatpush1.xpose.msra.mxu0 0.0
      %1981 = vmatprep.subr.mxu0 0.0
      %1982 = vmatpush1.xpose.msra.mxu0 0.0
      %1983 = vmatprep.mubr.f32.mxu0 0.0
      %1984 = vmatmul.mubr.f32.gmra.mrb[0].mxu0 %v1917
      %v1985 = vpop.f32.mrb[0].mxu0
      %v1986 = vadd.f32 0.0, %v1985
      %v1987 = vpop.f32.mrb[0].mxu0
      %1988 = vdwg.mxu0
      %1990 = vset.pattern.permute.xlu0 0
      %1991 = vperm.xlu0 %1990, %v1906
      %v1992 = vpop.permute.xlu0 %1991
      %1995 = vset.pattern.permute.xlu0 0
      %1996 = vperm.xlu0 %1995, %v1911
      %v1997 = vpop.permute.xlu0 %1996
      %v1999 = vlaneseq
      %v2000 = vshrl.u32 %v1999, 7
      %v2001 = vsub.s32 0, %v2000
      %v2002 = vrot.slane %v1986, %v2001
      %v2003 = vadd.f32 %v1992, %v2002
      %v2004 = vadd.f32 %v1997, %v2002
      %v2005 = vmul.f32 %v2003, 0.2
      %v2006 = vmul.f32 %v2004, 0.2
      %v2007 = vmax.f32 %v2003, %v2005
      %v2008 = vmax.f32 %v2004, %v2006
      %v2009 = vsel %vm579, %v2007, -1e+30
      %v2010 = vsel %vm580, %v2008, -1e+30
      %v2011 = vsel %vm583, %v2009, -inf
      %2012 = vmax.xlane.f32.xlu0 %v2011
      %v2013 = vpop.xlane.xlu0 %2012
      %v2014 = vsel %vm583, %v2010, -inf
      %2015 = vmax.xlane.f32.xlu0 %v2014
      %v2016 = vpop.xlane.xlu0 %2015
      %v2017 = vsub.f32 %v2009, %v2013
      %v2018 = vsub.f32 %v2010, %v2016
      %v2019 = vmul.f32 %v2017, 1.442695
      %v2020 = vpow.pop %v2019
      %v2021 = vmul.f32 %v2018, 1.442695
      %v2022 = vpow.pop %v2021
      %v2023 = vsel %vm583, %v2020, 0.0
      %2024 = vadd.xlane.f32.xlu0 %v2023
      %v2025 = vpop.xlane.xlu0 %2024
      %v2026 = vsel %vm583, %v2022, 0.0
      %2027 = vadd.xlane.f32.xlu0 %v2026
      %v2028 = vpop.xlane.xlu0 %2027
      %v2029 = vrcp.pop %v2025
      %v2030 = vrcp.pop %v2028
      %v2031 = vmul.f32 %v2020, %v2029
      %v2032 = vmul.f32 %v2022, %v2030
      %s2033 = scalar_lea.vmem %s5, 192
      %v2034 = vld [vmem:[%s2033] sm:$0xff]
      %v2035 = vld [vmem:[%s2033 + $0x8] sm:$0xff]
      %v2036 = vld [vmem:[%s2033 + $0x10] sm:$0xff]
      %v2037 = vld [vmem:[%s2033 + $0x18] sm:$0xff]
      %v2038 = vld [vmem:[%s2033 + $0x20] sm:$0xff]
      %v2039 = vld [vmem:[%s2033 + $0x28] sm:$0xff]
      %v2040 = vld [vmem:[%s2033 + $0x30] sm:$0xff]
      %v2041 = vld [vmem:[%s2033 + $0x38] sm:$0xff]
      %2042 = vmatprep.subr.mxu0 0.0
      %2043 = vmatpush1.msra.mxu0 %v2034
      %2044 = vmatprep.subr.mxu0 0.0
      %2045 = vmatpush1.msra.mxu0 %v2035
      %2046 = vmatprep.subr.mxu0 0.0
      %2047 = vmatpush1.msra.mxu0 %v2036
      %2048 = vmatprep.subr.mxu0 0.0
      %2049 = vmatpush1.msra.mxu0 %v2037
      %2050 = vmatprep.subr.mxu0 0.0
      %2051 = vmatpush1.msra.mxu0 %v2038
      %2052 = vmatprep.subr.mxu0 0.0
      %2053 = vmatpush1.msra.mxu0 %v2039
      %2054 = vmatprep.subr.mxu0 0.0
      %2055 = vmatpush1.msra.mxu0 %v2040
      %2056 = vmatprep.subr.mxu0 0.0
      %2057 = vmatpush1.msra.mxu0 %v2041
      %2058 = vmatprep.subr.mxu0 0.0
      %2059 = vmatpush1.msra.mxu0 0.0
      %2060 = vmatprep.subr.mxu0 0.0
      %2061 = vmatpush1.msra.mxu0 0.0
      %2062 = vmatprep.subr.mxu0 0.0
      %2063 = vmatpush1.msra.mxu0 0.0
      %2064 = vmatprep.subr.mxu0 0.0
      %2065 = vmatpush1.msra.mxu0 0.0
      %2066 = vmatprep.subr.mxu0 0.0
      %2067 = vmatpush1.msra.mxu0 0.0
      %2068 = vmatprep.subr.mxu0 0.0
      %2069 = vmatpush1.msra.mxu0 0.0
      %2070 = vmatprep.subr.mxu0 0.0
      %2071 = vmatpush1.msra.mxu0 0.0
      %2072 = vmatprep.subr.mxu0 0.0
      %2073 = vmatpush1.msra.mxu0 0.0
      %2074 = vmatprep.subr.mxu0 0.0
      %2075 = vmatpush1.msra.mxu0 0.0
      %2076 = vmatprep.subr.mxu0 0.0
      %2077 = vmatpush1.msra.mxu0 0.0
      %2078 = vmatprep.subr.mxu0 0.0
      %2079 = vmatpush1.msra.mxu0 0.0
      %2080 = vmatprep.subr.mxu0 0.0
      %2081 = vmatpush1.msra.mxu0 0.0
      %2082 = vmatprep.subr.mxu0 0.0
      %2083 = vmatpush1.msra.mxu0 0.0
      %2084 = vmatprep.subr.mxu0 0.0
      %2085 = vmatpush1.msra.mxu0 0.0
      %2086 = vmatprep.subr.mxu0 0.0
      %2087 = vmatpush1.msra.mxu0 0.0
      %2088 = vmatprep.subr.mxu0 0.0
      %2089 = vmatpush1.msra.mxu0 0.0
      %2090 = vmatprep.subr.mxu0 0.0
      %2091 = vmatpush1.msra.mxu0 0.0
      %2092 = vmatprep.subr.mxu0 0.0
      %2093 = vmatpush1.msra.mxu0 0.0
      %2094 = vmatprep.subr.mxu0 0.0
      %2095 = vmatpush1.msra.mxu0 0.0
      %2096 = vmatprep.subr.mxu0 0.0
      %2097 = vmatpush1.msra.mxu0 0.0
      %2098 = vmatprep.subr.mxu0 0.0
      %2099 = vmatpush1.msra.mxu0 0.0
      %2100 = vmatprep.subr.mxu0 0.0
      %2101 = vmatpush1.msra.mxu0 0.0
      %2102 = vmatprep.subr.mxu0 0.0
      %2103 = vmatpush1.msra.mxu0 0.0
      %2104 = vmatprep.subr.mxu0 0.0
      %2105 = vmatpush1.msra.mxu0 0.0
      %2106 = vmatprep.mubr.f32.mxu0 0.0
      %2107 = vmatmul.mubr.f32.gmra.mrb[0].mxu0 %v615
      %v2108 = vpop.f32.mrb[0].mxu0
      %v2109 = vadd.f32 0.0, %v2108
      %v2110 = vpop.f32.mrb[0].mxu0
      %2111 = vmatprep.mubr.f32.mxu0 0.0
      %2112 = vmatmul.mubr.f32.gmra.mrb[0].mxu0 %v618
      %v2113 = vpop.f32.mrb[0].mxu0
      %v2114 = vadd.f32 0.0, %v2113
      %v2115 = vpop.f32.mrb[0].mxu0
      %2116 = vdwg.mxu0
      %v2118 = vsel %vm583, %v2031, 0
      %v2121 = vsel %vm583, %v2032, 0
      %2123 = vmatprep.subr.mxu0 0.0
      %2124 = vmatpush1.msra.mxu0 %v2109
      %2125 = vmatprep.subr.mxu0 0.0
      %2126 = vmatpush1.msra.mxu0 %v2114
      %2127 = vmatprep.subr.mxu0 0.0
      %2128 = vmatpush1.msra.mxu0 0.0
      %2129 = vmatprep.subr.mxu0 0.0
      %2130 = vmatpush1.msra.mxu0 0.0
      %2131 = vmatprep.subr.mxu0 0.0
      %2132 = vmatpush1.msra.mxu0 0.0
      %2133 = vmatprep.subr.mxu0 0.0
      %2134 = vmatpush1.msra.mxu0 0.0
      %2135 = vmatprep.subr.mxu0 0.0
      %2136 = vmatpush1.msra.mxu0 0.0
      %2137 = vmatprep.subr.mxu0 0.0
      %2138 = vmatpush1.msra.mxu0 0.0
      %2139 = vmatprep.subr.mxu0 0.0
      %2140 = vmatpush1.msra.mxu0 0.0
      %2141 = vmatprep.subr.mxu0 0.0
      %2142 = vmatpush1.msra.mxu0 0.0
      %2143 = vmatprep.subr.mxu0 0.0
      %2144 = vmatpush1.msra.mxu0 0.0
      %2145 = vmatprep.subr.mxu0 0.0
      %2146 = vmatpush1.msra.mxu0 0.0
      %2147 = vmatprep.subr.mxu0 0.0
      %2148 = vmatpush1.msra.mxu0 0.0
      %2149 = vmatprep.subr.mxu0 0.0
      %2150 = vmatpush1.msra.mxu0 0.0
      %2151 = vmatprep.subr.mxu0 0.0
      %2152 = vmatpush1.msra.mxu0 0.0
      %2153 = vmatprep.subr.mxu0 0.0
      %2154 = vmatpush1.msra.mxu0 0.0
      %2155 = vmatprep.subr.mxu0 0.0
      %2156 = vmatpush1.msra.mxu0 0.0
      %2157 = vmatprep.subr.mxu0 0.0
      %2158 = vmatpush1.msra.mxu0 0.0
      %2159 = vmatprep.subr.mxu0 0.0
      %2160 = vmatpush1.msra.mxu0 0.0
      %2161 = vmatprep.subr.mxu0 0.0
      %2162 = vmatpush1.msra.mxu0 0.0
      %2163 = vmatprep.subr.mxu0 0.0
      %2164 = vmatpush1.msra.mxu0 0.0
      %2165 = vmatprep.subr.mxu0 0.0
      %2166 = vmatpush1.msra.mxu0 0.0
      %2167 = vmatprep.subr.mxu0 0.0
      %2168 = vmatpush1.msra.mxu0 0.0
      %2169 = vmatprep.subr.mxu0 0.0
      %2170 = vmatpush1.msra.mxu0 0.0
      %2171 = vmatprep.subr.mxu0 0.0
      %2172 = vmatpush1.msra.mxu0 0.0
      %2173 = vmatprep.subr.mxu0 0.0
      %2174 = vmatpush1.msra.mxu0 0.0
      %2175 = vmatprep.subr.mxu0 0.0
      %2176 = vmatpush1.msra.mxu0 0.0
      %2177 = vmatprep.subr.mxu0 0.0
      %2178 = vmatpush1.msra.mxu0 0.0
      %2179 = vmatprep.subr.mxu0 0.0
      %2180 = vmatpush1.msra.mxu0 0.0
      %2181 = vmatprep.subr.mxu0 0.0
      %2182 = vmatpush1.msra.mxu0 0.0
      %2183 = vmatprep.subr.mxu0 0.0
      %2184 = vmatpush1.msra.mxu0 0.0
      %2185 = vmatprep.subr.mxu0 0.0
      %2186 = vmatpush1.msra.mxu0 0.0
      %2187 = vmatprep.mubr.f32.mxu0 0.0
      %2188 = vmatmul.mubr.f32.gmra.mrb[0].mxu0 %v2118
      %v2189 = vpop.f32.mrb[0].mxu0
      %v2190 = vadd.f32 0.0, %v2189
      %v2191 = vpop.f32.mrb[0].mxu0
      %2192 = vmatprep.mubr.f32.mxu0 0.0
      %2193 = vmatmul.mubr.f32.gmra.mrb[0].mxu0 %v2121
      %v2194 = vpop.f32.mrb[0].mxu0
      %v2195 = vadd.f32 0.0, %v2194
      %v2196 = vpop.f32.mrb[0].mxu0
      %2197 = vdwg.mxu0
      %v2199 = vsel %vm1144, %v2190, 0
      %v2202 = vsel %vm1144, %v2195, 0
      %v2205 = vsel %vm1144, %v2034, 0
      %v2208 = vsel %vm1144, %v2035, 0
      %v2211 = vsel %vm1144, %v2036, 0
      %v2214 = vsel %vm1144, %v2037, 0
      %v2217 = vsel %vm1144, %v2038, 0
      %v2220 = vsel %vm1144, %v2039, 0
      %v2223 = vsel %vm1144, %v2040, 0
      %v2226 = vsel %vm1144, %v2041, 0
      %2228 = vmatprep.subr.mxu0 0.0
      %2229 = vmatpush1.xpose.msra.mxu0 %v2205
      %2230 = vmatprep.subr.mxu0 0.0
      %2231 = vmatpush1.xpose.msra.mxu0 %v2208
      %2232 = vmatprep.subr.mxu0 0.0
      %2233 = vmatpush1.xpose.msra.mxu0 %v2211
      %2234 = vmatprep.subr.mxu0 0.0
      %2235 = vmatpush1.xpose.msra.mxu0 %v2214
      %2236 = vmatprep.subr.mxu0 0.0
      %2237 = vmatpush1.xpose.msra.mxu0 %v2217
      %2238 = vmatprep.subr.mxu0 0.0
      %2239 = vmatpush1.xpose.msra.mxu0 %v2220
      %2240 = vmatprep.subr.mxu0 0.0
      %2241 = vmatpush1.xpose.msra.mxu0 %v2223
      %2242 = vmatprep.subr.mxu0 0.0
      %2243 = vmatpush1.xpose.msra.mxu0 %v2226
      %2244 = vmatprep.subr.mxu0 0.0
      %2245 = vmatpush1.xpose.msra.mxu0 0.0
      %2246 = vmatprep.subr.mxu0 0.0
      %2247 = vmatpush1.xpose.msra.mxu0 0.0
      %2248 = vmatprep.subr.mxu0 0.0
      %2249 = vmatpush1.xpose.msra.mxu0 0.0
      %2250 = vmatprep.subr.mxu0 0.0
      %2251 = vmatpush1.xpose.msra.mxu0 0.0
      %2252 = vmatprep.subr.mxu0 0.0
      %2253 = vmatpush1.xpose.msra.mxu0 0.0
      %2254 = vmatprep.subr.mxu0 0.0
      %2255 = vmatpush1.xpose.msra.mxu0 0.0
      %2256 = vmatprep.subr.mxu0 0.0
      %2257 = vmatpush1.xpose.msra.mxu0 0.0
      %2258 = vmatprep.subr.mxu0 0.0
      %2259 = vmatpush1.xpose.msra.mxu0 0.0
      %2260 = vmatprep.subr.mxu0 0.0
      %2261 = vmatpush1.xpose.msra.mxu0 0.0
      %2262 = vmatprep.subr.mxu0 0.0
      %2263 = vmatpush1.xpose.msra.mxu0 0.0
      %2264 = vmatprep.subr.mxu0 0.0
      %2265 = vmatpush1.xpose.msra.mxu0 0.0
      %2266 = vmatprep.subr.mxu0 0.0
      %2267 = vmatpush1.xpose.msra.mxu0 0.0
      %2268 = vmatprep.subr.mxu0 0.0
      %2269 = vmatpush1.xpose.msra.mxu0 0.0
      %2270 = vmatprep.subr.mxu0 0.0
      %2271 = vmatpush1.xpose.msra.mxu0 0.0
      %2272 = vmatprep.subr.mxu0 0.0
      %2273 = vmatpush1.xpose.msra.mxu0 0.0
      %2274 = vmatprep.subr.mxu0 0.0
      %2275 = vmatpush1.xpose.msra.mxu0 0.0
      %2276 = vmatprep.subr.mxu0 0.0
      %2277 = vmatpush1.xpose.msra.mxu0 0.0
      %2278 = vmatprep.subr.mxu0 0.0
      %2279 = vmatpush1.xpose.msra.mxu0 0.0
      %2280 = vmatprep.subr.mxu0 0.0
      %2281 = vmatpush1.xpose.msra.mxu0 0.0
      %2282 = vmatprep.subr.mxu0 0.0
      %2283 = vmatpush1.xpose.msra.mxu0 0.0
      %2284 = vmatprep.subr.mxu0 0.0
      %2285 = vmatpush1.xpose.msra.mxu0 0.0
      %2286 = vmatprep.subr.mxu0 0.0
      %2287 = vmatpush1.xpose.msra.mxu0 0.0
      %2288 = vmatprep.subr.mxu0 0.0
      %2289 = vmatpush1.xpose.msra.mxu0 0.0
      %2290 = vmatprep.subr.mxu0 0.0
      %2291 = vmatpush1.xpose.msra.mxu0 0.0
      %2292 = vmatprep.mubr.f32.mxu0 0.0
      %2293 = vmatmul.mubr.f32.gmra.mrb[0].mxu0 %v2199
      %v2294 = vpop.f32.mrb[0].mxu0
      %v2295 = vadd.f32 0.0, %v2294
      %v2296 = vpop.f32.mrb[0].mxu0
      %2297 = vmatprep.mubr.f32.mxu0 0.0
      %2298 = vmatmul.mubr.f32.gmra.mrb[0].mxu0 %v2202
      %v2299 = vpop.f32.mrb[0].mxu0
      %v2300 = vadd.f32 0.0, %v2299
      %v2301 = vpop.f32.mrb[0].mxu0
      %2302 = vdwg.mxu0
      %v2303 = vadd.f32 %v1828, %v2295
      %v2304 = vadd.f32 %v1829, %v2300
      %s2305 = scalar_lea.vmem %s3, 256
      %v2306 = vld [vmem:[%s2305] sm:$0xff]
      %v2307 = vld [vmem:[%s2305 + $0x8] sm:$0xff]
      %v2308 = vld [vmem:[%s2305 + $0x10] sm:$0xff]
      %v2309 = vld [vmem:[%s2305 + $0x18] sm:$0xff]
      %v2310 = vld [vmem:[%s2305 + $0x20] sm:$0xff]
      %v2311 = vld [vmem:[%s2305 + $0x28] sm:$0xff]
      %v2312 = vld [vmem:[%s2305 + $0x30] sm:$0xff]
      %v2313 = vld [vmem:[%s2305 + $0x38] sm:$0xff]
      %2314 = vmatprep.subr.mxu0 0.0
      %2315 = vmatpush1.msra.mxu0 %v2306
      %2316 = vmatprep.subr.mxu0 0.0
      %2317 = vmatpush1.msra.mxu0 %v2307
      %2318 = vmatprep.subr.mxu0 0.0
      %2319 = vmatpush1.msra.mxu0 %v2308
      %2320 = vmatprep.subr.mxu0 0.0
      %2321 = vmatpush1.msra.mxu0 %v2309
      %2322 = vmatprep.subr.mxu0 0.0
      %2323 = vmatpush1.msra.mxu0 %v2310
      %2324 = vmatprep.subr.mxu0 0.0
      %2325 = vmatpush1.msra.mxu0 %v2311
      %2326 = vmatprep.subr.mxu0 0.0
      %2327 = vmatpush1.msra.mxu0 %v2312
      %2328 = vmatprep.subr.mxu0 0.0
      %2329 = vmatpush1.msra.mxu0 %v2313
      %2330 = vmatprep.subr.mxu0 0.0
      %2331 = vmatpush1.msra.mxu0 0.0
      %2332 = vmatprep.subr.mxu0 0.0
      %2333 = vmatpush1.msra.mxu0 0.0
      %2334 = vmatprep.subr.mxu0 0.0
      %2335 = vmatpush1.msra.mxu0 0.0
      %2336 = vmatprep.subr.mxu0 0.0
      %2337 = vmatpush1.msra.mxu0 0.0
      %2338 = vmatprep.subr.mxu0 0.0
      %2339 = vmatpush1.msra.mxu0 0.0
      %2340 = vmatprep.subr.mxu0 0.0
      %2341 = vmatpush1.msra.mxu0 0.0
      %2342 = vmatprep.subr.mxu0 0.0
      %2343 = vmatpush1.msra.mxu0 0.0
      %2344 = vmatprep.subr.mxu0 0.0
      %2345 = vmatpush1.msra.mxu0 0.0
      %2346 = vmatprep.subr.mxu0 0.0
      %2347 = vmatpush1.msra.mxu0 0.0
      %2348 = vmatprep.subr.mxu0 0.0
      %2349 = vmatpush1.msra.mxu0 0.0
      %2350 = vmatprep.subr.mxu0 0.0
      %2351 = vmatpush1.msra.mxu0 0.0
      %2352 = vmatprep.subr.mxu0 0.0
      %2353 = vmatpush1.msra.mxu0 0.0
      %2354 = vmatprep.subr.mxu0 0.0
      %2355 = vmatpush1.msra.mxu0 0.0
      %2356 = vmatprep.subr.mxu0 0.0
      %2357 = vmatpush1.msra.mxu0 0.0
      %2358 = vmatprep.subr.mxu0 0.0
      %2359 = vmatpush1.msra.mxu0 0.0
      %2360 = vmatprep.subr.mxu0 0.0
      %2361 = vmatpush1.msra.mxu0 0.0
      %2362 = vmatprep.subr.mxu0 0.0
      %2363 = vmatpush1.msra.mxu0 0.0
      %2364 = vmatprep.subr.mxu0 0.0
      %2365 = vmatpush1.msra.mxu0 0.0
      %2366 = vmatprep.subr.mxu0 0.0
      %2367 = vmatpush1.msra.mxu0 0.0
      %2368 = vmatprep.subr.mxu0 0.0
      %2369 = vmatpush1.msra.mxu0 0.0
      %2370 = vmatprep.subr.mxu0 0.0
      %2371 = vmatpush1.msra.mxu0 0.0
      %2372 = vmatprep.subr.mxu0 0.0
      %2373 = vmatpush1.msra.mxu0 0.0
      %2374 = vmatprep.subr.mxu0 0.0
      %2375 = vmatpush1.msra.mxu0 0.0
      %2376 = vmatprep.subr.mxu0 0.0
      %2377 = vmatpush1.msra.mxu0 0.0
      %2378 = vmatprep.mubr.f32.mxu0 0.0
      %2379 = vmatmul.mubr.f32.gmra.mrb[0].mxu0 %v405
      %v2380 = vpop.f32.mrb[0].mxu0
      %v2381 = vadd.f32 0.0, %v2380
      %v2382 = vpop.f32.mrb[0].mxu0
      %2383 = vmatprep.mubr.f32.mxu0 0.0
      %2384 = vmatmul.mubr.f32.gmra.mrb[0].mxu0 %v408
      %v2385 = vpop.f32.mrb[0].mxu0
      %v2386 = vadd.f32 0.0, %v2385
      %v2387 = vpop.f32.mrb[0].mxu0
      %2388 = vdwg.mxu0
      %s2389 = scalar_lea.vmem %s4, 4
      %v2390 = vld [vmem:[%s2389] sm:$0x1]
      %v2392 = vsel %vm403, %v2390, 0
      %2394 = vmatprep.subr.mxu0 0.0
      %2395 = vmatpush1.xpose.msra.mxu0 %v405
      %2396 = vmatprep.subr.mxu0 0.0
      %2397 = vmatpush1.xpose.msra.mxu0 %v408
      %2398 = vmatprep.subr.mxu0 0.0
      %2399 = vmatpush1.xpose.msra.mxu0 0.0
      %2400 = vmatprep.subr.mxu0 0.0
      %2401 = vmatpush1.xpose.msra.mxu0 0.0
      %2402 = vmatprep.subr.mxu0 0.0
      %2403 = vmatpush1.xpose.msra.mxu0 0.0
      %2404 = vmatprep.subr.mxu0 0.0
      %2405 = vmatpush1.xpose.msra.mxu0 0.0
      %2406 = vmatprep.subr.mxu0 0.0
      %2407 = vmatpush1.xpose.msra.mxu0 0.0
      %2408 = vmatprep.subr.mxu0 0.0
      %2409 = vmatpush1.xpose.msra.mxu0 0.0
      %2410 = vmatprep.subr.mxu0 0.0
      %2411 = vmatpush1.xpose.msra.mxu0 0.0
      %2412 = vmatprep.subr.mxu0 0.0
      %2413 = vmatpush1.xpose.msra.mxu0 0.0
      %2414 = vmatprep.subr.mxu0 0.0
      %2415 = vmatpush1.xpose.msra.mxu0 0.0
      %2416 = vmatprep.subr.mxu0 0.0
      %2417 = vmatpush1.xpose.msra.mxu0 0.0
      %2418 = vmatprep.subr.mxu0 0.0
      %2419 = vmatpush1.xpose.msra.mxu0 0.0
      %2420 = vmatprep.subr.mxu0 0.0
      %2421 = vmatpush1.xpose.msra.mxu0 0.0
      %2422 = vmatprep.subr.mxu0 0.0
      %2423 = vmatpush1.xpose.msra.mxu0 0.0
      %2424 = vmatprep.subr.mxu0 0.0
      %2425 = vmatpush1.xpose.msra.mxu0 0.0
      %2426 = vmatprep.subr.mxu0 0.0
      %2427 = vmatpush1.xpose.msra.mxu0 0.0
      %2428 = vmatprep.subr.mxu0 0.0
      %2429 = vmatpush1.xpose.msra.mxu0 0.0
      %2430 = vmatprep.subr.mxu0 0.0
      %2431 = vmatpush1.xpose.msra.mxu0 0.0
      %2432 = vmatprep.subr.mxu0 0.0
      %2433 = vmatpush1.xpose.msra.mxu0 0.0
      %2434 = vmatprep.subr.mxu0 0.0
      %2435 = vmatpush1.xpose.msra.mxu0 0.0
      %2436 = vmatprep.subr.mxu0 0.0
      %2437 = vmatpush1.xpose.msra.mxu0 0.0
      %2438 = vmatprep.subr.mxu0 0.0
      %2439 = vmatpush1.xpose.msra.mxu0 0.0
      %2440 = vmatprep.subr.mxu0 0.0
      %2441 = vmatpush1.xpose.msra.mxu0 0.0
      %2442 = vmatprep.subr.mxu0 0.0
      %2443 = vmatpush1.xpose.msra.mxu0 0.0
      %2444 = vmatprep.subr.mxu0 0.0
      %2445 = vmatpush1.xpose.msra.mxu0 0.0
      %2446 = vmatprep.subr.mxu0 0.0
      %2447 = vmatpush1.xpose.msra.mxu0 0.0
      %2448 = vmatprep.subr.mxu0 0.0
      %2449 = vmatpush1.xpose.msra.mxu0 0.0
      %2450 = vmatprep.subr.mxu0 0.0
      %2451 = vmatpush1.xpose.msra.mxu0 0.0
      %2452 = vmatprep.subr.mxu0 0.0
      %2453 = vmatpush1.xpose.msra.mxu0 0.0
      %2454 = vmatprep.subr.mxu0 0.0
      %2455 = vmatpush1.xpose.msra.mxu0 0.0
      %2456 = vmatprep.subr.mxu0 0.0
      %2457 = vmatpush1.xpose.msra.mxu0 0.0
      %2458 = vmatprep.mubr.f32.mxu0 0.0
      %2459 = vmatmul.mubr.f32.gmra.mrb[0].mxu0 %v2392
      %v2460 = vpop.f32.mrb[0].mxu0
      %v2461 = vadd.f32 0.0, %v2460
      %v2462 = vpop.f32.mrb[0].mxu0
      %2463 = vdwg.mxu0
      %2465 = vset.pattern.permute.xlu0 0
      %2466 = vperm.xlu0 %2465, %v2381
      %v2467 = vpop.permute.xlu0 %2466
      %2470 = vset.pattern.permute.xlu0 0
      %2471 = vperm.xlu0 %2470, %v2386
      %v2472 = vpop.permute.xlu0 %2471
      %v2474 = vlaneseq
      %v2475 = vshrl.u32 %v2474, 7
      %v2476 = vsub.s32 0, %v2475
      %v2477 = vrot.slane %v2461, %v2476
      %v2478 = vadd.f32 %v2467, %v2477
      %v2479 = vadd.f32 %v2472, %v2477
      %v2480 = vmul.f32 %v2478, 0.2
      %v2481 = vmul.f32 %v2479, 0.2
      %v2482 = vmax.f32 %v2478, %v2480
      %v2483 = vmax.f32 %v2479, %v2481
      %v2484 = vsel %vm579, %v2482, -1e+30
      %v2485 = vsel %vm580, %v2483, -1e+30
      %v2486 = vsel %vm583, %v2484, -inf
      %2487 = vmax.xlane.f32.xlu0 %v2486
      %v2488 = vpop.xlane.xlu0 %2487
      %v2489 = vsel %vm583, %v2485, -inf
      %2490 = vmax.xlane.f32.xlu0 %v2489
      %v2491 = vpop.xlane.xlu0 %2490
      %v2492 = vsub.f32 %v2484, %v2488
      %v2493 = vsub.f32 %v2485, %v2491
      %v2494 = vmul.f32 %v2492, 1.442695
      %v2495 = vpow.pop %v2494
      %v2496 = vmul.f32 %v2493, 1.442695
      %v2497 = vpow.pop %v2496
      %v2498 = vsel %vm583, %v2495, 0.0
      %2499 = vadd.xlane.f32.xlu0 %v2498
      %v2500 = vpop.xlane.xlu0 %2499
      %v2501 = vsel %vm583, %v2497, 0.0
      %2502 = vadd.xlane.f32.xlu0 %v2501
      %v2503 = vpop.xlane.xlu0 %2502
      %v2504 = vrcp.pop %v2500
      %v2505 = vrcp.pop %v2503
      %v2506 = vmul.f32 %v2495, %v2504
      %v2507 = vmul.f32 %v2497, %v2505
      %s2508 = scalar_lea.vmem %s5, 256
      %v2509 = vld [vmem:[%s2508] sm:$0xff]
      %v2510 = vld [vmem:[%s2508 + $0x8] sm:$0xff]
      %v2511 = vld [vmem:[%s2508 + $0x10] sm:$0xff]
      %v2512 = vld [vmem:[%s2508 + $0x18] sm:$0xff]
      %v2513 = vld [vmem:[%s2508 + $0x20] sm:$0xff]
      %v2514 = vld [vmem:[%s2508 + $0x28] sm:$0xff]
      %v2515 = vld [vmem:[%s2508 + $0x30] sm:$0xff]
      %v2516 = vld [vmem:[%s2508 + $0x38] sm:$0xff]
      %2517 = vmatprep.subr.mxu0 0.0
      %2518 = vmatpush1.msra.mxu0 %v2509
      %2519 = vmatprep.subr.mxu0 0.0
      %2520 = vmatpush1.msra.mxu0 %v2510
      %2521 = vmatprep.subr.mxu0 0.0
      %2522 = vmatpush1.msra.mxu0 %v2511
      %2523 = vmatprep.subr.mxu0 0.0
      %2524 = vmatpush1.msra.mxu0 %v2512
      %2525 = vmatprep.subr.mxu0 0.0
      %2526 = vmatpush1.msra.mxu0 %v2513
      %2527 = vmatprep.subr.mxu0 0.0
      %2528 = vmatpush1.msra.mxu0 %v2514
      %2529 = vmatprep.subr.mxu0 0.0
      %2530 = vmatpush1.msra.mxu0 %v2515
      %2531 = vmatprep.subr.mxu0 0.0
      %2532 = vmatpush1.msra.mxu0 %v2516
      %2533 = vmatprep.subr.mxu0 0.0
      %2534 = vmatpush1.msra.mxu0 0.0
      %2535 = vmatprep.subr.mxu0 0.0
      %2536 = vmatpush1.msra.mxu0 0.0
      %2537 = vmatprep.subr.mxu0 0.0
      %2538 = vmatpush1.msra.mxu0 0.0
      %2539 = vmatprep.subr.mxu0 0.0
      %2540 = vmatpush1.msra.mxu0 0.0
      %2541 = vmatprep.subr.mxu0 0.0
      %2542 = vmatpush1.msra.mxu0 0.0
      %2543 = vmatprep.subr.mxu0 0.0
      %2544 = vmatpush1.msra.mxu0 0.0
      %2545 = vmatprep.subr.mxu0 0.0
      %2546 = vmatpush1.msra.mxu0 0.0
      %2547 = vmatprep.subr.mxu0 0.0
      %2548 = vmatpush1.msra.mxu0 0.0
      %2549 = vmatprep.subr.mxu0 0.0
      %2550 = vmatpush1.msra.mxu0 0.0
      %2551 = vmatprep.subr.mxu0 0.0
      %2552 = vmatpush1.msra.mxu0 0.0
      %2553 = vmatprep.subr.mxu0 0.0
      %2554 = vmatpush1.msra.mxu0 0.0
      %2555 = vmatprep.subr.mxu0 0.0
      %2556 = vmatpush1.msra.mxu0 0.0
      %2557 = vmatprep.subr.mxu0 0.0
      %2558 = vmatpush1.msra.mxu0 0.0
      %2559 = vmatprep.subr.mxu0 0.0
      %2560 = vmatpush1.msra.mxu0 0.0
      %2561 = vmatprep.subr.mxu0 0.0
      %2562 = vmatpush1.msra.mxu0 0.0
      %2563 = vmatprep.subr.mxu0 0.0
      %2564 = vmatpush1.msra.mxu0 0.0
      %2565 = vmatprep.subr.mxu0 0.0
      %2566 = vmatpush1.msra.mxu0 0.0
      %2567 = vmatprep.subr.mxu0 0.0
      %2568 = vmatpush1.msra.mxu0 0.0
      %2569 = vmatprep.subr.mxu0 0.0
      %2570 = vmatpush1.msra.mxu0 0.0
      %2571 = vmatprep.subr.mxu0 0.0
      %2572 = vmatpush1.msra.mxu0 0.0
      %2573 = vmatprep.subr.mxu0 0.0
      %2574 = vmatpush1.msra.mxu0 0.0
      %2575 = vmatprep.subr.mxu0 0.0
      %2576 = vmatpush1.msra.mxu0 0.0
      %2577 = vmatprep.subr.mxu0 0.0
      %2578 = vmatpush1.msra.mxu0 0.0
      %2579 = vmatprep.subr.mxu0 0.0
      %2580 = vmatpush1.msra.mxu0 0.0
      %2581 = vmatprep.mubr.f32.mxu0 0.0
      %2582 = vmatmul.mubr.f32.gmra.mrb[0].mxu0 %v615
      %v2583 = vpop.f32.mrb[0].mxu0
      %v2584 = vadd.f32 0.0, %v2583
      %v2585 = vpop.f32.mrb[0].mxu0
      %2586 = vmatprep.mubr.f32.mxu0 0.0
      %2587 = vmatmul.mubr.f32.gmra.mrb[0].mxu0 %v618
      %v2588 = vpop.f32.mrb[0].mxu0
      %v2589 = vadd.f32 0.0, %v2588
      %v2590 = vpop.f32.mrb[0].mxu0
      %2591 = vdwg.mxu0
      %v2593 = vsel %vm583, %v2506, 0
      %v2596 = vsel %vm583, %v2507, 0
      %2598 = vmatprep.subr.mxu0 0.0
      %2599 = vmatpush1.msra.mxu0 %v2584
      %2600 = vmatprep.subr.mxu0 0.0
      %2601 = vmatpush1.msra.mxu0 %v2589
      %2602 = vmatprep.subr.mxu0 0.0
      %2603 = vmatpush1.msra.mxu0 0.0
      %2604 = vmatprep.subr.mxu0 0.0
      %2605 = vmatpush1.msra.mxu0 0.0
      %2606 = vmatprep.subr.mxu0 0.0
      %2607 = vmatpush1.msra.mxu0 0.0
      %2608 = vmatprep.subr.mxu0 0.0
      %2609 = vmatpush1.msra.mxu0 0.0
      %2610 = vmatprep.subr.mxu0 0.0
      %2611 = vmatpush1.msra.mxu0 0.0
      %2612 = vmatprep.subr.mxu0 0.0
      %2613 = vmatpush1.msra.mxu0 0.0
      %2614 = vmatprep.subr.mxu0 0.0
      %2615 = vmatpush1.msra.mxu0 0.0
      %2616 = vmatprep.subr.mxu0 0.0
      %2617 = vmatpush1.msra.mxu0 0.0
      %2618 = vmatprep.subr.mxu0 0.0
      %2619 = vmatpush1.msra.mxu0 0.0
      %2620 = vmatprep.subr.mxu0 0.0
      %2621 = vmatpush1.msra.mxu0 0.0
      %2622 = vmatprep.subr.mxu0 0.0
      %2623 = vmatpush1.msra.mxu0 0.0
      %2624 = vmatprep.subr.mxu0 0.0
      %2625 = vmatpush1.msra.mxu0 0.0
      %2626 = vmatprep.subr.mxu0 0.0
      %2627 = vmatpush1.msra.mxu0 0.0
      %2628 = vmatprep.subr.mxu0 0.0
      %2629 = vmatpush1.msra.mxu0 0.0
      %2630 = vmatprep.subr.mxu0 0.0
      %2631 = vmatpush1.msra.mxu0 0.0
      %2632 = vmatprep.subr.mxu0 0.0
      %2633 = vmatpush1.msra.mxu0 0.0
      %2634 = vmatprep.subr.mxu0 0.0
      %2635 = vmatpush1.msra.mxu0 0.0
      %2636 = vmatprep.subr.mxu0 0.0
      %2637 = vmatpush1.msra.mxu0 0.0
      %2638 = vmatprep.subr.mxu0 0.0
      %2639 = vmatpush1.msra.mxu0 0.0
      %2640 = vmatprep.subr.mxu0 0.0
      %2641 = vmatpush1.msra.mxu0 0.0
      %2642 = vmatprep.subr.mxu0 0.0
      %2643 = vmatpush1.msra.mxu0 0.0
      %2644 = vmatprep.subr.mxu0 0.0
      %2645 = vmatpush1.msra.mxu0 0.0
      %2646 = vmatprep.subr.mxu0 0.0
      %2647 = vmatpush1.msra.mxu0 0.0
      %2648 = vmatprep.subr.mxu0 0.0
      %2649 = vmatpush1.msra.mxu0 0.0
      %2650 = vmatprep.subr.mxu0 0.0
      %2651 = vmatpush1.msra.mxu0 0.0
      %2652 = vmatprep.subr.mxu0 0.0
      %2653 = vmatpush1.msra.mxu0 0.0
      %2654 = vmatprep.subr.mxu0 0.0
      %2655 = vmatpush1.msra.mxu0 0.0
      %2656 = vmatprep.subr.mxu0 0.0
      %2657 = vmatpush1.msra.mxu0 0.0
      %2658 = vmatprep.subr.mxu0 0.0
      %2659 = vmatpush1.msra.mxu0 0.0
      %2660 = vmatprep.subr.mxu0 0.0
      %2661 = vmatpush1.msra.mxu0 0.0
      %2662 = vmatprep.mubr.f32.mxu0 0.0
      %2663 = vmatmul.mubr.f32.gmra.mrb[0].mxu0 %v2593
      %v2664 = vpop.f32.mrb[0].mxu0
      %v2665 = vadd.f32 0.0, %v2664
      %v2666 = vpop.f32.mrb[0].mxu0
      %2667 = vmatprep.mubr.f32.mxu0 0.0
      %2668 = vmatmul.mubr.f32.gmra.mrb[0].mxu0 %v2596
      %v2669 = vpop.f32.mrb[0].mxu0
      %v2670 = vadd.f32 0.0, %v2669
      %v2671 = vpop.f32.mrb[0].mxu0
      %2672 = vdwg.mxu0
      %v2674 = vsel %vm1144, %v2665, 0
      %v2677 = vsel %vm1144, %v2670, 0
      %v2680 = vsel %vm1144, %v2509, 0
      %v2683 = vsel %vm1144, %v2510, 0
      %v2686 = vsel %vm1144, %v2511, 0
      %v2689 = vsel %vm1144, %v2512, 0
      %v2692 = vsel %vm1144, %v2513, 0
      %v2695 = vsel %vm1144, %v2514, 0
      %v2698 = vsel %vm1144, %v2515, 0
      %v2701 = vsel %vm1144, %v2516, 0
      %2703 = vmatprep.subr.mxu0 0.0
      %2704 = vmatpush1.xpose.msra.mxu0 %v2680
      %2705 = vmatprep.subr.mxu0 0.0
      %2706 = vmatpush1.xpose.msra.mxu0 %v2683
      %2707 = vmatprep.subr.mxu0 0.0
      %2708 = vmatpush1.xpose.msra.mxu0 %v2686
      %2709 = vmatprep.subr.mxu0 0.0
      %2710 = vmatpush1.xpose.msra.mxu0 %v2689
      %2711 = vmatprep.subr.mxu0 0.0
      %2712 = vmatpush1.xpose.msra.mxu0 %v2692
      %2713 = vmatprep.subr.mxu0 0.0
      %2714 = vmatpush1.xpose.msra.mxu0 %v2695
      %2715 = vmatprep.subr.mxu0 0.0
      %2716 = vmatpush1.xpose.msra.mxu0 %v2698
      %2717 = vmatprep.subr.mxu0 0.0
      %2718 = vmatpush1.xpose.msra.mxu0 %v2701
      %2719 = vmatprep.subr.mxu0 0.0
      %2720 = vmatpush1.xpose.msra.mxu0 0.0
      %2721 = vmatprep.subr.mxu0 0.0
      %2722 = vmatpush1.xpose.msra.mxu0 0.0
      %2723 = vmatprep.subr.mxu0 0.0
      %2724 = vmatpush1.xpose.msra.mxu0 0.0
      %2725 = vmatprep.subr.mxu0 0.0
      %2726 = vmatpush1.xpose.msra.mxu0 0.0
      %2727 = vmatprep.subr.mxu0 0.0
      %2728 = vmatpush1.xpose.msra.mxu0 0.0
      %2729 = vmatprep.subr.mxu0 0.0
      %2730 = vmatpush1.xpose.msra.mxu0 0.0
      %2731 = vmatprep.subr.mxu0 0.0
      %2732 = vmatpush1.xpose.msra.mxu0 0.0
      %2733 = vmatprep.subr.mxu0 0.0
      %2734 = vmatpush1.xpose.msra.mxu0 0.0
      %2735 = vmatprep.subr.mxu0 0.0
      %2736 = vmatpush1.xpose.msra.mxu0 0.0
      %2737 = vmatprep.subr.mxu0 0.0
      %2738 = vmatpush1.xpose.msra.mxu0 0.0
      %2739 = vmatprep.subr.mxu0 0.0
      %2740 = vmatpush1.xpose.msra.mxu0 0.0
      %2741 = vmatprep.subr.mxu0 0.0
      %2742 = vmatpush1.xpose.msra.mxu0 0.0
      %2743 = vmatprep.subr.mxu0 0.0
      %2744 = vmatpush1.xpose.msra.mxu0 0.0
      %2745 = vmatprep.subr.mxu0 0.0
      %2746 = vmatpush1.xpose.msra.mxu0 0.0
      %2747 = vmatprep.subr.mxu0 0.0
      %2748 = vmatpush1.xpose.msra.mxu0 0.0
      %2749 = vmatprep.subr.mxu0 0.0
      %2750 = vmatpush1.xpose.msra.mxu0 0.0
      %2751 = vmatprep.subr.mxu0 0.0
      %2752 = vmatpush1.xpose.msra.mxu0 0.0
      %2753 = vmatprep.subr.mxu0 0.0
      %2754 = vmatpush1.xpose.msra.mxu0 0.0
      %2755 = vmatprep.subr.mxu0 0.0
      %2756 = vmatpush1.xpose.msra.mxu0 0.0
      %2757 = vmatprep.subr.mxu0 0.0
      %2758 = vmatpush1.xpose.msra.mxu0 0.0
      %2759 = vmatprep.subr.mxu0 0.0
      %2760 = vmatpush1.xpose.msra.mxu0 0.0
      %2761 = vmatprep.subr.mxu0 0.0
      %2762 = vmatpush1.xpose.msra.mxu0 0.0
      %2763 = vmatprep.subr.mxu0 0.0
      %2764 = vmatpush1.xpose.msra.mxu0 0.0
      %2765 = vmatprep.subr.mxu0 0.0
      %2766 = vmatpush1.xpose.msra.mxu0 0.0
      %2767 = vmatprep.mubr.f32.mxu0 0.0
      %2768 = vmatmul.mubr.f32.gmra.mrb[0].mxu0 %v2674
      %v2769 = vpop.f32.mrb[0].mxu0
      %v2770 = vadd.f32 0.0, %v2769
      %v2771 = vpop.f32.mrb[0].mxu0
      %2772 = vmatprep.mubr.f32.mxu0 0.0
      %2773 = vmatmul.mubr.f32.gmra.mrb[0].mxu0 %v2677
      %v2774 = vpop.f32.mrb[0].mxu0
      %v2775 = vadd.f32 0.0, %v2774
      %v2776 = vpop.f32.mrb[0].mxu0
      %2777 = vdwg.mxu0
      %v2778 = vadd.f32 %v2303, %v2770
      %v2779 = vadd.f32 %v2304, %v2775
      %s2780 = scalar_lea.vmem %s3, 320
      %v2781 = vld [vmem:[%s2780] sm:$0xff]
      %v2782 = vld [vmem:[%s2780 + $0x8] sm:$0xff]
      %v2783 = vld [vmem:[%s2780 + $0x10] sm:$0xff]
      %v2784 = vld [vmem:[%s2780 + $0x18] sm:$0xff]
      %v2785 = vld [vmem:[%s2780 + $0x20] sm:$0xff]
      %v2786 = vld [vmem:[%s2780 + $0x28] sm:$0xff]
      %v2787 = vld [vmem:[%s2780 + $0x30] sm:$0xff]
      %v2788 = vld [vmem:[%s2780 + $0x38] sm:$0xff]
      %2789 = vmatprep.subr.mxu0 0.0
      %2790 = vmatpush1.msra.mxu0 %v2781
      %2791 = vmatprep.subr.mxu0 0.0
      %2792 = vmatpush1.msra.mxu0 %v2782
      %2793 = vmatprep.subr.mxu0 0.0
      %2794 = vmatpush1.msra.mxu0 %v2783
      %2795 = vmatprep.subr.mxu0 0.0
      %2796 = vmatpush1.msra.mxu0 %v2784
      %2797 = vmatprep.subr.mxu0 0.0
      %2798 = vmatpush1.msra.mxu0 %v2785
      %2799 = vmatprep.subr.mxu0 0.0
      %2800 = vmatpush1.msra.mxu0 %v2786
      %2801 = vmatprep.subr.mxu0 0.0
      %2802 = vmatpush1.msra.mxu0 %v2787
      %2803 = vmatprep.subr.mxu0 0.0
      %2804 = vmatpush1.msra.mxu0 %v2788
      %2805 = vmatprep.subr.mxu0 0.0
      %2806 = vmatpush1.msra.mxu0 0.0
      %2807 = vmatprep.subr.mxu0 0.0
      %2808 = vmatpush1.msra.mxu0 0.0
      %2809 = vmatprep.subr.mxu0 0.0
      %2810 = vmatpush1.msra.mxu0 0.0
      %2811 = vmatprep.subr.mxu0 0.0
      %2812 = vmatpush1.msra.mxu0 0.0
      %2813 = vmatprep.subr.mxu0 0.0
      %2814 = vmatpush1.msra.mxu0 0.0
      %2815 = vmatprep.subr.mxu0 0.0
      %2816 = vmatpush1.msra.mxu0 0.0
      %2817 = vmatprep.subr.mxu0 0.0
      %2818 = vmatpush1.msra.mxu0 0.0
      %2819 = vmatprep.subr.mxu0 0.0
      %2820 = vmatpush1.msra.mxu0 0.0
      %2821 = vmatprep.subr.mxu0 0.0
      %2822 = vmatpush1.msra.mxu0 0.0
      %2823 = vmatprep.subr.mxu0 0.0
      %2824 = vmatpush1.msra.mxu0 0.0
      %2825 = vmatprep.subr.mxu0 0.0
      %2826 = vmatpush1.msra.mxu0 0.0
      %2827 = vmatprep.subr.mxu0 0.0
      %2828 = vmatpush1.msra.mxu0 0.0
      %2829 = vmatprep.subr.mxu0 0.0
      %2830 = vmatpush1.msra.mxu0 0.0
      %2831 = vmatprep.subr.mxu0 0.0
      %2832 = vmatpush1.msra.mxu0 0.0
      %2833 = vmatprep.subr.mxu0 0.0
      %2834 = vmatpush1.msra.mxu0 0.0
      %2835 = vmatprep.subr.mxu0 0.0
      %2836 = vmatpush1.msra.mxu0 0.0
      %2837 = vmatprep.subr.mxu0 0.0
      %2838 = vmatpush1.msra.mxu0 0.0
      %2839 = vmatprep.subr.mxu0 0.0
      %2840 = vmatpush1.msra.mxu0 0.0
      %2841 = vmatprep.subr.mxu0 0.0
      %2842 = vmatpush1.msra.mxu0 0.0
      %2843 = vmatprep.subr.mxu0 0.0
      %2844 = vmatpush1.msra.mxu0 0.0
      %2845 = vmatprep.subr.mxu0 0.0
      %2846 = vmatpush1.msra.mxu0 0.0
      %2847 = vmatprep.subr.mxu0 0.0
      %2848 = vmatpush1.msra.mxu0 0.0
      %2849 = vmatprep.subr.mxu0 0.0
      %2850 = vmatpush1.msra.mxu0 0.0
      %2851 = vmatprep.subr.mxu0 0.0
      %2852 = vmatpush1.msra.mxu0 0.0
      %2853 = vmatprep.mubr.f32.mxu0 0.0
      %2854 = vmatmul.mubr.f32.gmra.mrb[0].mxu0 %v405
      %v2855 = vpop.f32.mrb[0].mxu0
      %v2856 = vadd.f32 0.0, %v2855
      %v2857 = vpop.f32.mrb[0].mxu0
      %2858 = vmatprep.mubr.f32.mxu0 0.0
      %2859 = vmatmul.mubr.f32.gmra.mrb[0].mxu0 %v408
      %v2860 = vpop.f32.mrb[0].mxu0
      %v2861 = vadd.f32 0.0, %v2860
      %v2862 = vpop.f32.mrb[0].mxu0
      %2863 = vdwg.mxu0
      %s2864 = scalar_lea.vmem %s4, 5
      %v2865 = vld [vmem:[%s2864] sm:$0x1]
      %v2867 = vsel %vm403, %v2865, 0
      %2869 = vmatprep.subr.mxu0 0.0
      %2870 = vmatpush1.xpose.msra.mxu0 %v405
      %2871 = vmatprep.subr.mxu0 0.0
      %2872 = vmatpush1.xpose.msra.mxu0 %v408
      %2873 = vmatprep.subr.mxu0 0.0
      %2874 = vmatpush1.xpose.msra.mxu0 0.0
      %2875 = vmatprep.subr.mxu0 0.0
      %2876 = vmatpush1.xpose.msra.mxu0 0.0
      %2877 = vmatprep.subr.mxu0 0.0
      %2878 = vmatpush1.xpose.msra.mxu0 0.0
      %2879 = vmatprep.subr.mxu0 0.0
      %2880 = vmatpush1.xpose.msra.mxu0 0.0
      %2881 = vmatprep.subr.mxu0 0.0
      %2882 = vmatpush1.xpose.msra.mxu0 0.0
      %2883 = vmatprep.subr.mxu0 0.0
      %2884 = vmatpush1.xpose.msra.mxu0 0.0
      %2885 = vmatprep.subr.mxu0 0.0
      %2886 = vmatpush1.xpose.msra.mxu0 0.0
      %2887 = vmatprep.subr.mxu0 0.0
      %2888 = vmatpush1.xpose.msra.mxu0 0.0
      %2889 = vmatprep.subr.mxu0 0.0
      %2890 = vmatpush1.xpose.msra.mxu0 0.0
      %2891 = vmatprep.subr.mxu0 0.0
      %2892 = vmatpush1.xpose.msra.mxu0 0.0
      %2893 = vmatprep.subr.mxu0 0.0
      %2894 = vmatpush1.xpose.msra.mxu0 0.0
      %2895 = vmatprep.subr.mxu0 0.0
      %2896 = vmatpush1.xpose.msra.mxu0 0.0
      %2897 = vmatprep.subr.mxu0 0.0
      %2898 = vmatpush1.xpose.msra.mxu0 0.0
      %2899 = vmatprep.subr.mxu0 0.0
      %2900 = vmatpush1.xpose.msra.mxu0 0.0
      %2901 = vmatprep.subr.mxu0 0.0
      %2902 = vmatpush1.xpose.msra.mxu0 0.0
      %2903 = vmatprep.subr.mxu0 0.0
      %2904 = vmatpush1.xpose.msra.mxu0 0.0
      %2905 = vmatprep.subr.mxu0 0.0
      %2906 = vmatpush1.xpose.msra.mxu0 0.0
      %2907 = vmatprep.subr.mxu0 0.0
      %2908 = vmatpush1.xpose.msra.mxu0 0.0
      %2909 = vmatprep.subr.mxu0 0.0
      %2910 = vmatpush1.xpose.msra.mxu0 0.0
      %2911 = vmatprep.subr.mxu0 0.0
      %2912 = vmatpush1.xpose.msra.mxu0 0.0
      %2913 = vmatprep.subr.mxu0 0.0
      %2914 = vmatpush1.xpose.msra.mxu0 0.0
      %2915 = vmatprep.subr.mxu0 0.0
      %2916 = vmatpush1.xpose.msra.mxu0 0.0
      %2917 = vmatprep.subr.mxu0 0.0
      %2918 = vmatpush1.xpose.msra.mxu0 0.0
      %2919 = vmatprep.subr.mxu0 0.0
      %2920 = vmatpush1.xpose.msra.mxu0 0.0
      %2921 = vmatprep.subr.mxu0 0.0
      %2922 = vmatpush1.xpose.msra.mxu0 0.0
      %2923 = vmatprep.subr.mxu0 0.0
      %2924 = vmatpush1.xpose.msra.mxu0 0.0
      %2925 = vmatprep.subr.mxu0 0.0
      %2926 = vmatpush1.xpose.msra.mxu0 0.0
      %2927 = vmatprep.subr.mxu0 0.0
      %2928 = vmatpush1.xpose.msra.mxu0 0.0
      %2929 = vmatprep.subr.mxu0 0.0
      %2930 = vmatpush1.xpose.msra.mxu0 0.0
      %2931 = vmatprep.subr.mxu0 0.0
      %2932 = vmatpush1.xpose.msra.mxu0 0.0
      %2933 = vmatprep.mubr.f32.mxu0 0.0
      %2934 = vmatmul.mubr.f32.gmra.mrb[0].mxu0 %v2867
      %v2935 = vpop.f32.mrb[0].mxu0
      %v2936 = vadd.f32 0.0, %v2935
      %v2937 = vpop.f32.mrb[0].mxu0
      %2938 = vdwg.mxu0
      %2940 = vset.pattern.permute.xlu0 0
      %2941 = vperm.xlu0 %2940, %v2856
      %v2942 = vpop.permute.xlu0 %2941
      %2945 = vset.pattern.permute.xlu0 0
      %2946 = vperm.xlu0 %2945, %v2861
      %v2947 = vpop.permute.xlu0 %2946
      %v2949 = vlaneseq
      %v2950 = vshrl.u32 %v2949, 7
      %v2951 = vsub.s32 0, %v2950
      %v2952 = vrot.slane %v2936, %v2951
      %v2953 = vadd.f32 %v2942, %v2952
      %v2954 = vadd.f32 %v2947, %v2952
      %v2955 = vmul.f32 %v2953, 0.2
      %v2956 = vmul.f32 %v2954, 0.2
      %v2957 = vmax.f32 %v2953, %v2955
      %v2958 = vmax.f32 %v2954, %v2956
      %v2959 = vsel %vm579, %v2957, -1e+30
      %v2960 = vsel %vm580, %v2958, -1e+30
      %v2961 = vsel %vm583, %v2959, -inf
      %2962 = vmax.xlane.f32.xlu0 %v2961
      %v2963 = vpop.xlane.xlu0 %2962
      %v2964 = vsel %vm583, %v2960, -inf
      %2965 = vmax.xlane.f32.xlu0 %v2964
      %v2966 = vpop.xlane.xlu0 %2965
      %v2967 = vsub.f32 %v2959, %v2963
      %v2968 = vsub.f32 %v2960, %v2966
      %v2969 = vmul.f32 %v2967, 1.442695
      %v2970 = vpow.pop %v2969
      %v2971 = vmul.f32 %v2968, 1.442695
      %v2972 = vpow.pop %v2971
      %v2973 = vsel %vm583, %v2970, 0.0
      %2974 = vadd.xlane.f32.xlu0 %v2973
      %v2975 = vpop.xlane.xlu0 %2974
      %v2976 = vsel %vm583, %v2972, 0.0
      %2977 = vadd.xlane.f32.xlu0 %v2976
      %v2978 = vpop.xlane.xlu0 %2977
      %v2979 = vrcp.pop %v2975
      %v2980 = vrcp.pop %v2978
      %v2981 = vmul.f32 %v2970, %v2979
      %v2982 = vmul.f32 %v2972, %v2980
      %s2983 = scalar_lea.vmem %s5, 320
      %v2984 = vld [vmem:[%s2983] sm:$0xff]
      %v2985 = vld [vmem:[%s2983 + $0x8] sm:$0xff]
      %v2986 = vld [vmem:[%s2983 + $0x10] sm:$0xff]
      %v2987 = vld [vmem:[%s2983 + $0x18] sm:$0xff]
      %v2988 = vld [vmem:[%s2983 + $0x20] sm:$0xff]
      %v2989 = vld [vmem:[%s2983 + $0x28] sm:$0xff]
      %v2990 = vld [vmem:[%s2983 + $0x30] sm:$0xff]
      %v2991 = vld [vmem:[%s2983 + $0x38] sm:$0xff]
      %2992 = vmatprep.subr.mxu0 0.0
      %2993 = vmatpush1.msra.mxu0 %v2984
      %2994 = vmatprep.subr.mxu0 0.0
      %2995 = vmatpush1.msra.mxu0 %v2985
      %2996 = vmatprep.subr.mxu0 0.0
      %2997 = vmatpush1.msra.mxu0 %v2986
      %2998 = vmatprep.subr.mxu0 0.0
      %2999 = vmatpush1.msra.mxu0 %v2987
      %3000 = vmatprep.subr.mxu0 0.0
      %3001 = vmatpush1.msra.mxu0 %v2988
      %3002 = vmatprep.subr.mxu0 0.0
      %3003 = vmatpush1.msra.mxu0 %v2989
      %3004 = vmatprep.subr.mxu0 0.0
      %3005 = vmatpush1.msra.mxu0 %v2990
      %3006 = vmatprep.subr.mxu0 0.0
      %3007 = vmatpush1.msra.mxu0 %v2991
      %3008 = vmatprep.subr.mxu0 0.0
      %3009 = vmatpush1.msra.mxu0 0.0
      %3010 = vmatprep.subr.mxu0 0.0
      %3011 = vmatpush1.msra.mxu0 0.0
      %3012 = vmatprep.subr.mxu0 0.0
      %3013 = vmatpush1.msra.mxu0 0.0
      %3014 = vmatprep.subr.mxu0 0.0
      %3015 = vmatpush1.msra.mxu0 0.0
      %3016 = vmatprep.subr.mxu0 0.0
      %3017 = vmatpush1.msra.mxu0 0.0
      %3018 = vmatprep.subr.mxu0 0.0
      %3019 = vmatpush1.msra.mxu0 0.0
      %3020 = vmatprep.subr.mxu0 0.0
      %3021 = vmatpush1.msra.mxu0 0.0
      %3022 = vmatprep.subr.mxu0 0.0
      %3023 = vmatpush1.msra.mxu0 0.0
      %3024 = vmatprep.subr.mxu0 0.0
      %3025 = vmatpush1.msra.mxu0 0.0
      %3026 = vmatprep.subr.mxu0 0.0
      %3027 = vmatpush1.msra.mxu0 0.0
      %3028 = vmatprep.subr.mxu0 0.0
      %3029 = vmatpush1.msra.mxu0 0.0
      %3030 = vmatprep.subr.mxu0 0.0
      %3031 = vmatpush1.msra.mxu0 0.0
      %3032 = vmatprep.subr.mxu0 0.0
      %3033 = vmatpush1.msra.mxu0 0.0
      %3034 = vmatprep.subr.mxu0 0.0
      %3035 = vmatpush1.msra.mxu0 0.0
      %3036 = vmatprep.subr.mxu0 0.0
      %3037 = vmatpush1.msra.mxu0 0.0
      %3038 = vmatprep.subr.mxu0 0.0
      %3039 = vmatpush1.msra.mxu0 0.0
      %3040 = vmatprep.subr.mxu0 0.0
      %3041 = vmatpush1.msra.mxu0 0.0
      %3042 = vmatprep.subr.mxu0 0.0
      %3043 = vmatpush1.msra.mxu0 0.0
      %3044 = vmatprep.subr.mxu0 0.0
      %3045 = vmatpush1.msra.mxu0 0.0
      %3046 = vmatprep.subr.mxu0 0.0
      %3047 = vmatpush1.msra.mxu0 0.0
      %3048 = vmatprep.subr.mxu0 0.0
      %3049 = vmatpush1.msra.mxu0 0.0
      %3050 = vmatprep.subr.mxu0 0.0
      %3051 = vmatpush1.msra.mxu0 0.0
      %3052 = vmatprep.subr.mxu0 0.0
      %3053 = vmatpush1.msra.mxu0 0.0
      %3054 = vmatprep.subr.mxu0 0.0
      %3055 = vmatpush1.msra.mxu0 0.0
      %3056 = vmatprep.mubr.f32.mxu0 0.0
      %3057 = vmatmul.mubr.f32.gmra.mrb[0].mxu0 %v615
      %v3058 = vpop.f32.mrb[0].mxu0
      %v3059 = vadd.f32 0.0, %v3058
      %v3060 = vpop.f32.mrb[0].mxu0
      %3061 = vmatprep.mubr.f32.mxu0 0.0
      %3062 = vmatmul.mubr.f32.gmra.mrb[0].mxu0 %v618
      %v3063 = vpop.f32.mrb[0].mxu0
      %v3064 = vadd.f32 0.0, %v3063
      %v3065 = vpop.f32.mrb[0].mxu0
      %3066 = vdwg.mxu0
      %v3068 = vsel %vm583, %v2981, 0
      %v3071 = vsel %vm583, %v2982, 0
      %3073 = vmatprep.subr.mxu0 0.0
      %3074 = vmatpush1.msra.mxu0 %v3059
      %3075 = vmatprep.subr.mxu0 0.0
      %3076 = vmatpush1.msra.mxu0 %v3064
      %3077 = vmatprep.subr.mxu0 0.0
      %3078 = vmatpush1.msra.mxu0 0.0
      %3079 = vmatprep.subr.mxu0 0.0
      %3080 = vmatpush1.msra.mxu0 0.0
      %3081 = vmatprep.subr.mxu0 0.0
      %3082 = vmatpush1.msra.mxu0 0.0
      %3083 = vmatprep.subr.mxu0 0.0
      %3084 = vmatpush1.msra.mxu0 0.0
      %3085 = vmatprep.subr.mxu0 0.0
      %3086 = vmatpush1.msra.mxu0 0.0
      %3087 = vmatprep.subr.mxu0 0.0
      %3088 = vmatpush1.msra.mxu0 0.0
      %3089 = vmatprep.subr.mxu0 0.0
      %3090 = vmatpush1.msra.mxu0 0.0
      %3091 = vmatprep.subr.mxu0 0.0
      %3092 = vmatpush1.msra.mxu0 0.0
      %3093 = vmatprep.subr.mxu0 0.0
      %3094 = vmatpush1.msra.mxu0 0.0
      %3095 = vmatprep.subr.mxu0 0.0
      %3096 = vmatpush1.msra.mxu0 0.0
      %3097 = vmatprep.subr.mxu0 0.0
      %3098 = vmatpush1.msra.mxu0 0.0
      %3099 = vmatprep.subr.mxu0 0.0
      %3100 = vmatpush1.msra.mxu0 0.0
      %3101 = vmatprep.subr.mxu0 0.0
      %3102 = vmatpush1.msra.mxu0 0.0
      %3103 = vmatprep.subr.mxu0 0.0
      %3104 = vmatpush1.msra.mxu0 0.0
      %3105 = vmatprep.subr.mxu0 0.0
      %3106 = vmatpush1.msra.mxu0 0.0
      %3107 = vmatprep.subr.mxu0 0.0
      %3108 = vmatpush1.msra.mxu0 0.0
      %3109 = vmatprep.subr.mxu0 0.0
      %3110 = vmatpush1.msra.mxu0 0.0
      %3111 = vmatprep.subr.mxu0 0.0
      %3112 = vmatpush1.msra.mxu0 0.0
      %3113 = vmatprep.subr.mxu0 0.0
      %3114 = vmatpush1.msra.mxu0 0.0
      %3115 = vmatprep.subr.mxu0 0.0
      %3116 = vmatpush1.msra.mxu0 0.0
      %3117 = vmatprep.subr.mxu0 0.0
      %3118 = vmatpush1.msra.mxu0 0.0
      %3119 = vmatprep.subr.mxu0 0.0
      %3120 = vmatpush1.msra.mxu0 0.0
      %3121 = vmatprep.subr.mxu0 0.0
      %3122 = vmatpush1.msra.mxu0 0.0
      %3123 = vmatprep.subr.mxu0 0.0
      %3124 = vmatpush1.msra.mxu0 0.0
      %3125 = vmatprep.subr.mxu0 0.0
      %3126 = vmatpush1.msra.mxu0 0.0
      %3127 = vmatprep.subr.mxu0 0.0
      %3128 = vmatpush1.msra.mxu0 0.0
      %3129 = vmatprep.subr.mxu0 0.0
      %3130 = vmatpush1.msra.mxu0 0.0
      %3131 = vmatprep.subr.mxu0 0.0
      %3132 = vmatpush1.msra.mxu0 0.0
      %3133 = vmatprep.subr.mxu0 0.0
      %3134 = vmatpush1.msra.mxu0 0.0
      %3135 = vmatprep.subr.mxu0 0.0
      %3136 = vmatpush1.msra.mxu0 0.0
      %3137 = vmatprep.mubr.f32.mxu0 0.0
      %3138 = vmatmul.mubr.f32.gmra.mrb[0].mxu0 %v3068
      %v3139 = vpop.f32.mrb[0].mxu0
      %v3140 = vadd.f32 0.0, %v3139
      %v3141 = vpop.f32.mrb[0].mxu0
      %3142 = vmatprep.mubr.f32.mxu0 0.0
      %3143 = vmatmul.mubr.f32.gmra.mrb[0].mxu0 %v3071
      %v3144 = vpop.f32.mrb[0].mxu0
      %v3145 = vadd.f32 0.0, %v3144
      %v3146 = vpop.f32.mrb[0].mxu0
      %3147 = vdwg.mxu0
      %v3149 = vsel %vm1144, %v3140, 0
      %v3152 = vsel %vm1144, %v3145, 0
      %v3155 = vsel %vm1144, %v2984, 0
      %v3158 = vsel %vm1144, %v2985, 0
      %v3161 = vsel %vm1144, %v2986, 0
      %v3164 = vsel %vm1144, %v2987, 0
      %v3167 = vsel %vm1144, %v2988, 0
      %v3170 = vsel %vm1144, %v2989, 0
      %v3173 = vsel %vm1144, %v2990, 0
      %v3176 = vsel %vm1144, %v2991, 0
      %3178 = vmatprep.subr.mxu0 0.0
      %3179 = vmatpush1.xpose.msra.mxu0 %v3155
      %3180 = vmatprep.subr.mxu0 0.0
      %3181 = vmatpush1.xpose.msra.mxu0 %v3158
      %3182 = vmatprep.subr.mxu0 0.0
      %3183 = vmatpush1.xpose.msra.mxu0 %v3161
      %3184 = vmatprep.subr.mxu0 0.0
      %3185 = vmatpush1.xpose.msra.mxu0 %v3164
      %3186 = vmatprep.subr.mxu0 0.0
      %3187 = vmatpush1.xpose.msra.mxu0 %v3167
      %3188 = vmatprep.subr.mxu0 0.0
      %3189 = vmatpush1.xpose.msra.mxu0 %v3170
      %3190 = vmatprep.subr.mxu0 0.0
      %3191 = vmatpush1.xpose.msra.mxu0 %v3173
      %3192 = vmatprep.subr.mxu0 0.0
      %3193 = vmatpush1.xpose.msra.mxu0 %v3176
      %3194 = vmatprep.subr.mxu0 0.0
      %3195 = vmatpush1.xpose.msra.mxu0 0.0
      %3196 = vmatprep.subr.mxu0 0.0
      %3197 = vmatpush1.xpose.msra.mxu0 0.0
      %3198 = vmatprep.subr.mxu0 0.0
      %3199 = vmatpush1.xpose.msra.mxu0 0.0
      %3200 = vmatprep.subr.mxu0 0.0
      %3201 = vmatpush1.xpose.msra.mxu0 0.0
      %3202 = vmatprep.subr.mxu0 0.0
      %3203 = vmatpush1.xpose.msra.mxu0 0.0
      %3204 = vmatprep.subr.mxu0 0.0
      %3205 = vmatpush1.xpose.msra.mxu0 0.0
      %3206 = vmatprep.subr.mxu0 0.0
      %3207 = vmatpush1.xpose.msra.mxu0 0.0
      %3208 = vmatprep.subr.mxu0 0.0
      %3209 = vmatpush1.xpose.msra.mxu0 0.0
      %3210 = vmatprep.subr.mxu0 0.0
      %3211 = vmatpush1.xpose.msra.mxu0 0.0
      %3212 = vmatprep.subr.mxu0 0.0
      %3213 = vmatpush1.xpose.msra.mxu0 0.0
      %3214 = vmatprep.subr.mxu0 0.0
      %3215 = vmatpush1.xpose.msra.mxu0 0.0
      %3216 = vmatprep.subr.mxu0 0.0
      %3217 = vmatpush1.xpose.msra.mxu0 0.0
      %3218 = vmatprep.subr.mxu0 0.0
      %3219 = vmatpush1.xpose.msra.mxu0 0.0
      %3220 = vmatprep.subr.mxu0 0.0
      %3221 = vmatpush1.xpose.msra.mxu0 0.0
      %3222 = vmatprep.subr.mxu0 0.0
      %3223 = vmatpush1.xpose.msra.mxu0 0.0
      %3224 = vmatprep.subr.mxu0 0.0
      %3225 = vmatpush1.xpose.msra.mxu0 0.0
      %3226 = vmatprep.subr.mxu0 0.0
      %3227 = vmatpush1.xpose.msra.mxu0 0.0
      %3228 = vmatprep.subr.mxu0 0.0
      %3229 = vmatpush1.xpose.msra.mxu0 0.0
      %3230 = vmatprep.subr.mxu0 0.0
      %3231 = vmatpush1.xpose.msra.mxu0 0.0
      %3232 = vmatprep.subr.mxu0 0.0
      %3233 = vmatpush1.xpose.msra.mxu0 0.0
      %3234 = vmatprep.subr.mxu0 0.0
      %3235 = vmatpush1.xpose.msra.mxu0 0.0
      %3236 = vmatprep.subr.mxu0 0.0
      %3237 = vmatpush1.xpose.msra.mxu0 0.0
      %3238 = vmatprep.subr.mxu0 0.0
      %3239 = vmatpush1.xpose.msra.mxu0 0.0
      %3240 = vmatprep.subr.mxu0 0.0
      %3241 = vmatpush1.xpose.msra.mxu0 0.0
      %3242 = vmatprep.mubr.f32.mxu0 0.0
      %3243 = vmatmul.mubr.f32.gmra.mrb[0].mxu0 %v3149
      %v3244 = vpop.f32.mrb[0].mxu0
      %v3245 = vadd.f32 0.0, %v3244
      %v3246 = vpop.f32.mrb[0].mxu0
      %3247 = vmatprep.mubr.f32.mxu0 0.0
      %3248 = vmatmul.mubr.f32.gmra.mrb[0].mxu0 %v3152
      %v3249 = vpop.f32.mrb[0].mxu0
      %v3250 = vadd.f32 0.0, %v3249
      %v3251 = vpop.f32.mrb[0].mxu0
      %3252 = vdwg.mxu0
      %v3253 = vadd.f32 %v2778, %v3245
      %v3254 = vadd.f32 %v2779, %v3250
      %s3255 = scalar_lea.vmem %s3, 384
      %v3256 = vld [vmem:[%s3255] sm:$0xff]
      %v3257 = vld [vmem:[%s3255 + $0x8] sm:$0xff]
      %v3258 = vld [vmem:[%s3255 + $0x10] sm:$0xff]
      %v3259 = vld [vmem:[%s3255 + $0x18] sm:$0xff]
      %v3260 = vld [vmem:[%s3255 + $0x20] sm:$0xff]
      %v3261 = vld [vmem:[%s3255 + $0x28] sm:$0xff]
      %v3262 = vld [vmem:[%s3255 + $0x30] sm:$0xff]
      %v3263 = vld [vmem:[%s3255 + $0x38] sm:$0xff]
      %3264 = vmatprep.subr.mxu0 0.0
      %3265 = vmatpush1.msra.mxu0 %v3256
      %3266 = vmatprep.subr.mxu0 0.0
      %3267 = vmatpush1.msra.mxu0 %v3257
      %3268 = vmatprep.subr.mxu0 0.0
      %3269 = vmatpush1.msra.mxu0 %v3258
      %3270 = vmatprep.subr.mxu0 0.0
      %3271 = vmatpush1.msra.mxu0 %v3259
      %3272 = vmatprep.subr.mxu0 0.0
      %3273 = vmatpush1.msra.mxu0 %v3260
      %3274 = vmatprep.subr.mxu0 0.0
      %3275 = vmatpush1.msra.mxu0 %v3261
      %3276 = vmatprep.subr.mxu0 0.0
      %3277 = vmatpush1.msra.mxu0 %v3262
      %3278 = vmatprep.subr.mxu0 0.0
      %3279 = vmatpush1.msra.mxu0 %v3263
      %3280 = vmatprep.subr.mxu0 0.0
      %3281 = vmatpush1.msra.mxu0 0.0
      %3282 = vmatprep.subr.mxu0 0.0
      %3283 = vmatpush1.msra.mxu0 0.0
      %3284 = vmatprep.subr.mxu0 0.0
      %3285 = vmatpush1.msra.mxu0 0.0
      %3286 = vmatprep.subr.mxu0 0.0
      %3287 = vmatpush1.msra.mxu0 0.0
      %3288 = vmatprep.subr.mxu0 0.0
      %3289 = vmatpush1.msra.mxu0 0.0
      %3290 = vmatprep.subr.mxu0 0.0
      %3291 = vmatpush1.msra.mxu0 0.0
      %3292 = vmatprep.subr.mxu0 0.0
      %3293 = vmatpush1.msra.mxu0 0.0
      %3294 = vmatprep.subr.mxu0 0.0
      %3295 = vmatpush1.msra.mxu0 0.0
      %3296 = vmatprep.subr.mxu0 0.0
      %3297 = vmatpush1.msra.mxu0 0.0
      %3298 = vmatprep.subr.mxu0 0.0
      %3299 = vmatpush1.msra.mxu0 0.0
      %3300 = vmatprep.subr.mxu0 0.0
      %3301 = vmatpush1.msra.mxu0 0.0
      %3302 = vmatprep.subr.mxu0 0.0
      %3303 = vmatpush1.msra.mxu0 0.0
      %3304 = vmatprep.subr.mxu0 0.0
      %3305 = vmatpush1.msra.mxu0 0.0
      %3306 = vmatprep.subr.mxu0 0.0
      %3307 = vmatpush1.msra.mxu0 0.0
      %3308 = vmatprep.subr.mxu0 0.0
      %3309 = vmatpush1.msra.mxu0 0.0
      %3310 = vmatprep.subr.mxu0 0.0
      %3311 = vmatpush1.msra.mxu0 0.0
      %3312 = vmatprep.subr.mxu0 0.0
      %3313 = vmatpush1.msra.mxu0 0.0
      %3314 = vmatprep.subr.mxu0 0.0
      %3315 = vmatpush1.msra.mxu0 0.0
      %3316 = vmatprep.subr.mxu0 0.0
      %3317 = vmatpush1.msra.mxu0 0.0
      %3318 = vmatprep.subr.mxu0 0.0
      %3319 = vmatpush1.msra.mxu0 0.0
      %3320 = vmatprep.subr.mxu0 0.0
      %3321 = vmatpush1.msra.mxu0 0.0
      %3322 = vmatprep.subr.mxu0 0.0
      %3323 = vmatpush1.msra.mxu0 0.0
      %3324 = vmatprep.subr.mxu0 0.0
      %3325 = vmatpush1.msra.mxu0 0.0
      %3326 = vmatprep.subr.mxu0 0.0
      %3327 = vmatpush1.msra.mxu0 0.0
      %3328 = vmatprep.mubr.f32.mxu0 0.0
      %3329 = vmatmul.mubr.f32.gmra.mrb[0].mxu0 %v405
      %v3330 = vpop.f32.mrb[0].mxu0
      %v3331 = vadd.f32 0.0, %v3330
      %v3332 = vpop.f32.mrb[0].mxu0
      %3333 = vmatprep.mubr.f32.mxu0 0.0
      %3334 = vmatmul.mubr.f32.gmra.mrb[0].mxu0 %v408
      %v3335 = vpop.f32.mrb[0].mxu0
      %v3336 = vadd.f32 0.0, %v3335
      %v3337 = vpop.f32.mrb[0].mxu0
      %3338 = vdwg.mxu0
      %s3339 = scalar_lea.vmem %s4, 6
      %v3340 = vld [vmem:[%s3339] sm:$0x1]
      %v3342 = vsel %vm403, %v3340, 0
      %3344 = vmatprep.subr.mxu0 0.0
      %3345 = vmatpush1.xpose.msra.mxu0 %v405
      %3346 = vmatprep.subr.mxu0 0.0
      %3347 = vmatpush1.xpose.msra.mxu0 %v408
      %3348 = vmatprep.subr.mxu0 0.0
      %3349 = vmatpush1.xpose.msra.mxu0 0.0
      %3350 = vmatprep.subr.mxu0 0.0
      %3351 = vmatpush1.xpose.msra.mxu0 0.0
      %3352 = vmatprep.subr.mxu0 0.0
      %3353 = vmatpush1.xpose.msra.mxu0 0.0
      %3354 = vmatprep.subr.mxu0 0.0
      %3355 = vmatpush1.xpose.msra.mxu0 0.0
      %3356 = vmatprep.subr.mxu0 0.0
      %3357 = vmatpush1.xpose.msra.mxu0 0.0
      %3358 = vmatprep.subr.mxu0 0.0
      %3359 = vmatpush1.xpose.msra.mxu0 0.0
      %3360 = vmatprep.subr.mxu0 0.0
      %3361 = vmatpush1.xpose.msra.mxu0 0.0
      %3362 = vmatprep.subr.mxu0 0.0
      %3363 = vmatpush1.xpose.msra.mxu0 0.0
      %3364 = vmatprep.subr.mxu0 0.0
      %3365 = vmatpush1.xpose.msra.mxu0 0.0
      %3366 = vmatprep.subr.mxu0 0.0
      %3367 = vmatpush1.xpose.msra.mxu0 0.0
      %3368 = vmatprep.subr.mxu0 0.0
      %3369 = vmatpush1.xpose.msra.mxu0 0.0
      %3370 = vmatprep.subr.mxu0 0.0
      %3371 = vmatpush1.xpose.msra.mxu0 0.0
      %3372 = vmatprep.subr.mxu0 0.0
      %3373 = vmatpush1.xpose.msra.mxu0 0.0
      %3374 = vmatprep.subr.mxu0 0.0
      %3375 = vmatpush1.xpose.msra.mxu0 0.0
      %3376 = vmatprep.subr.mxu0 0.0
      %3377 = vmatpush1.xpose.msra.mxu0 0.0
      %3378 = vmatprep.subr.mxu0 0.0
      %3379 = vmatpush1.xpose.msra.mxu0 0.0
      %3380 = vmatprep.subr.mxu0 0.0
      %3381 = vmatpush1.xpose.msra.mxu0 0.0
      %3382 = vmatprep.subr.mxu0 0.0
      %3383 = vmatpush1.xpose.msra.mxu0 0.0
      %3384 = vmatprep.subr.mxu0 0.0
      %3385 = vmatpush1.xpose.msra.mxu0 0.0
      %3386 = vmatprep.subr.mxu0 0.0
      %3387 = vmatpush1.xpose.msra.mxu0 0.0
      %3388 = vmatprep.subr.mxu0 0.0
      %3389 = vmatpush1.xpose.msra.mxu0 0.0
      %3390 = vmatprep.subr.mxu0 0.0
      %3391 = vmatpush1.xpose.msra.mxu0 0.0
      %3392 = vmatprep.subr.mxu0 0.0
      %3393 = vmatpush1.xpose.msra.mxu0 0.0
      %3394 = vmatprep.subr.mxu0 0.0
      %3395 = vmatpush1.xpose.msra.mxu0 0.0
      %3396 = vmatprep.subr.mxu0 0.0
      %3397 = vmatpush1.xpose.msra.mxu0 0.0
      %3398 = vmatprep.subr.mxu0 0.0
      %3399 = vmatpush1.xpose.msra.mxu0 0.0
      %3400 = vmatprep.subr.mxu0 0.0
      %3401 = vmatpush1.xpose.msra.mxu0 0.0
      %3402 = vmatprep.subr.mxu0 0.0
      %3403 = vmatpush1.xpose.msra.mxu0 0.0
      %3404 = vmatprep.subr.mxu0 0.0
      %3405 = vmatpush1.xpose.msra.mxu0 0.0
      %3406 = vmatprep.subr.mxu0 0.0
      %3407 = vmatpush1.xpose.msra.mxu0 0.0
      %3408 = vmatprep.mubr.f32.mxu0 0.0
      %3409 = vmatmul.mubr.f32.gmra.mrb[0].mxu0 %v3342
      %v3410 = vpop.f32.mrb[0].mxu0
      %v3411 = vadd.f32 0.0, %v3410
      %v3412 = vpop.f32.mrb[0].mxu0
      %3413 = vdwg.mxu0
      %3415 = vset.pattern.permute.xlu0 0
      %3416 = vperm.xlu0 %3415, %v3331
      %v3417 = vpop.permute.xlu0 %3416
      %3420 = vset.pattern.permute.xlu0 0
      %3421 = vperm.xlu0 %3420, %v3336
      %v3422 = vpop.permute.xlu0 %3421
      %v3424 = vlaneseq
      %v3425 = vshrl.u32 %v3424, 7
      %v3426 = vsub.s32 0, %v3425
      %v3427 = vrot.slane %v3411, %v3426
      %v3428 = vadd.f32 %v3417, %v3427
      %v3429 = vadd.f32 %v3422, %v3427
      %v3430 = vmul.f32 %v3428, 0.2
      %v3431 = vmul.f32 %v3429, 0.2
      %v3432 = vmax.f32 %v3428, %v3430
      %v3433 = vmax.f32 %v3429, %v3431
      %v3434 = vsel %vm579, %v3432, -1e+30
      %v3435 = vsel %vm580, %v3433, -1e+30
      %v3436 = vsel %vm583, %v3434, -inf
      %3437 = vmax.xlane.f32.xlu0 %v3436
      %v3438 = vpop.xlane.xlu0 %3437
      %v3439 = vsel %vm583, %v3435, -inf
      %3440 = vmax.xlane.f32.xlu0 %v3439
      %v3441 = vpop.xlane.xlu0 %3440
      %v3442 = vsub.f32 %v3434, %v3438
      %v3443 = vsub.f32 %v3435, %v3441
      %v3444 = vmul.f32 %v3442, 1.442695
      %v3445 = vpow.pop %v3444
      %v3446 = vmul.f32 %v3443, 1.442695
      %v3447 = vpow.pop %v3446
      %v3448 = vsel %vm583, %v3445, 0.0
      %3449 = vadd.xlane.f32.xlu0 %v3448
      %v3450 = vpop.xlane.xlu0 %3449
      %v3451 = vsel %vm583, %v3447, 0.0
      %3452 = vadd.xlane.f32.xlu0 %v3451
      %v3453 = vpop.xlane.xlu0 %3452
      %v3454 = vrcp.pop %v3450
      %v3455 = vrcp.pop %v3453
      %v3456 = vmul.f32 %v3445, %v3454
      %v3457 = vmul.f32 %v3447, %v3455
      %s3458 = scalar_lea.vmem %s5, 384
      %v3459 = vld [vmem:[%s3458] sm:$0xff]
      %v3460 = vld [vmem:[%s3458 + $0x8] sm:$0xff]
      %v3461 = vld [vmem:[%s3458 + $0x10] sm:$0xff]
      %v3462 = vld [vmem:[%s3458 + $0x18] sm:$0xff]
      %v3463 = vld [vmem:[%s3458 + $0x20] sm:$0xff]
      %v3464 = vld [vmem:[%s3458 + $0x28] sm:$0xff]
      %v3465 = vld [vmem:[%s3458 + $0x30] sm:$0xff]
      %v3466 = vld [vmem:[%s3458 + $0x38] sm:$0xff]
      %3467 = vmatprep.subr.mxu0 0.0
      %3468 = vmatpush1.msra.mxu0 %v3459
      %3469 = vmatprep.subr.mxu0 0.0
      %3470 = vmatpush1.msra.mxu0 %v3460
      %3471 = vmatprep.subr.mxu0 0.0
      %3472 = vmatpush1.msra.mxu0 %v3461
      %3473 = vmatprep.subr.mxu0 0.0
      %3474 = vmatpush1.msra.mxu0 %v3462
      %3475 = vmatprep.subr.mxu0 0.0
      %3476 = vmatpush1.msra.mxu0 %v3463
      %3477 = vmatprep.subr.mxu0 0.0
      %3478 = vmatpush1.msra.mxu0 %v3464
      %3479 = vmatprep.subr.mxu0 0.0
      %3480 = vmatpush1.msra.mxu0 %v3465
      %3481 = vmatprep.subr.mxu0 0.0
      %3482 = vmatpush1.msra.mxu0 %v3466
      %3483 = vmatprep.subr.mxu0 0.0
      %3484 = vmatpush1.msra.mxu0 0.0
      %3485 = vmatprep.subr.mxu0 0.0
      %3486 = vmatpush1.msra.mxu0 0.0
      %3487 = vmatprep.subr.mxu0 0.0
      %3488 = vmatpush1.msra.mxu0 0.0
      %3489 = vmatprep.subr.mxu0 0.0
      %3490 = vmatpush1.msra.mxu0 0.0
      %3491 = vmatprep.subr.mxu0 0.0
      %3492 = vmatpush1.msra.mxu0 0.0
      %3493 = vmatprep.subr.mxu0 0.0
      %3494 = vmatpush1.msra.mxu0 0.0
      %3495 = vmatprep.subr.mxu0 0.0
      %3496 = vmatpush1.msra.mxu0 0.0
      %3497 = vmatprep.subr.mxu0 0.0
      %3498 = vmatpush1.msra.mxu0 0.0
      %3499 = vmatprep.subr.mxu0 0.0
      %3500 = vmatpush1.msra.mxu0 0.0
      %3501 = vmatprep.subr.mxu0 0.0
      %3502 = vmatpush1.msra.mxu0 0.0
      %3503 = vmatprep.subr.mxu0 0.0
      %3504 = vmatpush1.msra.mxu0 0.0
      %3505 = vmatprep.subr.mxu0 0.0
      %3506 = vmatpush1.msra.mxu0 0.0
      %3507 = vmatprep.subr.mxu0 0.0
      %3508 = vmatpush1.msra.mxu0 0.0
      %3509 = vmatprep.subr.mxu0 0.0
      %3510 = vmatpush1.msra.mxu0 0.0
      %3511 = vmatprep.subr.mxu0 0.0
      %3512 = vmatpush1.msra.mxu0 0.0
      %3513 = vmatprep.subr.mxu0 0.0
      %3514 = vmatpush1.msra.mxu0 0.0
      %3515 = vmatprep.subr.mxu0 0.0
      %3516 = vmatpush1.msra.mxu0 0.0
      %3517 = vmatprep.subr.mxu0 0.0
      %3518 = vmatpush1.msra.mxu0 0.0
      %3519 = vmatprep.subr.mxu0 0.0
      %3520 = vmatpush1.msra.mxu0 0.0
      %3521 = vmatprep.subr.mxu0 0.0
      %3522 = vmatpush1.msra.mxu0 0.0
      %3523 = vmatprep.subr.mxu0 0.0
      %3524 = vmatpush1.msra.mxu0 0.0
      %3525 = vmatprep.subr.mxu0 0.0
      %3526 = vmatpush1.msra.mxu0 0.0
      %3527 = vmatprep.subr.mxu0 0.0
      %3528 = vmatpush1.msra.mxu0 0.0
      %3529 = vmatprep.subr.mxu0 0.0
      %3530 = vmatpush1.msra.mxu0 0.0
      %3531 = vmatprep.mubr.f32.mxu0 0.0
      %3532 = vmatmul.mubr.f32.gmra.mrb[0].mxu0 %v615
      %v3533 = vpop.f32.mrb[0].mxu0
      %v3534 = vadd.f32 0.0, %v3533
      %v3535 = vpop.f32.mrb[0].mxu0
      %3536 = vmatprep.mubr.f32.mxu0 0.0
      %3537 = vmatmul.mubr.f32.gmra.mrb[0].mxu0 %v618
      %v3538 = vpop.f32.mrb[0].mxu0
      %v3539 = vadd.f32 0.0, %v3538
      %v3540 = vpop.f32.mrb[0].mxu0
      %3541 = vdwg.mxu0
      %v3543 = vsel %vm583, %v3456, 0
      %v3546 = vsel %vm583, %v3457, 0
      %3548 = vmatprep.subr.mxu0 0.0
      %3549 = vmatpush1.msra.mxu0 %v3534
      %3550 = vmatprep.subr.mxu0 0.0
      %3551 = vmatpush1.msra.mxu0 %v3539
      %3552 = vmatprep.subr.mxu0 0.0
      %3553 = vmatpush1.msra.mxu0 0.0
      %3554 = vmatprep.subr.mxu0 0.0
      %3555 = vmatpush1.msra.mxu0 0.0
      %3556 = vmatprep.subr.mxu0 0.0
      %3557 = vmatpush1.msra.mxu0 0.0
      %3558 = vmatprep.subr.mxu0 0.0
      %3559 = vmatpush1.msra.mxu0 0.0
      %3560 = vmatprep.subr.mxu0 0.0
      %3561 = vmatpush1.msra.mxu0 0.0
      %3562 = vmatprep.subr.mxu0 0.0
      %3563 = vmatpush1.msra.mxu0 0.0
      %3564 = vmatprep.subr.mxu0 0.0
      %3565 = vmatpush1.msra.mxu0 0.0
      %3566 = vmatprep.subr.mxu0 0.0
      %3567 = vmatpush1.msra.mxu0 0.0
      %3568 = vmatprep.subr.mxu0 0.0
      %3569 = vmatpush1.msra.mxu0 0.0
      %3570 = vmatprep.subr.mxu0 0.0
      %3571 = vmatpush1.msra.mxu0 0.0
      %3572 = vmatprep.subr.mxu0 0.0
      %3573 = vmatpush1.msra.mxu0 0.0
      %3574 = vmatprep.subr.mxu0 0.0
      %3575 = vmatpush1.msra.mxu0 0.0
      %3576 = vmatprep.subr.mxu0 0.0
      %3577 = vmatpush1.msra.mxu0 0.0
      %3578 = vmatprep.subr.mxu0 0.0
      %3579 = vmatpush1.msra.mxu0 0.0
      %3580 = vmatprep.subr.mxu0 0.0
      %3581 = vmatpush1.msra.mxu0 0.0
      %3582 = vmatprep.subr.mxu0 0.0
      %3583 = vmatpush1.msra.mxu0 0.0
      %3584 = vmatprep.subr.mxu0 0.0
      %3585 = vmatpush1.msra.mxu0 0.0
      %3586 = vmatprep.subr.mxu0 0.0
      %3587 = vmatpush1.msra.mxu0 0.0
      %3588 = vmatprep.subr.mxu0 0.0
      %3589 = vmatpush1.msra.mxu0 0.0
      %3590 = vmatprep.subr.mxu0 0.0
      %3591 = vmatpush1.msra.mxu0 0.0
      %3592 = vmatprep.subr.mxu0 0.0
      %3593 = vmatpush1.msra.mxu0 0.0
      %3594 = vmatprep.subr.mxu0 0.0
      %3595 = vmatpush1.msra.mxu0 0.0
      %3596 = vmatprep.subr.mxu0 0.0
      %3597 = vmatpush1.msra.mxu0 0.0
      %3598 = vmatprep.subr.mxu0 0.0
      %3599 = vmatpush1.msra.mxu0 0.0
      %3600 = vmatprep.subr.mxu0 0.0
      %3601 = vmatpush1.msra.mxu0 0.0
      %3602 = vmatprep.subr.mxu0 0.0
      %3603 = vmatpush1.msra.mxu0 0.0
      %3604 = vmatprep.subr.mxu0 0.0
      %3605 = vmatpush1.msra.mxu0 0.0
      %3606 = vmatprep.subr.mxu0 0.0
      %3607 = vmatpush1.msra.mxu0 0.0
      %3608 = vmatprep.subr.mxu0 0.0
      %3609 = vmatpush1.msra.mxu0 0.0
      %3610 = vmatprep.subr.mxu0 0.0
      %3611 = vmatpush1.msra.mxu0 0.0
      %3612 = vmatprep.mubr.f32.mxu0 0.0
      %3613 = vmatmul.mubr.f32.gmra.mrb[0].mxu0 %v3543
      %v3614 = vpop.f32.mrb[0].mxu0
      %v3615 = vadd.f32 0.0, %v3614
      %v3616 = vpop.f32.mrb[0].mxu0
      %3617 = vmatprep.mubr.f32.mxu0 0.0
      %3618 = vmatmul.mubr.f32.gmra.mrb[0].mxu0 %v3546
      %v3619 = vpop.f32.mrb[0].mxu0
      %v3620 = vadd.f32 0.0, %v3619
      %v3621 = vpop.f32.mrb[0].mxu0
      %3622 = vdwg.mxu0
      %v3624 = vsel %vm1144, %v3615, 0
      %v3627 = vsel %vm1144, %v3620, 0
      %v3630 = vsel %vm1144, %v3459, 0
      %v3633 = vsel %vm1144, %v3460, 0
      %v3636 = vsel %vm1144, %v3461, 0
      %v3639 = vsel %vm1144, %v3462, 0
      %v3642 = vsel %vm1144, %v3463, 0
      %v3645 = vsel %vm1144, %v3464, 0
      %v3648 = vsel %vm1144, %v3465, 0
      %v3651 = vsel %vm1144, %v3466, 0
      %3653 = vmatprep.subr.mxu0 0.0
      %3654 = vmatpush1.xpose.msra.mxu0 %v3630
      %3655 = vmatprep.subr.mxu0 0.0
      %3656 = vmatpush1.xpose.msra.mxu0 %v3633
      %3657 = vmatprep.subr.mxu0 0.0
      %3658 = vmatpush1.xpose.msra.mxu0 %v3636
      %3659 = vmatprep.subr.mxu0 0.0
      %3660 = vmatpush1.xpose.msra.mxu0 %v3639
      %3661 = vmatprep.subr.mxu0 0.0
      %3662 = vmatpush1.xpose.msra.mxu0 %v3642
      %3663 = vmatprep.subr.mxu0 0.0
      %3664 = vmatpush1.xpose.msra.mxu0 %v3645
      %3665 = vmatprep.subr.mxu0 0.0
      %3666 = vmatpush1.xpose.msra.mxu0 %v3648
      %3667 = vmatprep.subr.mxu0 0.0
      %3668 = vmatpush1.xpose.msra.mxu0 %v3651
      %3669 = vmatprep.subr.mxu0 0.0
      %3670 = vmatpush1.xpose.msra.mxu0 0.0
      %3671 = vmatprep.subr.mxu0 0.0
      %3672 = vmatpush1.xpose.msra.mxu0 0.0
      %3673 = vmatprep.subr.mxu0 0.0
      %3674 = vmatpush1.xpose.msra.mxu0 0.0
      %3675 = vmatprep.subr.mxu0 0.0
      %3676 = vmatpush1.xpose.msra.mxu0 0.0
      %3677 = vmatprep.subr.mxu0 0.0
      %3678 = vmatpush1.xpose.msra.mxu0 0.0
      %3679 = vmatprep.subr.mxu0 0.0
      %3680 = vmatpush1.xpose.msra.mxu0 0.0
      %3681 = vmatprep.subr.mxu0 0.0
      %3682 = vmatpush1.xpose.msra.mxu0 0.0
      %3683 = vmatprep.subr.mxu0 0.0
      %3684 = vmatpush1.xpose.msra.mxu0 0.0
      %3685 = vmatprep.subr.mxu0 0.0
      %3686 = vmatpush1.xpose.msra.mxu0 0.0
      %3687 = vmatprep.subr.mxu0 0.0
      %3688 = vmatpush1.xpose.msra.mxu0 0.0
      %3689 = vmatprep.subr.mxu0 0.0
      %3690 = vmatpush1.xpose.msra.mxu0 0.0
      %3691 = vmatprep.subr.mxu0 0.0
      %3692 = vmatpush1.xpose.msra.mxu0 0.0
      %3693 = vmatprep.subr.mxu0 0.0
      %3694 = vmatpush1.xpose.msra.mxu0 0.0
      %3695 = vmatprep.subr.mxu0 0.0
      %3696 = vmatpush1.xpose.msra.mxu0 0.0
      %3697 = vmatprep.subr.mxu0 0.0
      %3698 = vmatpush1.xpose.msra.mxu0 0.0
      %3699 = vmatprep.subr.mxu0 0.0
      %3700 = vmatpush1.xpose.msra.mxu0 0.0
      %3701 = vmatprep.subr.mxu0 0.0
      %3702 = vmatpush1.xpose.msra.mxu0 0.0
      %3703 = vmatprep.subr.mxu0 0.0
      %3704 = vmatpush1.xpose.msra.mxu0 0.0
      %3705 = vmatprep.subr.mxu0 0.0
      %3706 = vmatpush1.xpose.msra.mxu0 0.0
      %3707 = vmatprep.subr.mxu0 0.0
      %3708 = vmatpush1.xpose.msra.mxu0 0.0
      %3709 = vmatprep.subr.mxu0 0.0
      %3710 = vmatpush1.xpose.msra.mxu0 0.0
      %3711 = vmatprep.subr.mxu0 0.0
      %3712 = vmatpush1.xpose.msra.mxu0 0.0
      %3713 = vmatprep.subr.mxu0 0.0
      %3714 = vmatpush1.xpose.msra.mxu0 0.0
      %3715 = vmatprep.subr.mxu0 0.0
      %3716 = vmatpush1.xpose.msra.mxu0 0.0
      %3717 = vmatprep.mubr.f32.mxu0 0.0
      %3718 = vmatmul.mubr.f32.gmra.mrb[0].mxu0 %v3624
      %v3719 = vpop.f32.mrb[0].mxu0
      %v3720 = vadd.f32 0.0, %v3719
      %v3721 = vpop.f32.mrb[0].mxu0
      %3722 = vmatprep.mubr.f32.mxu0 0.0
      %3723 = vmatmul.mubr.f32.gmra.mrb[0].mxu0 %v3627
      %v3724 = vpop.f32.mrb[0].mxu0
      %v3725 = vadd.f32 0.0, %v3724
      %v3726 = vpop.f32.mrb[0].mxu0
      %3727 = vdwg.mxu0
      %v3728 = vadd.f32 %v3253, %v3720
      %v3729 = vadd.f32 %v3254, %v3725
      %s3730 = scalar_lea.vmem %s3, 448
      %v3731 = vld [vmem:[%s3730] sm:$0xff]
      %v3732 = vld [vmem:[%s3730 + $0x8] sm:$0xff]
      %v3733 = vld [vmem:[%s3730 + $0x10] sm:$0xff]
      %v3734 = vld [vmem:[%s3730 + $0x18] sm:$0xff]
      %v3735 = vld [vmem:[%s3730 + $0x20] sm:$0xff]
      %v3736 = vld [vmem:[%s3730 + $0x28] sm:$0xff]
      %v3737 = vld [vmem:[%s3730 + $0x30] sm:$0xff]
      %v3738 = vld [vmem:[%s3730 + $0x38] sm:$0xff]
      %3739 = vmatprep.subr.mxu0 0.0
      %3740 = vmatpush1.msra.mxu0 %v3731
      %3741 = vmatprep.subr.mxu0 0.0
      %3742 = vmatpush1.msra.mxu0 %v3732
      %3743 = vmatprep.subr.mxu0 0.0
      %3744 = vmatpush1.msra.mxu0 %v3733
      %3745 = vmatprep.subr.mxu0 0.0
      %3746 = vmatpush1.msra.mxu0 %v3734
      %3747 = vmatprep.subr.mxu0 0.0
      %3748 = vmatpush1.msra.mxu0 %v3735
      %3749 = vmatprep.subr.mxu0 0.0
      %3750 = vmatpush1.msra.mxu0 %v3736
      %3751 = vmatprep.subr.mxu0 0.0
      %3752 = vmatpush1.msra.mxu0 %v3737
      %3753 = vmatprep.subr.mxu0 0.0
      %3754 = vmatpush1.msra.mxu0 %v3738
      %3755 = vmatprep.subr.mxu0 0.0
      %3756 = vmatpush1.msra.mxu0 0.0
      %3757 = vmatprep.subr.mxu0 0.0
      %3758 = vmatpush1.msra.mxu0 0.0
      %3759 = vmatprep.subr.mxu0 0.0
      %3760 = vmatpush1.msra.mxu0 0.0
      %3761 = vmatprep.subr.mxu0 0.0
      %3762 = vmatpush1.msra.mxu0 0.0
      %3763 = vmatprep.subr.mxu0 0.0
      %3764 = vmatpush1.msra.mxu0 0.0
      %3765 = vmatprep.subr.mxu0 0.0
      %3766 = vmatpush1.msra.mxu0 0.0
      %3767 = vmatprep.subr.mxu0 0.0
      %3768 = vmatpush1.msra.mxu0 0.0
      %3769 = vmatprep.subr.mxu0 0.0
      %3770 = vmatpush1.msra.mxu0 0.0
      %3771 = vmatprep.subr.mxu0 0.0
      %3772 = vmatpush1.msra.mxu0 0.0
      %3773 = vmatprep.subr.mxu0 0.0
      %3774 = vmatpush1.msra.mxu0 0.0
      %3775 = vmatprep.subr.mxu0 0.0
      %3776 = vmatpush1.msra.mxu0 0.0
      %3777 = vmatprep.subr.mxu0 0.0
      %3778 = vmatpush1.msra.mxu0 0.0
      %3779 = vmatprep.subr.mxu0 0.0
      %3780 = vmatpush1.msra.mxu0 0.0
      %3781 = vmatprep.subr.mxu0 0.0
      %3782 = vmatpush1.msra.mxu0 0.0
      %3783 = vmatprep.subr.mxu0 0.0
      %3784 = vmatpush1.msra.mxu0 0.0
      %3785 = vmatprep.subr.mxu0 0.0
      %3786 = vmatpush1.msra.mxu0 0.0
      %3787 = vmatprep.subr.mxu0 0.0
      %3788 = vmatpush1.msra.mxu0 0.0
      %3789 = vmatprep.subr.mxu0 0.0
      %3790 = vmatpush1.msra.mxu0 0.0
      %3791 = vmatprep.subr.mxu0 0.0
      %3792 = vmatpush1.msra.mxu0 0.0
      %3793 = vmatprep.subr.mxu0 0.0
      %3794 = vmatpush1.msra.mxu0 0.0
      %3795 = vmatprep.subr.mxu0 0.0
      %3796 = vmatpush1.msra.mxu0 0.0
      %3797 = vmatprep.subr.mxu0 0.0
      %3798 = vmatpush1.msra.mxu0 0.0
      %3799 = vmatprep.subr.mxu0 0.0
      %3800 = vmatpush1.msra.mxu0 0.0
      %3801 = vmatprep.subr.mxu0 0.0
      %3802 = vmatpush1.msra.mxu0 0.0
      %3803 = vmatprep.mubr.f32.mxu0 0.0
      %3804 = vmatmul.mubr.f32.gmra.mrb[0].mxu0 %v405
      %v3805 = vpop.f32.mrb[0].mxu0
      %v3806 = vadd.f32 0.0, %v3805
      %v3807 = vpop.f32.mrb[0].mxu0
      %3808 = vmatprep.mubr.f32.mxu0 0.0
      %3809 = vmatmul.mubr.f32.gmra.mrb[0].mxu0 %v408
      %v3810 = vpop.f32.mrb[0].mxu0
      %v3811 = vadd.f32 0.0, %v3810
      %v3812 = vpop.f32.mrb[0].mxu0
      %3813 = vdwg.mxu0
      %s3814 = scalar_lea.vmem %s4, 7
      %v3815 = vld [vmem:[%s3814] sm:$0x1]
      %v3817 = vsel %vm403, %v3815, 0
      %3819 = vmatprep.subr.mxu0 0.0
      %3820 = vmatpush1.xpose.msra.mxu0 %v405
      %3821 = vmatprep.subr.mxu0 0.0
      %3822 = vmatpush1.xpose.msra.mxu0 %v408
      %3823 = vmatprep.subr.mxu0 0.0
      %3824 = vmatpush1.xpose.msra.mxu0 0.0
      %3825 = vmatprep.subr.mxu0 0.0
      %3826 = vmatpush1.xpose.msra.mxu0 0.0
      %3827 = vmatprep.subr.mxu0 0.0
      %3828 = vmatpush1.xpose.msra.mxu0 0.0
      %3829 = vmatprep.subr.mxu0 0.0
      %3830 = vmatpush1.xpose.msra.mxu0 0.0
      %3831 = vmatprep.subr.mxu0 0.0
      %3832 = vmatpush1.xpose.msra.mxu0 0.0
      %3833 = vmatprep.subr.mxu0 0.0
      %3834 = vmatpush1.xpose.msra.mxu0 0.0
      %3835 = vmatprep.subr.mxu0 0.0
      %3836 = vmatpush1.xpose.msra.mxu0 0.0
      %3837 = vmatprep.subr.mxu0 0.0
      %3838 = vmatpush1.xpose.msra.mxu0 0.0
      %3839 = vmatprep.subr.mxu0 0.0
      %3840 = vmatpush1.xpose.msra.mxu0 0.0
      %3841 = vmatprep.subr.mxu0 0.0
      %3842 = vmatpush1.xpose.msra.mxu0 0.0
      %3843 = vmatprep.subr.mxu0 0.0
      %3844 = vmatpush1.xpose.msra.mxu0 0.0
      %3845 = vmatprep.subr.mxu0 0.0
      %3846 = vmatpush1.xpose.msra.mxu0 0.0
      %3847 = vmatprep.subr.mxu0 0.0
      %3848 = vmatpush1.xpose.msra.mxu0 0.0
      %3849 = vmatprep.subr.mxu0 0.0
      %3850 = vmatpush1.xpose.msra.mxu0 0.0
      %3851 = vmatprep.subr.mxu0 0.0
      %3852 = vmatpush1.xpose.msra.mxu0 0.0
      %3853 = vmatprep.subr.mxu0 0.0
      %3854 = vmatpush1.xpose.msra.mxu0 0.0
      %3855 = vmatprep.subr.mxu0 0.0
      %3856 = vmatpush1.xpose.msra.mxu0 0.0
      %3857 = vmatprep.subr.mxu0 0.0
      %3858 = vmatpush1.xpose.msra.mxu0 0.0
      %3859 = vmatprep.subr.mxu0 0.0
      %3860 = vmatpush1.xpose.msra.mxu0 0.0
      %3861 = vmatprep.subr.mxu0 0.0
      %3862 = vmatpush1.xpose.msra.mxu0 0.0
      %3863 = vmatprep.subr.mxu0 0.0
      %3864 = vmatpush1.xpose.msra.mxu0 0.0
      %3865 = vmatprep.subr.mxu0 0.0
      %3866 = vmatpush1.xpose.msra.mxu0 0.0
      %3867 = vmatprep.subr.mxu0 0.0
      %3868 = vmatpush1.xpose.msra.mxu0 0.0
      %3869 = vmatprep.subr.mxu0 0.0
      %3870 = vmatpush1.xpose.msra.mxu0 0.0
      %3871 = vmatprep.subr.mxu0 0.0
      %3872 = vmatpush1.xpose.msra.mxu0 0.0
      %3873 = vmatprep.subr.mxu0 0.0
      %3874 = vmatpush1.xpose.msra.mxu0 0.0
      %3875 = vmatprep.subr.mxu0 0.0
      %3876 = vmatpush1.xpose.msra.mxu0 0.0
      %3877 = vmatprep.subr.mxu0 0.0
      %3878 = vmatpush1.xpose.msra.mxu0 0.0
      %3879 = vmatprep.subr.mxu0 0.0
      %3880 = vmatpush1.xpose.msra.mxu0 0.0
      %3881 = vmatprep.subr.mxu0 0.0
      %3882 = vmatpush1.xpose.msra.mxu0 0.0
      %3883 = vmatprep.mubr.f32.mxu0 0.0
      %3884 = vmatmul.mubr.f32.gmra.mrb[0].mxu0 %v3817
      %v3885 = vpop.f32.mrb[0].mxu0
      %v3886 = vadd.f32 0.0, %v3885
      %v3887 = vpop.f32.mrb[0].mxu0
      %3888 = vdwg.mxu0
      %3890 = vset.pattern.permute.xlu0 0
      %3891 = vperm.xlu0 %3890, %v3806
      %v3892 = vpop.permute.xlu0 %3891
      %3895 = vset.pattern.permute.xlu0 0
      %3896 = vperm.xlu0 %3895, %v3811
      %v3897 = vpop.permute.xlu0 %3896
      %v3899 = vlaneseq
      %v3900 = vshrl.u32 %v3899, 7
      %v3901 = vsub.s32 0, %v3900
      %v3902 = vrot.slane %v3886, %v3901
      %v3903 = vadd.f32 %v3892, %v3902
      %v3904 = vadd.f32 %v3897, %v3902
      %v3905 = vmul.f32 %v3903, 0.2
      %v3906 = vmul.f32 %v3904, 0.2
      %v3907 = vmax.f32 %v3903, %v3905
      %v3908 = vmax.f32 %v3904, %v3906
      %v3909 = vsel %vm579, %v3907, -1e+30
      %v3910 = vsel %vm580, %v3908, -1e+30
      %v3911 = vsel %vm583, %v3909, -inf
      %3912 = vmax.xlane.f32.xlu0 %v3911
      %v3913 = vpop.xlane.xlu0 %3912
      %v3914 = vsel %vm583, %v3910, -inf
      %3915 = vmax.xlane.f32.xlu0 %v3914
      %v3916 = vpop.xlane.xlu0 %3915
      %v3917 = vsub.f32 %v3909, %v3913
      %v3918 = vsub.f32 %v3910, %v3916
      %v3919 = vmul.f32 %v3917, 1.442695
      %v3920 = vpow.pop %v3919
      %v3921 = vmul.f32 %v3918, 1.442695
      %v3922 = vpow.pop %v3921
      %v3923 = vsel %vm583, %v3920, 0.0
      %3924 = vadd.xlane.f32.xlu0 %v3923
      %v3925 = vpop.xlane.xlu0 %3924
      %v3926 = vsel %vm583, %v3922, 0.0
      %3927 = vadd.xlane.f32.xlu0 %v3926
      %v3928 = vpop.xlane.xlu0 %3927
      %v3929 = vrcp.pop %v3925
      %v3930 = vrcp.pop %v3928
      %v3931 = vmul.f32 %v3920, %v3929
      %v3932 = vmul.f32 %v3922, %v3930
      %s3933 = scalar_lea.vmem %s5, 448
      %v3934 = vld [vmem:[%s3933] sm:$0xff]
      %v3935 = vld [vmem:[%s3933 + $0x8] sm:$0xff]
      %v3936 = vld [vmem:[%s3933 + $0x10] sm:$0xff]
      %v3937 = vld [vmem:[%s3933 + $0x18] sm:$0xff]
      %v3938 = vld [vmem:[%s3933 + $0x20] sm:$0xff]
      %v3939 = vld [vmem:[%s3933 + $0x28] sm:$0xff]
      %v3940 = vld [vmem:[%s3933 + $0x30] sm:$0xff]
      %v3941 = vld [vmem:[%s3933 + $0x38] sm:$0xff]
      %3942 = vmatprep.subr.mxu0 0.0
      %3943 = vmatpush1.msra.mxu0 %v3934
      %3944 = vmatprep.subr.mxu0 0.0
      %3945 = vmatpush1.msra.mxu0 %v3935
      %3946 = vmatprep.subr.mxu0 0.0
      %3947 = vmatpush1.msra.mxu0 %v3936
      %3948 = vmatprep.subr.mxu0 0.0
      %3949 = vmatpush1.msra.mxu0 %v3937
      %3950 = vmatprep.subr.mxu0 0.0
      %3951 = vmatpush1.msra.mxu0 %v3938
      %3952 = vmatprep.subr.mxu0 0.0
      %3953 = vmatpush1.msra.mxu0 %v3939
      %3954 = vmatprep.subr.mxu0 0.0
      %3955 = vmatpush1.msra.mxu0 %v3940
      %3956 = vmatprep.subr.mxu0 0.0
      %3957 = vmatpush1.msra.mxu0 %v3941
      %3958 = vmatprep.subr.mxu0 0.0
      %3959 = vmatpush1.msra.mxu0 0.0
      %3960 = vmatprep.subr.mxu0 0.0
      %3961 = vmatpush1.msra.mxu0 0.0
      %3962 = vmatprep.subr.mxu0 0.0
      %3963 = vmatpush1.msra.mxu0 0.0
      %3964 = vmatprep.subr.mxu0 0.0
      %3965 = vmatpush1.msra.mxu0 0.0
      %3966 = vmatprep.subr.mxu0 0.0
      %3967 = vmatpush1.msra.mxu0 0.0
      %3968 = vmatprep.subr.mxu0 0.0
      %3969 = vmatpush1.msra.mxu0 0.0
      %3970 = vmatprep.subr.mxu0 0.0
      %3971 = vmatpush1.msra.mxu0 0.0
      %3972 = vmatprep.subr.mxu0 0.0
      %3973 = vmatpush1.msra.mxu0 0.0
      %3974 = vmatprep.subr.mxu0 0.0
      %3975 = vmatpush1.msra.mxu0 0.0
      %3976 = vmatprep.subr.mxu0 0.0
      %3977 = vmatpush1.msra.mxu0 0.0
      %3978 = vmatprep.subr.mxu0 0.0
      %3979 = vmatpush1.msra.mxu0 0.0
      %3980 = vmatprep.subr.mxu0 0.0
      %3981 = vmatpush1.msra.mxu0 0.0
      %3982 = vmatprep.subr.mxu0 0.0
      %3983 = vmatpush1.msra.mxu0 0.0
      %3984 = vmatprep.subr.mxu0 0.0
      %3985 = vmatpush1.msra.mxu0 0.0
      %3986 = vmatprep.subr.mxu0 0.0
      %3987 = vmatpush1.msra.mxu0 0.0
      %3988 = vmatprep.subr.mxu0 0.0
      %3989 = vmatpush1.msra.mxu0 0.0
      %3990 = vmatprep.subr.mxu0 0.0
      %3991 = vmatpush1.msra.mxu0 0.0
      %3992 = vmatprep.subr.mxu0 0.0
      %3993 = vmatpush1.msra.mxu0 0.0
      %3994 = vmatprep.subr.mxu0 0.0
      %3995 = vmatpush1.msra.mxu0 0.0
      %3996 = vmatprep.subr.mxu0 0.0
      %3997 = vmatpush1.msra.mxu0 0.0
      %3998 = vmatprep.subr.mxu0 0.0
      %3999 = vmatpush1.msra.mxu0 0.0
      %4000 = vmatprep.subr.mxu0 0.0
      %4001 = vmatpush1.msra.mxu0 0.0
      %4002 = vmatprep.subr.mxu0 0.0
      %4003 = vmatpush1.msra.mxu0 0.0
      %4004 = vmatprep.subr.mxu0 0.0
      %4005 = vmatpush1.msra.mxu0 0.0
      %4006 = vmatprep.mubr.f32.mxu0 0.0
      %4007 = vmatmul.mubr.f32.gmra.mrb[0].mxu0 %v615
      %v4008 = vpop.f32.mrb[0].mxu0
      %v4009 = vadd.f32 0.0, %v4008
      %v4010 = vpop.f32.mrb[0].mxu0
      %4011 = vmatprep.mubr.f32.mxu0 0.0
      %4012 = vmatmul.mubr.f32.gmra.mrb[0].mxu0 %v618
      %v4013 = vpop.f32.mrb[0].mxu0
      %v4014 = vadd.f32 0.0, %v4013
      %v4015 = vpop.f32.mrb[0].mxu0
      %4016 = vdwg.mxu0
      %v4018 = vsel %vm583, %v3931, 0
      %v4021 = vsel %vm583, %v3932, 0
      %4023 = vmatprep.subr.mxu0 0.0
      %4024 = vmatpush1.msra.mxu0 %v4009
      %4025 = vmatprep.subr.mxu0 0.0
      %4026 = vmatpush1.msra.mxu0 %v4014
      %4027 = vmatprep.subr.mxu0 0.0
      %4028 = vmatpush1.msra.mxu0 0.0
      %4029 = vmatprep.subr.mxu0 0.0
      %4030 = vmatpush1.msra.mxu0 0.0
      %4031 = vmatprep.subr.mxu0 0.0
      %4032 = vmatpush1.msra.mxu0 0.0
      %4033 = vmatprep.subr.mxu0 0.0
      %4034 = vmatpush1.msra.mxu0 0.0
      %4035 = vmatprep.subr.mxu0 0.0
      %4036 = vmatpush1.msra.mxu0 0.0
      %4037 = vmatprep.subr.mxu0 0.0
      %4038 = vmatpush1.msra.mxu0 0.0
      %4039 = vmatprep.subr.mxu0 0.0
      %4040 = vmatpush1.msra.mxu0 0.0
      %4041 = vmatprep.subr.mxu0 0.0
      %4042 = vmatpush1.msra.mxu0 0.0
      %4043 = vmatprep.subr.mxu0 0.0
      %4044 = vmatpush1.msra.mxu0 0.0
      %4045 = vmatprep.subr.mxu0 0.0
      %4046 = vmatpush1.msra.mxu0 0.0
      %4047 = vmatprep.subr.mxu0 0.0
      %4048 = vmatpush1.msra.mxu0 0.0
      %4049 = vmatprep.subr.mxu0 0.0
      %4050 = vmatpush1.msra.mxu0 0.0
      %4051 = vmatprep.subr.mxu0 0.0
      %4052 = vmatpush1.msra.mxu0 0.0
      %4053 = vmatprep.subr.mxu0 0.0
      %4054 = vmatpush1.msra.mxu0 0.0
      %4055 = vmatprep.subr.mxu0 0.0
      %4056 = vmatpush1.msra.mxu0 0.0
      %4057 = vmatprep.subr.mxu0 0.0
      %4058 = vmatpush1.msra.mxu0 0.0
      %4059 = vmatprep.subr.mxu0 0.0
      %4060 = vmatpush1.msra.mxu0 0.0
      %4061 = vmatprep.subr.mxu0 0.0
      %4062 = vmatpush1.msra.mxu0 0.0
      %4063 = vmatprep.subr.mxu0 0.0
      %4064 = vmatpush1.msra.mxu0 0.0
      %4065 = vmatprep.subr.mxu0 0.0
      %4066 = vmatpush1.msra.mxu0 0.0
      %4067 = vmatprep.subr.mxu0 0.0
      %4068 = vmatpush1.msra.mxu0 0.0
      %4069 = vmatprep.subr.mxu0 0.0
      %4070 = vmatpush1.msra.mxu0 0.0
      %4071 = vmatprep.subr.mxu0 0.0
      %4072 = vmatpush1.msra.mxu0 0.0
      %4073 = vmatprep.subr.mxu0 0.0
      %4074 = vmatpush1.msra.mxu0 0.0
      %4075 = vmatprep.subr.mxu0 0.0
      %4076 = vmatpush1.msra.mxu0 0.0
      %4077 = vmatprep.subr.mxu0 0.0
      %4078 = vmatpush1.msra.mxu0 0.0
      %4079 = vmatprep.subr.mxu0 0.0
      %4080 = vmatpush1.msra.mxu0 0.0
      %4081 = vmatprep.subr.mxu0 0.0
      %4082 = vmatpush1.msra.mxu0 0.0
      %4083 = vmatprep.subr.mxu0 0.0
      %4084 = vmatpush1.msra.mxu0 0.0
      %4085 = vmatprep.subr.mxu0 0.0
      %4086 = vmatpush1.msra.mxu0 0.0
      %4087 = vmatprep.mubr.f32.mxu0 0.0
      %4088 = vmatmul.mubr.f32.gmra.mrb[0].mxu0 %v4018
      %v4089 = vpop.f32.mrb[0].mxu0
      %v4090 = vadd.f32 0.0, %v4089
      %v4091 = vpop.f32.mrb[0].mxu0
      %4092 = vmatprep.mubr.f32.mxu0 0.0
      %4093 = vmatmul.mubr.f32.gmra.mrb[0].mxu0 %v4021
      %v4094 = vpop.f32.mrb[0].mxu0
      %v4095 = vadd.f32 0.0, %v4094
      %v4096 = vpop.f32.mrb[0].mxu0
      %4097 = vdwg.mxu0
      %v4099 = vsel %vm1144, %v4090, 0
      %v4102 = vsel %vm1144, %v4095, 0
      %v4105 = vsel %vm1144, %v3934, 0
      %v4108 = vsel %vm1144, %v3935, 0
      %v4111 = vsel %vm1144, %v3936, 0
      %v4114 = vsel %vm1144, %v3937, 0
      %v4117 = vsel %vm1144, %v3938, 0
      %v4120 = vsel %vm1144, %v3939, 0
      %v4123 = vsel %vm1144, %v3940, 0
      %v4126 = vsel %vm1144, %v3941, 0
      %4128 = vmatprep.subr.mxu0 0.0
      %4129 = vmatpush1.xpose.msra.mxu0 %v4105
      %4130 = vmatprep.subr.mxu0 0.0
      %4131 = vmatpush1.xpose.msra.mxu0 %v4108
      %4132 = vmatprep.subr.mxu0 0.0
      %4133 = vmatpush1.xpose.msra.mxu0 %v4111
      %4134 = vmatprep.subr.mxu0 0.0
      %4135 = vmatpush1.xpose.msra.mxu0 %v4114
      %4136 = vmatprep.subr.mxu0 0.0
      %4137 = vmatpush1.xpose.msra.mxu0 %v4117
      %4138 = vmatprep.subr.mxu0 0.0
      %4139 = vmatpush1.xpose.msra.mxu0 %v4120
      %4140 = vmatprep.subr.mxu0 0.0
      %4141 = vmatpush1.xpose.msra.mxu0 %v4123
      %4142 = vmatprep.subr.mxu0 0.0
      %4143 = vmatpush1.xpose.msra.mxu0 %v4126
      %4144 = vmatprep.subr.mxu0 0.0
      %4145 = vmatpush1.xpose.msra.mxu0 0.0
      %4146 = vmatprep.subr.mxu0 0.0
      %4147 = vmatpush1.xpose.msra.mxu0 0.0
      %4148 = vmatprep.subr.mxu0 0.0
      %4149 = vmatpush1.xpose.msra.mxu0 0.0
      %4150 = vmatprep.subr.mxu0 0.0
      %4151 = vmatpush1.xpose.msra.mxu0 0.0
      %4152 = vmatprep.subr.mxu0 0.0
      %4153 = vmatpush1.xpose.msra.mxu0 0.0
      %4154 = vmatprep.subr.mxu0 0.0
      %4155 = vmatpush1.xpose.msra.mxu0 0.0
      %4156 = vmatprep.subr.mxu0 0.0
      %4157 = vmatpush1.xpose.msra.mxu0 0.0
      %4158 = vmatprep.subr.mxu0 0.0
      %4159 = vmatpush1.xpose.msra.mxu0 0.0
      %4160 = vmatprep.subr.mxu0 0.0
      %4161 = vmatpush1.xpose.msra.mxu0 0.0
      %4162 = vmatprep.subr.mxu0 0.0
      %4163 = vmatpush1.xpose.msra.mxu0 0.0
      %4164 = vmatprep.subr.mxu0 0.0
      %4165 = vmatpush1.xpose.msra.mxu0 0.0
      %4166 = vmatprep.subr.mxu0 0.0
      %4167 = vmatpush1.xpose.msra.mxu0 0.0
      %4168 = vmatprep.subr.mxu0 0.0
      %4169 = vmatpush1.xpose.msra.mxu0 0.0
      %4170 = vmatprep.subr.mxu0 0.0
      %4171 = vmatpush1.xpose.msra.mxu0 0.0
      %4172 = vmatprep.subr.mxu0 0.0
      %4173 = vmatpush1.xpose.msra.mxu0 0.0
      %4174 = vmatprep.subr.mxu0 0.0
      %4175 = vmatpush1.xpose.msra.mxu0 0.0
      %4176 = vmatprep.subr.mxu0 0.0
      %4177 = vmatpush1.xpose.msra.mxu0 0.0
      %4178 = vmatprep.subr.mxu0 0.0
      %4179 = vmatpush1.xpose.msra.mxu0 0.0
      %4180 = vmatprep.subr.mxu0 0.0
      %4181 = vmatpush1.xpose.msra.mxu0 0.0
      %4182 = vmatprep.subr.mxu0 0.0
      %4183 = vmatpush1.xpose.msra.mxu0 0.0
      %4184 = vmatprep.subr.mxu0 0.0
      %4185 = vmatpush1.xpose.msra.mxu0 0.0
      %4186 = vmatprep.subr.mxu0 0.0
      %4187 = vmatpush1.xpose.msra.mxu0 0.0
      %4188 = vmatprep.subr.mxu0 0.0
      %4189 = vmatpush1.xpose.msra.mxu0 0.0
      %4190 = vmatprep.subr.mxu0 0.0
      %4191 = vmatpush1.xpose.msra.mxu0 0.0
      %4192 = vmatprep.mubr.f32.mxu0 0.0
      %4193 = vmatmul.mubr.f32.gmra.mrb[0].mxu0 %v4099
      %v4194 = vpop.f32.mrb[0].mxu0
      %v4195 = vadd.f32 0.0, %v4194
      %v4196 = vpop.f32.mrb[0].mxu0
      %4197 = vmatprep.mubr.f32.mxu0 0.0
      %4198 = vmatmul.mubr.f32.gmra.mrb[0].mxu0 %v4102
      %v4199 = vpop.f32.mrb[0].mxu0
      %v4200 = vadd.f32 0.0, %v4199
      %v4201 = vpop.f32.mrb[0].mxu0
      %4202 = vdwg.mxu0
      %v4203 = vadd.f32 %v3728, %v4195
      %v4204 = vadd.f32 %v3729, %v4200
      %v4205 = vld [vmem:[%s6] sm:$0x1]
      %v4207 = vlaneseq
      %v4208 = vshrl.u32 %v4207, 7
      %v4209 = vsub.s32 0, %v4208
      %v4210 = vrot.slane %v4205, %v4209
      %v4212 = vadd.f32 %v4203, %v4210
      %v4213 = vadd.f32 %v4204, %v4210
      %vm4214 = vcmp.gt.f32.partialorder %v4212, 0.0
      %vm4215 = vcmp.gt.f32.partialorder %v4213, 0.0
      %v4216 = vmul.f32 %v4212, 1.442695
      %v4217 = vpow.pop %v4216
      %v4218 = vmul.f32 %v4213, 1.442695
      %v4219 = vpow.pop %v4218
      %v4220 = vsub.f32 %v4217, 1.0
      %v4221 = vsub.f32 %v4219, 1.0
      %v4222 = vsel %vm4214, %v4212, %v4220
      %v4223 = vsel %vm4215, %v4213, %v4221
      %4224 = vst.msk [vmem:[%s298] sm:$0xff] %vm403, %v4222
      %4225 = vst.msk [vmem:[%s298 + $0x8] sm:$0xff] %vm403, %v4223
      %p4226 = scmp.lt.s32.totalorder %s18, 1
      %s4227 = scalar_select %p4226, %s18, 1
      %s4228 = smul.addr %s4227, 2
      %s4229 = smul.addr %s4228, 8
      %s4230 = scalar_lea.vmem %s7, %s4229
      // Predicated region
      $region49: #{batch_gat_forward.2} parent=47 // pred_check
        %p4231 = pneg %p193
      $region50: #{batch_gat_forward.2} parent=47 // pred_check_branch
        %4233 = sbr.rel (%p4231) target = $region52
      $region51: #{batch_gat_forward.2} parent=47 // pred_region
        _
      $region52: #{batch_gat_forward.2} parent=47 // pred_fallthru
        _
    $region48: #{batch_gat_forward.2} parent=5 // pred_fallthru
      _
    %p4234 = scmp.le.s32.totalorder 2, %s13
    // Predicated region
    $region53: #{batch_gat_forward.2} parent=5 // pred_check
      %p4235 = pneg %p4234
    $region54: #{batch_gat_forward.2} parent=5 // pred_check_branch
      %4237 = sbr.rel (%p4235) target = $region56
    $region55: #{batch_gat_forward.2} parent=5 // pred_region
      %s4238 = ssub.s32 %s13, 2
      // Predicated region
      $region57: #{batch_gat_forward.2} parent=55 // pred_check
        %p4239 = pneg %p199
      $region58: #{batch_gat_forward.2} parent=55 // pred_check_branch
        %4241 = sbr.rel (%p4239) target = $region60
      $region59: #{batch_gat_forward.2} parent=55 // pred_region
        %p4242 = scmp.lt.s32.totalorder %s19, 1
        %s4243 = scalar_select %p4242, %s19, 1
        %s4244 = smul.addr %s4243, 2
        %s4245 = smul.addr %s4244, 8
        %s4246 = scalar_lea.vmem %s7, %s4245
      $region60: #{batch_gat_forward.2} parent=55 // pred_fallthru
        _
    $region56: #{batch_gat_forward.2} parent=5 // pred_fallthru
      _
  $region6: #{batch_gat_forward.2} parent=0 // loop_footer
    %s17 = sadd.s32 1, %s13
  $region7: #{batch_gat_forward.2} parent=0 // loop_footer_branch
    %12 = sbr.rel target = $region3
  $region8: #{batch_gat_forward.2} parent=0 // loop_exit
    _

</llo_original>
